<compile_context>
chip_gen: v7x
topology: tpu7x:2x2x1
jax: 0.10.0
libtpu: 0.0.40
codegen_flags: <defaults>
</compile_context>

<pallas_src>
import functools

import jax
import jax.numpy as jnp
from jax.experimental import pallas as pl
from jax.experimental.pallas import tpu as pltpu


# ----------------------------------------------------------------------------
# Fused decoder kernel (single grid point, everything VMEM-resident)
# ----------------------------------------------------------------------------
def _decoder_kernel(tok_ref, lens_ref, table_ref, h0_ref, *args,
                    num_layers, T, B, H, N_pad, V_pad):
    """Fused teacher-forcing decoder forward.

    tok_ref   : VMEM (N_pad, 1) int32, time-major flattened token ids (n=t*B+b)
    lens_ref  : VMEM (B, 1) int32, effective output lengths (lens - 1)
    table_ref : VMEM (V_pad, E) f32, ReLU'd, row-padded embedding table
    h0_ref    : VMEM (L, B, H) initial hidden states (encoder features)
    args      : [wih_cat, whh_cat, bi_cat, b_hh_n] * L, lin_w_pad, lin_b_pad
                (inputs) followed by out_ref (output, (N_pad, V_pad)).
    """
    n_layer_refs = 4 * num_layers
    layer_refs = args[:n_layer_refs]
    lw_ref, lb_ref, out_ref = args[n_layer_refs:]

    N = T * B

    # ---- 1) Embedding gather as a one-hot MXU GEMM (ReLU pre-applied) ------
    tok = tok_ref[...]                                           # (N_pad, 1)
    col = jax.lax.broadcasted_iota(jnp.int32, (N_pad, V_pad), 1)
    one_hot = jnp.where(col == tok, 1.0, 0.0)                    # (N_pad, V_pad)
    emb = jnp.dot(one_hot, table_ref[...],
                  preferred_element_type=jnp.float32)            # (N_pad, E)

    # ---- per-layer parameters (broadcasts hoisted out of the time loop) ----
    layer_params = []
    for l in range(num_layers):
        wih_ref, whh_ref, bi_ref, bhn_ref = layer_refs[4 * l: 4 * l + 4]
        layer_params.append((wih_ref[...],                       # (D, 3H)
                             whh_ref[...],                       # (H, 3H)
                             bi_ref[...],                        # (1, 3H)
                             jnp.broadcast_to(bhn_ref[...], (B, H))))

    # Layer-0 input projection hoisted as one GEMM over all timesteps.
    gates_x0 = (jnp.dot(emb, layer_params[0][0],
                        preferred_element_type=jnp.float32)
                + layer_params[0][2])                            # (N_pad, 3H)

    lw = lw_ref[...]                                             # (H, V_pad)
    lb = lb_ref[...]                                             # (1, V_pad)
    lens_eff = lens_ref[...]                                     # (B, 1) int32

    # ---- 2) Wavefront-scheduled multi-layer GRU + per-step vocab proj ------
    # gate order (r, z, n), torch.nn.GRU semantics; h_new = h + (1-z)*(n - h)
    h = [h0_ref[l] for l in range(num_layers)]                   # each (B, H)
    feed = [None] * num_layers   # feed[l] = h_{l-1} for the step layer l runs next
    # TODO(synk): if T grows, switch this fully-unrolled wavefront to a
    # lax.fori_loop(..., unroll=k) to bound code size / vreg live ranges.
    # TODO(synk): at larger H, keep whh resident in the MXU weight registers
    # (pltpu.matmul_push_rhs / matmul_acc_lhs / matmul_pop) across the loop.
    for w in range(T + num_layers - 1):
        new_feed = list(feed)
        for l in range(num_layers):
            t = w - l
            if not (0 <= t < T):
                continue
            wih, whh, bi, bhn_b = layer_params[l]
            if l == 0:
                ix = gates_x0[t * B:(t + 1) * B, :]              # (B, 3H)
            else:
                # input projection of layer l>0 as soon as h_{l-1,t} exists
                ix = jnp.dot(feed[l], wih,
                             preferred_element_type=jnp.float32) + bi
            hh = jnp.dot(h[l], whh,
                         preferred_element_type=jnp.float32)     # (B, 3H)
            r = jax.nn.sigmoid(ix[:, :H] + hh[:, :H])
            z = jax.nn.sigmoid(ix[:, H:2 * H] + hh[:, H:2 * H])
            n_g = jnp.tanh(ix[:, 2 * H:] + r * (hh[:, 2 * H:] + bhn_b))
            h_new = h[l] + (1.0 - z) * (n_g - h[l])              # (1-z)*n + z*h
            h[l] = h_new
            if l + 1 < num_layers:
                new_feed[l + 1] = h_new
            else:
                # ---- 3) vocab projection + fused length mask, per step -----
                lg = jnp.dot(h_new, lw,
                             preferred_element_type=jnp.float32) + lb
                mask_t = jnp.where(lens_eff > t, 1.0, 0.0)       # (B, 1)
                out_ref[pl.ds(t * B, B), :] = lg * mask_t        # 128-lane rows
        feed = new_feed

    # zero the row-alignment padding so the output is deterministic
    if N_pad > N:
        out_ref[pl.ds(N, N_pad - N), :] = jnp.zeros((N_pad - N, V_pad),
                                                    jnp.float32)


def _full_spec(shape):
    # whole-array block, constant index map (single grid axis)
    nd = len(shape)
    if nd == 2:
        return pl.BlockSpec(shape, lambda i: (0, 0))
    if nd == 3:
        return pl.BlockSpec(shape, lambda i: (0, 0, 0))
    raise ValueError(f"unsupported rank {nd}")


# ----------------------------------------------------------------------------
# Decoder forward (teacher forcing branch)
# ----------------------------------------------------------------------------
def decoder_forward(params, encoder_features, targets, lens):
    """
    encoder_features: (num_layers, B, H)  -- GRU h0
    targets:          (B, T) int32        -- padded ground-truth tokens
    lens:             (B,)   int32        -- valid lengths of targets
    Returns (logits, out_lens):
      logits:   (B, T-1, vocab) padded; positions t >= lens[b]-1 are zeroed,
                matching what survives the final pack_padded_sequence.
      out_lens: lens - 1
    """
    vocab, dim_embed = params["embed"].shape
    num_layers = len(params["gru"])
    num_hidden = params["lin_w"].shape[0]
    B, T = targets.shape
    T_eff = T - 1
    N = T_eff * B
    N_pad = ((N + 7) // 8) * 8
    V_pad = ((vocab + 127) // 128) * 128
    lens_eff = lens - 1

    # glue: time-major flat token order, n = t*B + b (padded to N_pad rows)
    tok = targets[:, :T_eff].T.reshape(-1).astype(jnp.int32)             # (N,)
    tok2d = jnp.zeros((N_pad, 1), jnp.int32).at[:N, 0].set(tok)
    lens2d = lens_eff.astype(jnp.int32).reshape(B, 1)

    # glue (done once): ReLU'd + row-padded table, padded vocab projection,
    # gate-concatenated GRU weights, folded r/z biases
    table_pad = jnp.pad(jnp.maximum(params["embed"], 0.0),
                        ((0, V_pad - vocab), (0, 0)))                    # (V_pad,E)
    lw_pad = jnp.pad(params["lin_w"], ((0, 0), (0, V_pad - vocab)))      # (H,V_pad)
    lb_pad = jnp.pad(params["lin_b"], ((0, 0), (0, V_pad - vocab)))      # (1,V_pad)

    weight_args = []
    for layer in range(num_layers):
        w_ih, w_hh, b_ih, b_hh = params["gru"][layer]
        wih_cat = jnp.concatenate([w_ih[0], w_ih[1], w_ih[2]], axis=1)   # (D,3H)
        whh_cat = jnp.concatenate([w_hh[0], w_hh[1], w_hh[2]], axis=1)   # (H,3H)
        bi_cat = jnp.concatenate([b_ih[0] + b_hh[0],
                                  b_ih[1] + b_hh[1],
                                  b_ih[2]], axis=1)                      # (1,3H)
        b_hn = b_hh[2]                                                   # (1,H)
        weight_args += [wih_cat, whh_cat, bi_cat, b_hn]

    all_inputs = ([tok2d, lens2d, table_pad, encoder_features]
                  + weight_args + [lw_pad, lb_pad])
    in_specs = [_full_spec(a.shape) for a in all_inputs]

    kernel = functools.partial(_decoder_kernel, num_layers=num_layers,
                               T=T_eff, B=B, H=num_hidden,
                               N_pad=N_pad, V_pad=V_pad)

    # TODO(synk): at realistic vocab/B/T, tile the embedding GEMM and the
    # vocab projection over an extra "parallel" grid axis (uses v7x's second
    # TensorCore and bounds VMEM); a single resident grid point is fine at
    # these toy sizes.
    logits_flat = pl.pallas_call(
        kernel,
        out_shape=jax.ShapeDtypeStruct((N_pad, V_pad), jnp.float32),
        grid=(1,),
        in_specs=in_specs,
        out_specs=_full_spec((N_pad, V_pad)),
        compiler_params=pltpu.CompilerParams(
            dimension_semantics=("arbitrary",)),
    )(*all_inputs)

    # glue: strip padding, back to batch-major (mask already applied in-kernel)
    logits = (logits_flat[:N, :vocab]
              .reshape(T_eff, B, vocab).transpose(1, 0, 2))
    return logits, lens_eff


# ----------------------------------------------------------------------------
# Pure-JAX reference (same math as torch.nn.GRU / Linear / Embedding+ReLU)
# ----------------------------------------------------------------------------
def ref_forward(params, encoder_features, targets, lens):
    vocab, dim_embed = params["embed"].shape
    num_layers = len(params["gru"])
    B, T = targets.shape
    lens_eff = lens - 1
    T_eff = T - 1

    tok = targets[:, :T_eff]
    x = jnp.maximum(params["embed"][tok], 0.0)          # (B, T_eff, E)

    for layer in range(num_layers):
        w_ih, w_hh, b_ih, b_hh = params["gru"][layer]
        h = encoder_features[layer]
        outs = []
        for t in range(T_eff):
            xt = x[:, t]
            i_r = xt @ w_ih[0] + b_ih[0]
            i_z = xt @ w_ih[1] + b_ih[1]
            i_n = xt @ w_ih[2] + b_ih[2]
            h_r = h @ w_hh[0] + b_hh[0]
            h_z = h @ w_hh[1] + b_hh[1]
            h_n = h @ w_hh[2] + b_hh[2]
            r = jax.nn.sigmoid(i_r + h_r)
            z = jax.nn.sigmoid(i_z + h_z)
            n = jnp.tanh(i_n + r * h_n)
            h = (1.0 - z) * n + z * h
            outs.append(h)
        x = jnp.stack(outs, axis=1)                      # (B, T_eff, H)

    logits = x @ params["lin_w"] + params["lin_b"]
    mask = (jnp.arange(T_eff)[None, :] < lens_eff[:, None]).astype(jnp.float32)
    return logits * mask[:, :, None], lens_eff


# ----------------------------------------------------------------------------
# Deterministic parameter init + driver
# ----------------------------------------------------------------------------
def init_params(key, vocab, dim_embed, num_hidden, num_layers):
    keys = jax.random.split(key, 3 + 4 * num_layers)
    params = {
        "embed": 0.1 * jax.random.normal(keys[0], (vocab, dim_embed), jnp.float32),
        "lin_w": 0.1 * jax.random.normal(keys[1], (num_hidden, vocab), jnp.float32),
        "lin_b": 0.1 * jax.random.normal(keys[2], (1, vocab), jnp.float32),
        "gru": [],
    }
    for layer in range(num_layers):
        d_in = dim_embed if layer == 0 else num_hidden
        k = keys[3 + 4 * layer: 7 + 4 * layer]
        w_ih = 0.1 * jax.random.normal(k[0], (3, d_in, num_hidden), jnp.float32)
        w_hh = 0.1 * jax.random.normal(k[1], (3, num_hidden, num_hidden), jnp.float32)
        b_ih = 0.1 * jax.random.normal(k[2], (3, 1, num_hidden), jnp.float32)
        b_hh = 0.1 * jax.random.normal(k[3], (3, 1, num_hidden), jnp.float32)
        params["gru"].append((w_ih, w_hh, b_ih, b_hh))
    return params


if __name__ == "__main__":
    # small synthetic config consistent with the module
    vocab_size = 30          # charmap.vocab_size
    dim_embed = 32
    num_hidden = 32
    num_layers = 2
    batch = 2
    seq_len = 8

    key = jax.random.PRNGKey(0)
    kp, kh, kt = jax.random.split(key, 3)

    params = init_params(kp, vocab_size, dim_embed, num_hidden, num_layers)
    encoder_features = jax.random.normal(kh, (num_layers, batch, num_hidden),
                                         jnp.float32)
    targets = jax.random.randint(kt, (batch, seq_len), 0, vocab_size,
                                 dtype=jnp.int32)
    lens = jnp.array([seq_len, seq_len - 2], dtype=jnp.int32)

    logits, out_lens = decoder_forward(params, encoder_features, targets, lens)
    logits = jax.block_until_ready(logits)

    ref_logits, ref_lens = ref_forward(params, encoder_features, targets, lens)

    assert logits.shape == (batch, seq_len - 1, vocab_size)
    assert jnp.allclose(logits, ref_logits, atol=2e-4, rtol=2e-4)
    assert jnp.array_equal(out_lens, ref_lens)

    # TODO(synk): free-running (non-teacher-forcing) decode and beam search are
    # host-side sequential control flow over single steps; not implemented as a
    # kernel (the fused single-step path here is the building block they'd use).
    print("KERNEL_OK")
</pallas_src>

<mosaic_0001>
module attributes {stable_mosaic.version = 11 : i64} {
  func.func @_decoder_kernel(%arg0: i32, %arg1: memref<16x1xi32, #tpu.memory_space<vmem>>, %arg2: memref<2x1xi32, #tpu.memory_space<vmem>>, %arg3: memref<128x32xf32, #tpu.memory_space<vmem>>, %arg4: memref<2x2x32xf32, #tpu.memory_space<vmem>>, %arg5: memref<32x96xf32, #tpu.memory_space<vmem>>, %arg6: memref<32x96xf32, #tpu.memory_space<vmem>>, %arg7: memref<1x96xf32, #tpu.memory_space<vmem>>, %arg8: memref<1x32xf32, #tpu.memory_space<vmem>>, %arg9: memref<32x96xf32, #tpu.memory_space<vmem>>, %arg10: memref<32x96xf32, #tpu.memory_space<vmem>>, %arg11: memref<1x96xf32, #tpu.memory_space<vmem>>, %arg12: memref<1x32xf32, #tpu.memory_space<vmem>>, %arg13: memref<32x128xf32, #tpu.memory_space<vmem>>, %arg14: memref<1x128xf32, #tpu.memory_space<vmem>>, %arg15: memref<16x128xf32, #tpu.memory_space<vmem>>) attributes {dimension_semantics = [#tpu.dimension_semantics<arbitrary>], iteration_bounds = array<i64: 1>, scalar_prefetch = 0 : i64, scratch_operands = 0 : i64, tpu.core_type = #tpu.core_type<tc>, window_params = [{pipeline_mode = #tpu.pipeline_mode<synchronous>, transform_indices = @transform_0, window_bounds = array<i64: 16, 1>}, {pipeline_mode = #tpu.pipeline_mode<synchronous>, transform_indices = @transform_1, window_bounds = array<i64: 2, 1>}, {pipeline_mode = #tpu.pipeline_mode<synchronous>, transform_indices = @transform_2, window_bounds = array<i64: 128, 32>}, {pipeline_mode = #tpu.pipeline_mode<synchronous>, transform_indices = @transform_3, window_bounds = array<i64: 2, 2, 32>}, {pipeline_mode = #tpu.pipeline_mode<synchronous>, transform_indices = @transform_4, window_bounds = array<i64: 32, 96>}, {pipeline_mode = #tpu.pipeline_mode<synchronous>, transform_indices = @transform_5, window_bounds = array<i64: 32, 96>}, {pipeline_mode = #tpu.pipeline_mode<synchronous>, transform_indices = @transform_6, window_bounds = array<i64: 1, 96>}, {pipeline_mode = #tpu.pipeline_mode<synchronous>, transform_indices = @transform_7, window_bounds = array<i64: 1, 32>}, {pipeline_mode = #tpu.pipeline_mode<synchronous>, transform_indices = @transform_8, window_bounds = array<i64: 32, 96>}, {pipeline_mode = #tpu.pipeline_mode<synchronous>, transform_indices = @transform_9, window_bounds = array<i64: 32, 96>}, {pipeline_mode = #tpu.pipeline_mode<synchronous>, transform_indices = @transform_10, window_bounds = array<i64: 1, 96>}, {pipeline_mode = #tpu.pipeline_mode<synchronous>, transform_indices = @transform_11, window_bounds = array<i64: 1, 32>}, {pipeline_mode = #tpu.pipeline_mode<synchronous>, transform_indices = @transform_12, window_bounds = array<i64: 32, 128>}, {pipeline_mode = #tpu.pipeline_mode<synchronous>, transform_indices = @transform_13, window_bounds = array<i64: 1, 128>}, {pipeline_mode = #tpu.pipeline_mode<synchronous>, transform_indices = @transform_14, window_bounds = array<i64: 16, 128>}]} {
    %c0 = arith.constant 0 : index
    %c0_0 = arith.constant 0 : index
    %0 = vector.load %arg1[%c0, %c0_0] : memref<16x1xi32, #tpu.memory_space<vmem>>, vector<16x1xi32>
    %1 = tpu.iota {dimensions = array<i32: 1>} : vector<16x128xi32>
    %2 = vector.broadcast %0 : vector<16x1xi32> to vector<16x128xi32>
    %3 = arith.cmpi eq, %1, %2 : vector<16x128xi32>
    %cst = arith.constant 1.000000e+00 : f32
    %cst_1 = arith.constant 0.000000e+00 : f32
    %4 = vector.broadcast %cst : f32 to vector<16x128xf32>
    %5 = vector.broadcast %cst_1 : f32 to vector<16x128xf32>
    %6 = arith.select %3, %4, %5 : vector<16x128xi1>, vector<16x128xf32>
    %c0_2 = arith.constant 0 : index
    %c0_3 = arith.constant 0 : index
    %7 = vector.load %arg3[%c0_2, %c0_3] : memref<128x32xf32, #tpu.memory_space<vmem>>, vector<128x32xf32>
    %cst_4 = arith.constant dense<0.000000e+00> : vector<16x32xf32>
    %8 = tpu.matmul %6, %7, %cst_4 {dimension_numbers = #tpu.dot_dimension_numbers<[1], [0], [0], [1], [0, 0, 1, 1], [], []>} : vector<16x128xf32>, vector<128x32xf32>, vector<16x32xf32> -> vector<16x32xf32>
    %c0_5 = arith.constant 0 : index
    %c0_6 = arith.constant 0 : index
    %9 = vector.load %arg5[%c0_5, %c0_6] : memref<32x96xf32, #tpu.memory_space<vmem>>, vector<32x96xf32>
    %c0_7 = arith.constant 0 : index
    %c0_8 = arith.constant 0 : index
    %10 = vector.load %arg6[%c0_7, %c0_8] : memref<32x96xf32, #tpu.memory_space<vmem>>, vector<32x96xf32>
    %c0_9 = arith.constant 0 : index
    %c0_10 = arith.constant 0 : index
    %11 = vector.load %arg7[%c0_9, %c0_10] : memref<1x96xf32, #tpu.memory_space<vmem>>, vector<1x96xf32>
    %c0_11 = arith.constant 0 : index
    %c0_12 = arith.constant 0 : index
    %12 = vector.load %arg8[%c0_11, %c0_12] : memref<1x32xf32, #tpu.memory_space<vmem>>, vector<1x32xf32>
    %13 = vector.shape_cast %12 : vector<1x32xf32> to vector<1x32xf32>
    %14 = vector.broadcast %13 : vector<1x32xf32> to vector<2x32xf32>
    %c0_13 = arith.constant 0 : index
    %c0_14 = arith.constant 0 : index
    %15 = vector.load %arg9[%c0_13, %c0_14] : memref<32x96xf32, #tpu.memory_space<vmem>>, vector<32x96xf32>
    %c0_15 = arith.constant 0 : index
    %c0_16 = arith.constant 0 : index
    %16 = vector.load %arg10[%c0_15, %c0_16] : memref<32x96xf32, #tpu.memory_space<vmem>>, vector<32x96xf32>
    %c0_17 = arith.constant 0 : index
    %c0_18 = arith.constant 0 : index
    %17 = vector.load %arg11[%c0_17, %c0_18] : memref<1x96xf32, #tpu.memory_space<vmem>>, vector<1x96xf32>
    %c0_19 = arith.constant 0 : index
    %c0_20 = arith.constant 0 : index
    %18 = vector.load %arg12[%c0_19, %c0_20] : memref<1x32xf32, #tpu.memory_space<vmem>>, vector<1x32xf32>
    %19 = vector.shape_cast %18 : vector<1x32xf32> to vector<1x32xf32>
    %20 = vector.broadcast %19 : vector<1x32xf32> to vector<2x32xf32>
    %cst_21 = arith.constant dense<0.000000e+00> : vector<16x96xf32>
    %21 = tpu.matmul %8, %9, %cst_21 {dimension_numbers = #tpu.dot_dimension_numbers<[1], [0], [0], [1], [0, 0, 1, 1], [], []>} : vector<16x32xf32>, vector<32x96xf32>, vector<16x96xf32> -> vector<16x96xf32>
    %22 = vector.broadcast %11 : vector<1x96xf32> to vector<16x96xf32>
    %23 = arith.addf %21, %22 : vector<16x96xf32>
    %c0_22 = arith.constant 0 : index
    %c0_23 = arith.constant 0 : index
    %24 = vector.load %arg13[%c0_22, %c0_23] : memref<32x128xf32, #tpu.memory_space<vmem>>, vector<32x128xf32>
    %c0_24 = arith.constant 0 : index
    %c0_25 = arith.constant 0 : index
    %25 = vector.load %arg14[%c0_24, %c0_25] : memref<1x128xf32, #tpu.memory_space<vmem>>, vector<1x128xf32>
    %c0_26 = arith.constant 0 : index
    %c0_27 = arith.constant 0 : index
    %26 = vector.load %arg2[%c0_26, %c0_27] : memref<2x1xi32, #tpu.memory_space<vmem>>, vector<2x1xi32>
    %c0_28 = arith.constant 0 : index
    %c0_29 = arith.constant 0 : index
    %c0_30 = arith.constant 0 : index
    %27 = vector.load %arg4[%c0_28, %c0_29, %c0_30] : memref<2x2x32xf32, #tpu.memory_space<vmem>>, vector<1x2x32xf32>
    %28 = vector.shape_cast %27 : vector<1x2x32xf32> to vector<2x32xf32>
    %c1 = arith.constant 1 : index
    %c0_31 = arith.constant 0 : index
    %c0_32 = arith.constant 0 : index
    %29 = vector.load %arg4[%c1, %c0_31, %c0_32] : memref<2x2x32xf32, #tpu.memory_space<vmem>>, vector<1x2x32xf32>
    %30 = vector.shape_cast %29 : vector<1x2x32xf32> to vector<2x32xf32>
    %31 = vector.extract_strided_slice %23 {offsets = [0, 0], sizes = [2, 96], strides = [1, 1]} : vector<16x96xf32> to vector<2x96xf32>
    %cst_33 = arith.constant dense<0.000000e+00> : vector<2x96xf32>
    %32 = tpu.matmul %28, %10, %cst_33 {dimension_numbers = #tpu.dot_dimension_numbers<[1], [0], [0], [1], [0, 0, 1, 1], [], []>} : vector<2x32xf32>, vector<32x96xf32>, vector<2x96xf32> -> vector<2x96xf32>
    %33 = vector.extract_strided_slice %31 {offsets = [0, 0], sizes = [2, 32], strides = [1, 1]} : vector<2x96xf32> to vector<2x32xf32>
    %34 = vector.extract_strided_slice %32 {offsets = [0, 0], sizes = [2, 32], strides = [1, 1]} : vector<2x96xf32> to vector<2x32xf32>
    %35 = arith.addf %33, %34 : vector<2x32xf32>
    %36 = arith.negf %35 : vector<2x32xf32>
    %37 = math.exp %36 : vector<2x32xf32>
    %cst_34 = arith.constant 1.000000e+00 : f32
    %38 = vector.broadcast %cst_34 : f32 to vector<2x32xf32>
    %39 = arith.addf %38, %37 : vector<2x32xf32>
    %40 = arith.divf %38, %39 : vector<2x32xf32>
    %41 = vector.extract_strided_slice %31 {offsets = [0, 32], sizes = [2, 32], strides = [1, 1]} : vector<2x96xf32> to vector<2x32xf32>
    %42 = vector.extract_strided_slice %32 {offsets = [0, 32], sizes = [2, 32], strides = [1, 1]} : vector<2x96xf32> to vector<2x32xf32>
    %43 = arith.addf %41, %42 : vector<2x32xf32>
    %44 = arith.negf %43 : vector<2x32xf32>
    %45 = math.exp %44 : vector<2x32xf32>
    %cst_35 = arith.constant 1.000000e+00 : f32
    %46 = vector.broadcast %cst_35 : f32 to vector<2x32xf32>
    %47 = arith.addf %46, %45 : vector<2x32xf32>
    %48 = arith.divf %46, %47 : vector<2x32xf32>
    %49 = vector.extract_strided_slice %31 {offsets = [0, 64], sizes = [2, 32], strides = [1, 1]} : vector<2x96xf32> to vector<2x32xf32>
    %50 = vector.extract_strided_slice %32 {offsets = [0, 64], sizes = [2, 32], strides = [1, 1]} : vector<2x96xf32> to vector<2x32xf32>
    %51 = arith.addf %50, %14 : vector<2x32xf32>
    %52 = arith.mulf %40, %51 : vector<2x32xf32>
    %53 = arith.addf %49, %52 : vector<2x32xf32>
    %54 = math.tanh %53 : vector<2x32xf32>
    %cst_36 = arith.constant 1.000000e+00 : f32
    %55 = vector.broadcast %cst_36 : f32 to vector<2x32xf32>
    %56 = arith.subf %55, %48 : vector<2x32xf32>
    %57 = arith.subf %54, %28 : vector<2x32xf32>
    %58 = arith.mulf %56, %57 : vector<2x32xf32>
    %59 = arith.addf %28, %58 : vector<2x32xf32>
    %60 = vector.extract_strided_slice %23 {offsets = [2, 0], sizes = [2, 96], strides = [1, 1]} : vector<16x96xf32> to vector<2x96xf32>
    %cst_37 = arith.constant dense<0.000000e+00> : vector<2x96xf32>
    %61 = tpu.matmul %59, %10, %cst_37 {dimension_numbers = #tpu.dot_dimension_numbers<[1], [0], [0], [1], [0, 0, 1, 1], [], []>} : vector<2x32xf32>, vector<32x96xf32>, vector<2x96xf32> -> vector<2x96xf32>
    %62 = vector.extract_strided_slice %60 {offsets = [0, 0], sizes = [2, 32], strides = [1, 1]} : vector<2x96xf32> to vector<2x32xf32>
    %63 = vector.extract_strided_slice %61 {offsets = [0, 0], sizes = [2, 32], strides = [1, 1]} : vector<2x96xf32> to vector<2x32xf32>
    %64 = arith.addf %62, %63 : vector<2x32xf32>
    %65 = arith.negf %64 : vector<2x32xf32>
    %66 = math.exp %65 : vector<2x32xf32>
    %cst_38 = arith.constant 1.000000e+00 : f32
    %67 = vector.broadcast %cst_38 : f32 to vector<2x32xf32>
    %68 = arith.addf %67, %66 : vector<2x32xf32>
    %69 = arith.divf %67, %68 : vector<2x32xf32>
    %70 = vector.extract_strided_slice %60 {offsets = [0, 32], sizes = [2, 32], strides = [1, 1]} : vector<2x96xf32> to vector<2x32xf32>
    %71 = vector.extract_strided_slice %61 {offsets = [0, 32], sizes = [2, 32], strides = [1, 1]} : vector<2x96xf32> to vector<2x32xf32>
    %72 = arith.addf %70, %71 : vector<2x32xf32>
    %73 = arith.negf %72 : vector<2x32xf32>
    %74 = math.exp %73 : vector<2x32xf32>
    %cst_39 = arith.constant 1.000000e+00 : f32
    %75 = vector.broadcast %cst_39 : f32 to vector<2x32xf32>
    %76 = arith.addf %75, %74 : vector<2x32xf32>
    %77 = arith.divf %75, %76 : vector<2x32xf32>
    %78 = vector.extract_strided_slice %60 {offsets = [0, 64], sizes = [2, 32], strides = [1, 1]} : vector<2x96xf32> to vector<2x32xf32>
    %79 = vector.extract_strided_slice %61 {offsets = [0, 64], sizes = [2, 32], strides = [1, 1]} : vector<2x96xf32> to vector<2x32xf32>
    %80 = arith.addf %79, %14 : vector<2x32xf32>
    %81 = arith.mulf %69, %80 : vector<2x32xf32>
    %82 = arith.addf %78, %81 : vector<2x32xf32>
    %83 = math.tanh %82 : vector<2x32xf32>
    %cst_40 = arith.constant 1.000000e+00 : f32
    %84 = vector.broadcast %cst_40 : f32 to vector<2x32xf32>
    %85 = arith.subf %84, %77 : vector<2x32xf32>
    %86 = arith.subf %83, %59 : vector<2x32xf32>
    %87 = arith.mulf %85, %86 : vector<2x32xf32>
    %88 = arith.addf %59, %87 : vector<2x32xf32>
    %cst_41 = arith.constant dense<0.000000e+00> : vector<2x96xf32>
    %89 = tpu.matmul %59, %15, %cst_41 {dimension_numbers = #tpu.dot_dimension_numbers<[1], [0], [0], [1], [0, 0, 1, 1], [], []>} : vector<2x32xf32>, vector<32x96xf32>, vector<2x96xf32> -> vector<2x96xf32>
    %90 = vector.broadcast %17 : vector<1x96xf32> to vector<2x96xf32>
    %91 = arith.addf %89, %90 : vector<2x96xf32>
    %cst_42 = arith.constant dense<0.000000e+00> : vector<2x96xf32>
    %92 = tpu.matmul %30, %16, %cst_42 {dimension_numbers = #tpu.dot_dimension_numbers<[1], [0], [0], [1], [0, 0, 1, 1], [], []>} : vector<2x32xf32>, vector<32x96xf32>, vector<2x96xf32> -> vector<2x96xf32>
    %93 = vector.extract_strided_slice %91 {offsets = [0, 0], sizes = [2, 32], strides = [1, 1]} : vector<2x96xf32> to vector<2x32xf32>
    %94 = vector.extract_strided_slice %92 {offsets = [0, 0], sizes = [2, 32], strides = [1, 1]} : vector<2x96xf32> to vector<2x32xf32>
    %95 = arith.addf %93, %94 : vector<2x32xf32>
    %96 = arith.negf %95 : vector<2x32xf32>
    %97 = math.exp %96 : vector<2x32xf32>
    %cst_43 = arith.constant 1.000000e+00 : f32
    %98 = vector.broadcast %cst_43 : f32 to vector<2x32xf32>
    %99 = arith.addf %98, %97 : vector<2x32xf32>
    %100 = arith.divf %98, %99 : vector<2x32xf32>
    %101 = vector.extract_strided_slice %91 {offsets = [0, 32], sizes = [2, 32], strides = [1, 1]} : vector<2x96xf32> to vector<2x32xf32>
    %102 = vector.extract_strided_slice %92 {offsets = [0, 32], sizes = [2, 32], strides = [1, 1]} : vector<2x96xf32> to vector<2x32xf32>
    %103 = arith.addf %101, %102 : vector<2x32xf32>
    %104 = arith.negf %103 : vector<2x32xf32>
    %105 = math.exp %104 : vector<2x32xf32>
    %cst_44 = arith.constant 1.000000e+00 : f32
    %106 = vector.broadcast %cst_44 : f32 to vector<2x32xf32>
    %107 = arith.addf %106, %105 : vector<2x32xf32>
    %108 = arith.divf %106, %107 : vector<2x32xf32>
    %109 = vector.extract_strided_slice %91 {offsets = [0, 64], sizes = [2, 32], strides = [1, 1]} : vector<2x96xf32> to vector<2x32xf32>
    %110 = vector.extract_strided_slice %92 {offsets = [0, 64], sizes = [2, 32], strides = [1, 1]} : vector<2x96xf32> to vector<2x32xf32>
    %111 = arith.addf %110, %20 : vector<2x32xf32>
    %112 = arith.mulf %100, %111 : vector<2x32xf32>
    %113 = arith.addf %109, %112 : vector<2x32xf32>
    %114 = math.tanh %113 : vector<2x32xf32>
    %cst_45 = arith.constant 1.000000e+00 : f32
    %115 = vector.broadcast %cst_45 : f32 to vector<2x32xf32>
    %116 = arith.subf %115, %108 : vector<2x32xf32>
    %117 = arith.subf %114, %30 : vector<2x32xf32>
    %118 = arith.mulf %116, %117 : vector<2x32xf32>
    %119 = arith.addf %30, %118 : vector<2x32xf32>
    %cst_46 = arith.constant dense<0.000000e+00> : vector<2x128xf32>
    %120 = tpu.matmul %119, %24, %cst_46 {dimension_numbers = #tpu.dot_dimension_numbers<[1], [0], [0], [1], [0, 0, 1, 1], [], []>} : vector<2x32xf32>, vector<32x128xf32>, vector<2x128xf32> -> vector<2x128xf32>
    %121 = vector.broadcast %25 : vector<1x128xf32> to vector<2x128xf32>
    %122 = arith.addf %120, %121 : vector<2x128xf32>
    %c0_i32 = arith.constant 0 : i32
    %123 = vector.broadcast %c0_i32 : i32 to vector<2x1xi32>
    %124 = arith.cmpi sgt, %26, %123 : vector<2x1xi32>
    %cst_47 = arith.constant 1.000000e+00 : f32
    %cst_48 = arith.constant 0.000000e+00 : f32
    %125 = vector.broadcast %cst_47 : f32 to vector<2x1xf32>
    %126 = vector.broadcast %cst_48 : f32 to vector<2x1xf32>
    %127 = arith.select %124, %125, %126 : vector<2x1xi1>, vector<2x1xf32>
    %128 = vector.broadcast %127 : vector<2x1xf32> to vector<2x128xf32>
    %129 = arith.mulf %122, %128 : vector<2x128xf32>
    %c0_49 = arith.constant 0 : index
    %c0_50 = arith.constant 0 : index
    %130 = vector.load %arg15[%c0_49, %c0_50] : memref<16x128xf32, #tpu.memory_space<vmem>>, vector<2x128xf32>
    tpu.vector_store %arg15[%c0_49, %c0_50], %129 {strides = array<i32>} : memref<16x128xf32, #tpu.memory_space<vmem>>, vector<2x128xf32>,
    %131 = vector.extract_strided_slice %23 {offsets = [4, 0], sizes = [2, 96], strides = [1, 1]} : vector<16x96xf32> to vector<2x96xf32>
    %cst_51 = arith.constant dense<0.000000e+00> : vector<2x96xf32>
    %132 = tpu.matmul %88, %10, %cst_51 {dimension_numbers = #tpu.dot_dimension_numbers<[1], [0], [0], [1], [0, 0, 1, 1], [], []>} : vector<2x32xf32>, vector<32x96xf32>, vector<2x96xf32> -> vector<2x96xf32>
    %133 = vector.extract_strided_slice %131 {offsets = [0, 0], sizes = [2, 32], strides = [1, 1]} : vector<2x96xf32> to vector<2x32xf32>
    %134 = vector.extract_strided_slice %132 {offsets = [0, 0], sizes = [2, 32], strides = [1, 1]} : vector<2x96xf32> to vector<2x32xf32>
    %135 = arith.addf %133, %134 : vector<2x32xf32>
    %136 = arith.negf %135 : vector<2x32xf32>
    %137 = math.exp %136 : vector<2x32xf32>
    %cst_52 = arith.constant 1.000000e+00 : f32
    %138 = vector.broadcast %cst_52 : f32 to vector<2x32xf32>
    %139 = arith.addf %138, %137 : vector<2x32xf32>
    %140 = arith.divf %138, %139 : vector<2x32xf32>
    %141 = vector.extract_strided_slice %131 {offsets = [0, 32], sizes = [2, 32], strides = [1, 1]} : vector<2x96xf32> to vector<2x32xf32>
    %142 = vector.extract_strided_slice %132 {offsets = [0, 32], sizes = [2, 32], strides = [1, 1]} : vector<2x96xf32> to vector<2x32xf32>
    %143 = arith.addf %141, %142 : vector<2x32xf32>
    %144 = arith.negf %143 : vector<2x32xf32>
    %145 = math.exp %144 : vector<2x32xf32>
    %cst_53 = arith.constant 1.000000e+00 : f32
    %146 = vector.broadcast %cst_53 : f32 to vector<2x32xf32>
    %147 = arith.addf %146, %145 : vector<2x32xf32>
    %148 = arith.divf %146, %147 : vector<2x32xf32>
    %149 = vector.extract_strided_slice %131 {offsets = [0, 64], sizes = [2, 32], strides = [1, 1]} : vector<2x96xf32> to vector<2x32xf32>
    %150 = vector.extract_strided_slice %132 {offsets = [0, 64], sizes = [2, 32], strides = [1, 1]} : vector<2x96xf32> to vector<2x32xf32>
    %151 = arith.addf %150, %14 : vector<2x32xf32>
    %152 = arith.mulf %140, %151 : vector<2x32xf32>
    %153 = arith.addf %149, %152 : vector<2x32xf32>
    %154 = math.tanh %153 : vector<2x32xf32>
    %cst_54 = arith.constant 1.000000e+00 : f32
    %155 = vector.broadcast %cst_54 : f32 to vector<2x32xf32>
    %156 = arith.subf %155, %148 : vector<2x32xf32>
    %157 = arith.subf %154, %88 : vector<2x32xf32>
    %158 = arith.mulf %156, %157 : vector<2x32xf32>
    %159 = arith.addf %88, %158 : vector<2x32xf32>
    %cst_55 = arith.constant dense<0.000000e+00> : vector<2x96xf32>
    %160 = tpu.matmul %88, %15, %cst_55 {dimension_numbers = #tpu.dot_dimension_numbers<[1], [0], [0], [1], [0, 0, 1, 1], [], []>} : vector<2x32xf32>, vector<32x96xf32>, vector<2x96xf32> -> vector<2x96xf32>
    %161 = vector.broadcast %17 : vector<1x96xf32> to vector<2x96xf32>
    %162 = arith.addf %160, %161 : vector<2x96xf32>
    %cst_56 = arith.constant dense<0.000000e+00> : vector<2x96xf32>
    %163 = tpu.matmul %119, %16, %cst_56 {dimension_numbers = #tpu.dot_dimension_numbers<[1], [0], [0], [1], [0, 0, 1, 1], [], []>} : vector<2x32xf32>, vector<32x96xf32>, vector<2x96xf32> -> vector<2x96xf32>
    %164 = vector.extract_strided_slice %162 {offsets = [0, 0], sizes = [2, 32], strides = [1, 1]} : vector<2x96xf32> to vector<2x32xf32>
    %165 = vector.extract_strided_slice %163 {offsets = [0, 0], sizes = [2, 32], strides = [1, 1]} : vector<2x96xf32> to vector<2x32xf32>
    %166 = arith.addf %164, %165 : vector<2x32xf32>
    %167 = arith.negf %166 : vector<2x32xf32>
    %168 = math.exp %167 : vector<2x32xf32>
    %cst_57 = arith.constant 1.000000e+00 : f32
    %169 = vector.broadcast %cst_57 : f32 to vector<2x32xf32>
    %170 = arith.addf %169, %168 : vector<2x32xf32>
    %171 = arith.divf %169, %170 : vector<2x32xf32>
    %172 = vector.extract_strided_slice %162 {offsets = [0, 32], sizes = [2, 32], strides = [1, 1]} : vector<2x96xf32> to vector<2x32xf32>
    %173 = vector.extract_strided_slice %163 {offsets = [0, 32], sizes = [2, 32], strides = [1, 1]} : vector<2x96xf32> to vector<2x32xf32>
    %174 = arith.addf %172, %173 : vector<2x32xf32>
    %175 = arith.negf %174 : vector<2x32xf32>
    %176 = math.exp %175 : vector<2x32xf32>
    %cst_58 = arith.constant 1.000000e+00 : f32
    %177 = vector.broadcast %cst_58 : f32 to vector<2x32xf32>
    %178 = arith.addf %177, %176 : vector<2x32xf32>
    %179 = arith.divf %177, %178 : vector<2x32xf32>
    %180 = vector.extract_strided_slice %162 {offsets = [0, 64], sizes = [2, 32], strides = [1, 1]} : vector<2x96xf32> to vector<2x32xf32>
    %181 = vector.extract_strided_slice %163 {offsets = [0, 64], sizes = [2, 32], strides = [1, 1]} : vector<2x96xf32> to vector<2x32xf32>
    %182 = arith.addf %181, %20 : vector<2x32xf32>
    %183 = arith.mulf %171, %182 : vector<2x32xf32>
    %184 = arith.addf %180, %183 : vector<2x32xf32>
    %185 = math.tanh %184 : vector<2x32xf32>
    %cst_59 = arith.constant 1.000000e+00 : f32
    %186 = vector.broadcast %cst_59 : f32 to vector<2x32xf32>
    %187 = arith.subf %186, %179 : vector<2x32xf32>
    %188 = arith.subf %185, %119 : vector<2x32xf32>
    %189 = arith.mulf %187, %188 : vector<2x32xf32>
    %190 = arith.addf %119, %189 : vector<2x32xf32>
    %cst_60 = arith.constant dense<0.000000e+00> : vector<2x128xf32>
    %191 = tpu.matmul %190, %24, %cst_60 {dimension_numbers = #tpu.dot_dimension_numbers<[1], [0], [0], [1], [0, 0, 1, 1], [], []>} : vector<2x32xf32>, vector<32x128xf32>, vector<2x128xf32> -> vector<2x128xf32>
    %192 = vector.broadcast %25 : vector<1x128xf32> to vector<2x128xf32>
    %193 = arith.addf %191, %192 : vector<2x128xf32>
    %c1_i32 = arith.constant 1 : i32
    %194 = vector.broadcast %c1_i32 : i32 to vector<2x1xi32>
    %195 = arith.cmpi sgt, %26, %194 : vector<2x1xi32>
    %cst_61 = arith.constant 1.000000e+00 : f32
    %cst_62 = arith.constant 0.000000e+00 : f32
    %196 = vector.broadcast %cst_61 : f32 to vector<2x1xf32>
    %197 = vector.broadcast %cst_62 : f32 to vector<2x1xf32>
    %198 = arith.select %195, %196, %197 : vector<2x1xi1>, vector<2x1xf32>
    %199 = vector.broadcast %198 : vector<2x1xf32> to vector<2x128xf32>
    %200 = arith.mulf %193, %199 : vector<2x128xf32>
    %c2 = arith.constant 2 : index
    %c0_63 = arith.constant 0 : index
    %201 = vector.load %arg15[%c2, %c0_63] : memref<16x128xf32, #tpu.memory_space<vmem>>, vector<2x128xf32>
    tpu.vector_store %arg15[%c2, %c0_63], %200 {strides = array<i32>} : memref<16x128xf32, #tpu.memory_space<vmem>>, vector<2x128xf32>,
    %202 = vector.extract_strided_slice %23 {offsets = [6, 0], sizes = [2, 96], strides = [1, 1]} : vector<16x96xf32> to vector<2x96xf32>
    %cst_64 = arith.constant dense<0.000000e+00> : vector<2x96xf32>
    %203 = tpu.matmul %159, %10, %cst_64 {dimension_numbers = #tpu.dot_dimension_numbers<[1], [0], [0], [1], [0, 0, 1, 1], [], []>} : vector<2x32xf32>, vector<32x96xf32>, vector<2x96xf32> -> vector<2x96xf32>
    %204 = vector.extract_strided_slice %202 {offsets = [0, 0], sizes = [2, 32], strides = [1, 1]} : vector<2x96xf32> to vector<2x32xf32>
    %205 = vector.extract_strided_slice %203 {offsets = [0, 0], sizes = [2, 32], strides = [1, 1]} : vector<2x96xf32> to vector<2x32xf32>
    %206 = arith.addf %204, %205 : vector<2x32xf32>
    %207 = arith.negf %206 : vector<2x32xf32>
    %208 = math.exp %207 : vector<2x32xf32>
    %cst_65 = arith.constant 1.000000e+00 : f32
    %209 = vector.broadcast %cst_65 : f32 to vector<2x32xf32>
    %210 = arith.addf %209, %208 : vector<2x32xf32>
    %211 = arith.divf %209, %210 : vector<2x32xf32>
    %212 = vector.extract_strided_slice %202 {offsets = [0, 32], sizes = [2, 32], strides = [1, 1]} : vector<2x96xf32> to vector<2x32xf32>
    %213 = vector.extract_strided_slice %203 {offsets = [0, 32], sizes = [2, 32], strides = [1, 1]} : vector<2x96xf32> to vector<2x32xf32>
    %214 = arith.addf %212, %213 : vector<2x32xf32>
    %215 = arith.negf %214 : vector<2x32xf32>
    %216 = math.exp %215 : vector<2x32xf32>
    %cst_66 = arith.constant 1.000000e+00 : f32
    %217 = vector.broadcast %cst_66 : f32 to vector<2x32xf32>
    %218 = arith.addf %217, %216 : vector<2x32xf32>
    %219 = arith.divf %217, %218 : vector<2x32xf32>
    %220 = vector.extract_strided_slice %202 {offsets = [0, 64], sizes = [2, 32], strides = [1, 1]} : vector<2x96xf32> to vector<2x32xf32>
    %221 = vector.extract_strided_slice %203 {offsets = [0, 64], sizes = [2, 32], strides = [1, 1]} : vector<2x96xf32> to vector<2x32xf32>
    %222 = arith.addf %221, %14 : vector<2x32xf32>
    %223 = arith.mulf %211, %222 : vector<2x32xf32>
    %224 = arith.addf %220, %223 : vector<2x32xf32>
    %225 = math.tanh %224 : vector<2x32xf32>
    %cst_67 = arith.constant 1.000000e+00 : f32
    %226 = vector.broadcast %cst_67 : f32 to vector<2x32xf32>
    %227 = arith.subf %226, %219 : vector<2x32xf32>
    %228 = arith.subf %225, %159 : vector<2x32xf32>
    %229 = arith.mulf %227, %228 : vector<2x32xf32>
    %230 = arith.addf %159, %229 : vector<2x32xf32>
    %cst_68 = arith.constant dense<0.000000e+00> : vector<2x96xf32>
    %231 = tpu.matmul %159, %15, %cst_68 {dimension_numbers = #tpu.dot_dimension_numbers<[1], [0], [0], [1], [0, 0, 1, 1], [], []>} : vector<2x32xf32>, vector<32x96xf32>, vector<2x96xf32> -> vector<2x96xf32>
    %232 = vector.broadcast %17 : vector<1x96xf32> to vector<2x96xf32>
    %233 = arith.addf %231, %232 : vector<2x96xf32>
    %cst_69 = arith.constant dense<0.000000e+00> : vector<2x96xf32>
    %234 = tpu.matmul %190, %16, %cst_69 {dimension_numbers = #tpu.dot_dimension_numbers<[1], [0], [0], [1], [0, 0, 1, 1], [], []>} : vector<2x32xf32>, vector<32x96xf32>, vector<2x96xf32> -> vector<2x96xf32>
    %235 = vector.extract_strided_slice %233 {offsets = [0, 0], sizes = [2, 32], strides = [1, 1]} : vector<2x96xf32> to vector<2x32xf32>
    %236 = vector.extract_strided_slice %234 {offsets = [0, 0], sizes = [2, 32], strides = [1, 1]} : vector<2x96xf32> to vector<2x32xf32>
    %237 = arith.addf %235, %236 : vector<2x32xf32>
    %238 = arith.negf %237 : vector<2x32xf32>
    %239 = math.exp %238 : vector<2x32xf32>
    %cst_70 = arith.constant 1.000000e+00 : f32
    %240 = vector.broadcast %cst_70 : f32 to vector<2x32xf32>
    %241 = arith.addf %240, %239 : vector<2x32xf32>
    %242 = arith.divf %240, %241 : vector<2x32xf32>
    %243 = vector.extract_strided_slice %233 {offsets = [0, 32], sizes = [2, 32], strides = [1, 1]} : vector<2x96xf32> to vector<2x32xf32>
    %244 = vector.extract_strided_slice %234 {offsets = [0, 32], sizes = [2, 32], strides = [1, 1]} : vector<2x96xf32> to vector<2x32xf32>
    %245 = arith.addf %243, %244 : vector<2x32xf32>
    %246 = arith.negf %245 : vector<2x32xf32>
    %247 = math.exp %246 : vector<2x32xf32>
    %cst_71 = arith.constant 1.000000e+00 : f32
    %248 = vector.broadcast %cst_71 : f32 to vector<2x32xf32>
    %249 = arith.addf %248, %247 : vector<2x32xf32>
    %250 = arith.divf %248, %249 : vector<2x32xf32>
    %251 = vector.extract_strided_slice %233 {offsets = [0, 64], sizes = [2, 32], strides = [1, 1]} : vector<2x96xf32> to vector<2x32xf32>
    %252 = vector.extract_strided_slice %234 {offsets = [0, 64], sizes = [2, 32], strides = [1, 1]} : vector<2x96xf32> to vector<2x32xf32>
    %253 = arith.addf %252, %20 : vector<2x32xf32>
    %254 = arith.mulf %242, %253 : vector<2x32xf32>
    %255 = arith.addf %251, %254 : vector<2x32xf32>
    %256 = math.tanh %255 : vector<2x32xf32>
    %cst_72 = arith.constant 1.000000e+00 : f32
    %257 = vector.broadcast %cst_72 : f32 to vector<2x32xf32>
    %258 = arith.subf %257, %250 : vector<2x32xf32>
    %259 = arith.subf %256, %190 : vector<2x32xf32>
    %260 = arith.mulf %258, %259 : vector<2x32xf32>
    %261 = arith.addf %190, %260 : vector<2x32xf32>
    %cst_73 = arith.constant dense<0.000000e+00> : vector<2x128xf32>
    %262 = tpu.matmul %261, %24, %cst_73 {dimension_numbers = #tpu.dot_dimension_numbers<[1], [0], [0], [1], [0, 0, 1, 1], [], []>} : vector<2x32xf32>, vector<32x128xf32>, vector<2x128xf32> -> vector<2x128xf32>
    %263 = vector.broadcast %25 : vector<1x128xf32> to vector<2x128xf32>
    %264 = arith.addf %262, %263 : vector<2x128xf32>
    %c2_i32 = arith.constant 2 : i32
    %265 = vector.broadcast %c2_i32 : i32 to vector<2x1xi32>
    %266 = arith.cmpi sgt, %26, %265 : vector<2x1xi32>
    %cst_74 = arith.constant 1.000000e+00 : f32
    %cst_75 = arith.constant 0.000000e+00 : f32
    %267 = vector.broadcast %cst_74 : f32 to vector<2x1xf32>
    %268 = vector.broadcast %cst_75 : f32 to vector<2x1xf32>
    %269 = arith.select %266, %267, %268 : vector<2x1xi1>, vector<2x1xf32>
    %270 = vector.broadcast %269 : vector<2x1xf32> to vector<2x128xf32>
    %271 = arith.mulf %264, %270 : vector<2x128xf32>
    %c4 = arith.constant 4 : index
    %c0_76 = arith.constant 0 : index
    %272 = vector.load %arg15[%c4, %c0_76] : memref<16x128xf32, #tpu.memory_space<vmem>>, vector<2x128xf32>
    tpu.vector_store %arg15[%c4, %c0_76], %271 {strides = array<i32>} : memref<16x128xf32, #tpu.memory_space<vmem>>, vector<2x128xf32>,
    %273 = vector.extract_strided_slice %23 {offsets = [8, 0], sizes = [2, 96], strides = [1, 1]} : vector<16x96xf32> to vector<2x96xf32>
    %cst_77 = arith.constant dense<0.000000e+00> : vector<2x96xf32>
    %274 = tpu.matmul %230, %10, %cst_77 {dimension_numbers = #tpu.dot_dimension_numbers<[1], [0], [0], [1], [0, 0, 1, 1], [], []>} : vector<2x32xf32>, vector<32x96xf32>, vector<2x96xf32> -> vector<2x96xf32>
    %275 = vector.extract_strided_slice %273 {offsets = [0, 0], sizes = [2, 32], strides = [1, 1]} : vector<2x96xf32> to vector<2x32xf32>
    %276 = vector.extract_strided_slice %274 {offsets = [0, 0], sizes = [2, 32], strides = [1, 1]} : vector<2x96xf32> to vector<2x32xf32>
    %277 = arith.addf %275, %276 : vector<2x32xf32>
    %278 = arith.negf %277 : vector<2x32xf32>
    %279 = math.exp %278 : vector<2x32xf32>
    %cst_78 = arith.constant 1.000000e+00 : f32
    %280 = vector.broadcast %cst_78 : f32 to vector<2x32xf32>
    %281 = arith.addf %280, %279 : vector<2x32xf32>
    %282 = arith.divf %280, %281 : vector<2x32xf32>
    %283 = vector.extract_strided_slice %273 {offsets = [0, 32], sizes = [2, 32], strides = [1, 1]} : vector<2x96xf32> to vector<2x32xf32>
    %284 = vector.extract_strided_slice %274 {offsets = [0, 32], sizes = [2, 32], strides = [1, 1]} : vector<2x96xf32> to vector<2x32xf32>
    %285 = arith.addf %283, %284 : vector<2x32xf32>
    %286 = arith.negf %285 : vector<2x32xf32>
    %287 = math.exp %286 : vector<2x32xf32>
    %cst_79 = arith.constant 1.000000e+00 : f32
    %288 = vector.broadcast %cst_79 : f32 to vector<2x32xf32>
    %289 = arith.addf %288, %287 : vector<2x32xf32>
    %290 = arith.divf %288, %289 : vector<2x32xf32>
    %291 = vector.extract_strided_slice %273 {offsets = [0, 64], sizes = [2, 32], strides = [1, 1]} : vector<2x96xf32> to vector<2x32xf32>
    %292 = vector.extract_strided_slice %274 {offsets = [0, 64], sizes = [2, 32], strides = [1, 1]} : vector<2x96xf32> to vector<2x32xf32>
    %293 = arith.addf %292, %14 : vector<2x32xf32>
    %294 = arith.mulf %282, %293 : vector<2x32xf32>
    %295 = arith.addf %291, %294 : vector<2x32xf32>
    %296 = math.tanh %295 : vector<2x32xf32>
    %cst_80 = arith.constant 1.000000e+00 : f32
    %297 = vector.broadcast %cst_80 : f32 to vector<2x32xf32>
    %298 = arith.subf %297, %290 : vector<2x32xf32>
    %299 = arith.subf %296, %230 : vector<2x32xf32>
    %300 = arith.mulf %298, %299 : vector<2x32xf32>
    %301 = arith.addf %230, %300 : vector<2x32xf32>
    %cst_81 = arith.constant dense<0.000000e+00> : vector<2x96xf32>
    %302 = tpu.matmul %230, %15, %cst_81 {dimension_numbers = #tpu.dot_dimension_numbers<[1], [0], [0], [1], [0, 0, 1, 1], [], []>} : vector<2x32xf32>, vector<32x96xf32>, vector<2x96xf32> -> vector<2x96xf32>
    %303 = vector.broadcast %17 : vector<1x96xf32> to vector<2x96xf32>
    %304 = arith.addf %302, %303 : vector<2x96xf32>
    %cst_82 = arith.constant dense<0.000000e+00> : vector<2x96xf32>
    %305 = tpu.matmul %261, %16, %cst_82 {dimension_numbers = #tpu.dot_dimension_numbers<[1], [0], [0], [1], [0, 0, 1, 1], [], []>} : vector<2x32xf32>, vector<32x96xf32>, vector<2x96xf32> -> vector<2x96xf32>
    %306 = vector.extract_strided_slice %304 {offsets = [0, 0], sizes = [2, 32], strides = [1, 1]} : vector<2x96xf32> to vector<2x32xf32>
    %307 = vector.extract_strided_slice %305 {offsets = [0, 0], sizes = [2, 32], strides = [1, 1]} : vector<2x96xf32> to vector<2x32xf32>
    %308 = arith.addf %306, %307 : vector<2x32xf32>
    %309 = arith.negf %308 : vector<2x32xf32>
    %310 = math.exp %309 : vector<2x32xf32>
    %cst_83 = arith.constant 1.000000e+00 : f32
    %311 = vector.broadcast %cst_83 : f32 to vector<2x32xf32>
    %312 = arith.addf %311, %310 : vector<2x32xf32>
    %313 = arith.divf %311, %312 : vector<2x32xf32>
    %314 = vector.extract_strided_slice %304 {offsets = [0, 32], sizes = [2, 32], strides = [1, 1]} : vector<2x96xf32> to vector<2x32xf32>
    %315 = vector.extract_strided_slice %305 {offsets = [0, 32], sizes = [2, 32], strides = [1, 1]} : vector<2x96xf32> to vector<2x32xf32>
    %316 = arith.addf %314, %315 : vector<2x32xf32>
    %317 = arith.negf %316 : vector<2x32xf32>
    %318 = math.exp %317 : vector<2x32xf32>
    %cst_84 = arith.constant 1.000000e+00 : f32
    %319 = vector.broadcast %cst_84 : f32 to vector<2x32xf32>
    %320 = arith.addf %319, %318 : vector<2x32xf32>
    %321 = arith.divf %319, %320 : vector<2x32xf32>
    %322 = vector.extract_strided_slice %304 {offsets = [0, 64], sizes = [2, 32], strides = [1, 1]} : vector<2x96xf32> to vector<2x32xf32>
    %323 = vector.extract_strided_slice %305 {offsets = [0, 64], sizes = [2, 32], strides = [1, 1]} : vector<2x96xf32> to vector<2x32xf32>
    %324 = arith.addf %323, %20 : vector<2x32xf32>
    %325 = arith.mulf %313, %324 : vector<2x32xf32>
    %326 = arith.addf %322, %325 : vector<2x32xf32>
    %327 = math.tanh %326 : vector<2x32xf32>
    %cst_85 = arith.constant 1.000000e+00 : f32
    %328 = vector.broadcast %cst_85 : f32 to vector<2x32xf32>
    %329 = arith.subf %328, %321 : vector<2x32xf32>
    %330 = arith.subf %327, %261 : vector<2x32xf32>
    %331 = arith.mulf %329, %330 : vector<2x32xf32>
    %332 = arith.addf %261, %331 : vector<2x32xf32>
    %cst_86 = arith.constant dense<0.000000e+00> : vector<2x128xf32>
    %333 = tpu.matmul %332, %24, %cst_86 {dimension_numbers = #tpu.dot_dimension_numbers<[1], [0], [0], [1], [0, 0, 1, 1], [], []>} : vector<2x32xf32>, vector<32x128xf32>, vector<2x128xf32> -> vector<2x128xf32>
    %334 = vector.broadcast %25 : vector<1x128xf32> to vector<2x128xf32>
    %335 = arith.addf %333, %334 : vector<2x128xf32>
    %c3_i32 = arith.constant 3 : i32
    %336 = vector.broadcast %c3_i32 : i32 to vector<2x1xi32>
    %337 = arith.cmpi sgt, %26, %336 : vector<2x1xi32>
    %cst_87 = arith.constant 1.000000e+00 : f32
    %cst_88 = arith.constant 0.000000e+00 : f32
    %338 = vector.broadcast %cst_87 : f32 to vector<2x1xf32>
    %339 = vector.broadcast %cst_88 : f32 to vector<2x1xf32>
    %340 = arith.select %337, %338, %339 : vector<2x1xi1>, vector<2x1xf32>
    %341 = vector.broadcast %340 : vector<2x1xf32> to vector<2x128xf32>
    %342 = arith.mulf %335, %341 : vector<2x128xf32>
    %c6 = arith.constant 6 : index
    %c0_89 = arith.constant 0 : index
    %343 = vector.load %arg15[%c6, %c0_89] : memref<16x128xf32, #tpu.memory_space<vmem>>, vector<2x128xf32>
    tpu.vector_store %arg15[%c6, %c0_89], %342 {strides = array<i32>} : memref<16x128xf32, #tpu.memory_space<vmem>>, vector<2x128xf32>,
    %344 = vector.extract_strided_slice %23 {offsets = [10, 0], sizes = [2, 96], strides = [1, 1]} : vector<16x96xf32> to vector<2x96xf32>
    %cst_90 = arith.constant dense<0.000000e+00> : vector<2x96xf32>
    %345 = tpu.matmul %301, %10, %cst_90 {dimension_numbers = #tpu.dot_dimension_numbers<[1], [0], [0], [1], [0, 0, 1, 1], [], []>} : vector<2x32xf32>, vector<32x96xf32>, vector<2x96xf32> -> vector<2x96xf32>
    %346 = vector.extract_strided_slice %344 {offsets = [0, 0], sizes = [2, 32], strides = [1, 1]} : vector<2x96xf32> to vector<2x32xf32>
    %347 = vector.extract_strided_slice %345 {offsets = [0, 0], sizes = [2, 32], strides = [1, 1]} : vector<2x96xf32> to vector<2x32xf32>
    %348 = arith.addf %346, %347 : vector<2x32xf32>
    %349 = arith.negf %348 : vector<2x32xf32>
    %350 = math.exp %349 : vector<2x32xf32>
    %cst_91 = arith.constant 1.000000e+00 : f32
    %351 = vector.broadcast %cst_91 : f32 to vector<2x32xf32>
    %352 = arith.addf %351, %350 : vector<2x32xf32>
    %353 = arith.divf %351, %352 : vector<2x32xf32>
    %354 = vector.extract_strided_slice %344 {offsets = [0, 32], sizes = [2, 32], strides = [1, 1]} : vector<2x96xf32> to vector<2x32xf32>
    %355 = vector.extract_strided_slice %345 {offsets = [0, 32], sizes = [2, 32], strides = [1, 1]} : vector<2x96xf32> to vector<2x32xf32>
    %356 = arith.addf %354, %355 : vector<2x32xf32>
    %357 = arith.negf %356 : vector<2x32xf32>
    %358 = math.exp %357 : vector<2x32xf32>
    %cst_92 = arith.constant 1.000000e+00 : f32
    %359 = vector.broadcast %cst_92 : f32 to vector<2x32xf32>
    %360 = arith.addf %359, %358 : vector<2x32xf32>
    %361 = arith.divf %359, %360 : vector<2x32xf32>
    %362 = vector.extract_strided_slice %344 {offsets = [0, 64], sizes = [2, 32], strides = [1, 1]} : vector<2x96xf32> to vector<2x32xf32>
    %363 = vector.extract_strided_slice %345 {offsets = [0, 64], sizes = [2, 32], strides = [1, 1]} : vector<2x96xf32> to vector<2x32xf32>
    %364 = arith.addf %363, %14 : vector<2x32xf32>
    %365 = arith.mulf %353, %364 : vector<2x32xf32>
    %366 = arith.addf %362, %365 : vector<2x32xf32>
    %367 = math.tanh %366 : vector<2x32xf32>
    %cst_93 = arith.constant 1.000000e+00 : f32
    %368 = vector.broadcast %cst_93 : f32 to vector<2x32xf32>
    %369 = arith.subf %368, %361 : vector<2x32xf32>
    %370 = arith.subf %367, %301 : vector<2x32xf32>
    %371 = arith.mulf %369, %370 : vector<2x32xf32>
    %372 = arith.addf %301, %371 : vector<2x32xf32>
    %cst_94 = arith.constant dense<0.000000e+00> : vector<2x96xf32>
    %373 = tpu.matmul %301, %15, %cst_94 {dimension_numbers = #tpu.dot_dimension_numbers<[1], [0], [0], [1], [0, 0, 1, 1], [], []>} : vector<2x32xf32>, vector<32x96xf32>, vector<2x96xf32> -> vector<2x96xf32>
    %374 = vector.broadcast %17 : vector<1x96xf32> to vector<2x96xf32>
    %375 = arith.addf %373, %374 : vector<2x96xf32>
    %cst_95 = arith.constant dense<0.000000e+00> : vector<2x96xf32>
    %376 = tpu.matmul %332, %16, %cst_95 {dimension_numbers = #tpu.dot_dimension_numbers<[1], [0], [0], [1], [0, 0, 1, 1], [], []>} : vector<2x32xf32>, vector<32x96xf32>, vector<2x96xf32> -> vector<2x96xf32>
    %377 = vector.extract_strided_slice %375 {offsets = [0, 0], sizes = [2, 32], strides = [1, 1]} : vector<2x96xf32> to vector<2x32xf32>
    %378 = vector.extract_strided_slice %376 {offsets = [0, 0], sizes = [2, 32], strides = [1, 1]} : vector<2x96xf32> to vector<2x32xf32>
    %379 = arith.addf %377, %378 : vector<2x32xf32>
    %380 = arith.negf %379 : vector<2x32xf32>
    %381 = math.exp %380 : vector<2x32xf32>
    %cst_96 = arith.constant 1.000000e+00 : f32
    %382 = vector.broadcast %cst_96 : f32 to vector<2x32xf32>
    %383 = arith.addf %382, %381 : vector<2x32xf32>
    %384 = arith.divf %382, %383 : vector<2x32xf32>
    %385 = vector.extract_strided_slice %375 {offsets = [0, 32], sizes = [2, 32], strides = [1, 1]} : vector<2x96xf32> to vector<2x32xf32>
    %386 = vector.extract_strided_slice %376 {offsets = [0, 32], sizes = [2, 32], strides = [1, 1]} : vector<2x96xf32> to vector<2x32xf32>
    %387 = arith.addf %385, %386 : vector<2x32xf32>
    %388 = arith.negf %387 : vector<2x32xf32>
    %389 = math.exp %388 : vector<2x32xf32>
    %cst_97 = arith.constant 1.000000e+00 : f32
    %390 = vector.broadcast %cst_97 : f32 to vector<2x32xf32>
    %391 = arith.addf %390, %389 : vector<2x32xf32>
    %392 = arith.divf %390, %391 : vector<2x32xf32>
    %393 = vector.extract_strided_slice %375 {offsets = [0, 64], sizes = [2, 32], strides = [1, 1]} : vector<2x96xf32> to vector<2x32xf32>
    %394 = vector.extract_strided_slice %376 {offsets = [0, 64], sizes = [2, 32], strides = [1, 1]} : vector<2x96xf32> to vector<2x32xf32>
    %395 = arith.addf %394, %20 : vector<2x32xf32>
    %396 = arith.mulf %384, %395 : vector<2x32xf32>
    %397 = arith.addf %393, %396 : vector<2x32xf32>
    %398 = math.tanh %397 : vector<2x32xf32>
    %cst_98 = arith.constant 1.000000e+00 : f32
    %399 = vector.broadcast %cst_98 : f32 to vector<2x32xf32>
    %400 = arith.subf %399, %392 : vector<2x32xf32>
    %401 = arith.subf %398, %332 : vector<2x32xf32>
    %402 = arith.mulf %400, %401 : vector<2x32xf32>
    %403 = arith.addf %332, %402 : vector<2x32xf32>
    %cst_99 = arith.constant dense<0.000000e+00> : vector<2x128xf32>
    %404 = tpu.matmul %403, %24, %cst_99 {dimension_numbers = #tpu.dot_dimension_numbers<[1], [0], [0], [1], [0, 0, 1, 1], [], []>} : vector<2x32xf32>, vector<32x128xf32>, vector<2x128xf32> -> vector<2x128xf32>
    %405 = vector.broadcast %25 : vector<1x128xf32> to vector<2x128xf32>
    %406 = arith.addf %404, %405 : vector<2x128xf32>
    %c4_i32 = arith.constant 4 : i32
    %407 = vector.broadcast %c4_i32 : i32 to vector<2x1xi32>
    %408 = arith.cmpi sgt, %26, %407 : vector<2x1xi32>
    %cst_100 = arith.constant 1.000000e+00 : f32
    %cst_101 = arith.constant 0.000000e+00 : f32
    %409 = vector.broadcast %cst_100 : f32 to vector<2x1xf32>
    %410 = vector.broadcast %cst_101 : f32 to vector<2x1xf32>
    %411 = arith.select %408, %409, %410 : vector<2x1xi1>, vector<2x1xf32>
    %412 = vector.broadcast %411 : vector<2x1xf32> to vector<2x128xf32>
    %413 = arith.mulf %406, %412 : vector<2x128xf32>
    %c8 = arith.constant 8 : index
    %c0_102 = arith.constant 0 : index
    %414 = vector.load %arg15[%c8, %c0_102] : memref<16x128xf32, #tpu.memory_space<vmem>>, vector<2x128xf32>
    tpu.vector_store %arg15[%c8, %c0_102], %413 {strides = array<i32>} : memref<16x128xf32, #tpu.memory_space<vmem>>, vector<2x128xf32>,
    %415 = vector.extract_strided_slice %23 {offsets = [12, 0], sizes = [2, 96], strides = [1, 1]} : vector<16x96xf32> to vector<2x96xf32>
    %cst_103 = arith.constant dense<0.000000e+00> : vector<2x96xf32>
    %416 = tpu.matmul %372, %10, %cst_103 {dimension_numbers = #tpu.dot_dimension_numbers<[1], [0], [0], [1], [0, 0, 1, 1], [], []>} : vector<2x32xf32>, vector<32x96xf32>, vector<2x96xf32> -> vector<2x96xf32>
    %417 = vector.extract_strided_slice %415 {offsets = [0, 0], sizes = [2, 32], strides = [1, 1]} : vector<2x96xf32> to vector<2x32xf32>
    %418 = vector.extract_strided_slice %416 {offsets = [0, 0], sizes = [2, 32], strides = [1, 1]} : vector<2x96xf32> to vector<2x32xf32>
    %419 = arith.addf %417, %418 : vector<2x32xf32>
    %420 = arith.negf %419 : vector<2x32xf32>
    %421 = math.exp %420 : vector<2x32xf32>
    %cst_104 = arith.constant 1.000000e+00 : f32
    %422 = vector.broadcast %cst_104 : f32 to vector<2x32xf32>
    %423 = arith.addf %422, %421 : vector<2x32xf32>
    %424 = arith.divf %422, %423 : vector<2x32xf32>
    %425 = vector.extract_strided_slice %415 {offsets = [0, 32], sizes = [2, 32], strides = [1, 1]} : vector<2x96xf32> to vector<2x32xf32>
    %426 = vector.extract_strided_slice %416 {offsets = [0, 32], sizes = [2, 32], strides = [1, 1]} : vector<2x96xf32> to vector<2x32xf32>
    %427 = arith.addf %425, %426 : vector<2x32xf32>
    %428 = arith.negf %427 : vector<2x32xf32>
    %429 = math.exp %428 : vector<2x32xf32>
    %cst_105 = arith.constant 1.000000e+00 : f32
    %430 = vector.broadcast %cst_105 : f32 to vector<2x32xf32>
    %431 = arith.addf %430, %429 : vector<2x32xf32>
    %432 = arith.divf %430, %431 : vector<2x32xf32>
    %433 = vector.extract_strided_slice %415 {offsets = [0, 64], sizes = [2, 32], strides = [1, 1]} : vector<2x96xf32> to vector<2x32xf32>
    %434 = vector.extract_strided_slice %416 {offsets = [0, 64], sizes = [2, 32], strides = [1, 1]} : vector<2x96xf32> to vector<2x32xf32>
    %435 = arith.addf %434, %14 : vector<2x32xf32>
    %436 = arith.mulf %424, %435 : vector<2x32xf32>
    %437 = arith.addf %433, %436 : vector<2x32xf32>
    %438 = math.tanh %437 : vector<2x32xf32>
    %cst_106 = arith.constant 1.000000e+00 : f32
    %439 = vector.broadcast %cst_106 : f32 to vector<2x32xf32>
    %440 = arith.subf %439, %432 : vector<2x32xf32>
    %441 = arith.subf %438, %372 : vector<2x32xf32>
    %442 = arith.mulf %440, %441 : vector<2x32xf32>
    %443 = arith.addf %372, %442 : vector<2x32xf32>
    %cst_107 = arith.constant dense<0.000000e+00> : vector<2x96xf32>
    %444 = tpu.matmul %372, %15, %cst_107 {dimension_numbers = #tpu.dot_dimension_numbers<[1], [0], [0], [1], [0, 0, 1, 1], [], []>} : vector<2x32xf32>, vector<32x96xf32>, vector<2x96xf32> -> vector<2x96xf32>
    %445 = vector.broadcast %17 : vector<1x96xf32> to vector<2x96xf32>
    %446 = arith.addf %444, %445 : vector<2x96xf32>
    %cst_108 = arith.constant dense<0.000000e+00> : vector<2x96xf32>
    %447 = tpu.matmul %403, %16, %cst_108 {dimension_numbers = #tpu.dot_dimension_numbers<[1], [0], [0], [1], [0, 0, 1, 1], [], []>} : vector<2x32xf32>, vector<32x96xf32>, vector<2x96xf32> -> vector<2x96xf32>
    %448 = vector.extract_strided_slice %446 {offsets = [0, 0], sizes = [2, 32], strides = [1, 1]} : vector<2x96xf32> to vector<2x32xf32>
    %449 = vector.extract_strided_slice %447 {offsets = [0, 0], sizes = [2, 32], strides = [1, 1]} : vector<2x96xf32> to vector<2x32xf32>
    %450 = arith.addf %448, %449 : vector<2x32xf32>
    %451 = arith.negf %450 : vector<2x32xf32>
    %452 = math.exp %451 : vector<2x32xf32>
    %cst_109 = arith.constant 1.000000e+00 : f32
    %453 = vector.broadcast %cst_109 : f32 to vector<2x32xf32>
    %454 = arith.addf %453, %452 : vector<2x32xf32>
    %455 = arith.divf %453, %454 : vector<2x32xf32>
    %456 = vector.extract_strided_slice %446 {offsets = [0, 32], sizes = [2, 32], strides = [1, 1]} : vector<2x96xf32> to vector<2x32xf32>
    %457 = vector.extract_strided_slice %447 {offsets = [0, 32], sizes = [2, 32], strides = [1, 1]} : vector<2x96xf32> to vector<2x32xf32>
    %458 = arith.addf %456, %457 : vector<2x32xf32>
    %459 = arith.negf %458 : vector<2x32xf32>
    %460 = math.exp %459 : vector<2x32xf32>
    %cst_110 = arith.constant 1.000000e+00 : f32
    %461 = vector.broadcast %cst_110 : f32 to vector<2x32xf32>
    %462 = arith.addf %461, %460 : vector<2x32xf32>
    %463 = arith.divf %461, %462 : vector<2x32xf32>
    %464 = vector.extract_strided_slice %446 {offsets = [0, 64], sizes = [2, 32], strides = [1, 1]} : vector<2x96xf32> to vector<2x32xf32>
    %465 = vector.extract_strided_slice %447 {offsets = [0, 64], sizes = [2, 32], strides = [1, 1]} : vector<2x96xf32> to vector<2x32xf32>
    %466 = arith.addf %465, %20 : vector<2x32xf32>
    %467 = arith.mulf %455, %466 : vector<2x32xf32>
    %468 = arith.addf %464, %467 : vector<2x32xf32>
    %469 = math.tanh %468 : vector<2x32xf32>
    %cst_111 = arith.constant 1.000000e+00 : f32
    %470 = vector.broadcast %cst_111 : f32 to vector<2x32xf32>
    %471 = arith.subf %470, %463 : vector<2x32xf32>
    %472 = arith.subf %469, %403 : vector<2x32xf32>
    %473 = arith.mulf %471, %472 : vector<2x32xf32>
    %474 = arith.addf %403, %473 : vector<2x32xf32>
    %cst_112 = arith.constant dense<0.000000e+00> : vector<2x128xf32>
    %475 = tpu.matmul %474, %24, %cst_112 {dimension_numbers = #tpu.dot_dimension_numbers<[1], [0], [0], [1], [0, 0, 1, 1], [], []>} : vector<2x32xf32>, vector<32x128xf32>, vector<2x128xf32> -> vector<2x128xf32>
    %476 = vector.broadcast %25 : vector<1x128xf32> to vector<2x128xf32>
    %477 = arith.addf %475, %476 : vector<2x128xf32>
    %c5_i32 = arith.constant 5 : i32
    %478 = vector.broadcast %c5_i32 : i32 to vector<2x1xi32>
    %479 = arith.cmpi sgt, %26, %478 : vector<2x1xi32>
    %cst_113 = arith.constant 1.000000e+00 : f32
    %cst_114 = arith.constant 0.000000e+00 : f32
    %480 = vector.broadcast %cst_113 : f32 to vector<2x1xf32>
    %481 = vector.broadcast %cst_114 : f32 to vector<2x1xf32>
    %482 = arith.select %479, %480, %481 : vector<2x1xi1>, vector<2x1xf32>
    %483 = vector.broadcast %482 : vector<2x1xf32> to vector<2x128xf32>
    %484 = arith.mulf %477, %483 : vector<2x128xf32>
    %c10 = arith.constant 10 : index
    %c0_115 = arith.constant 0 : index
    %485 = vector.load %arg15[%c10, %c0_115] : memref<16x128xf32, #tpu.memory_space<vmem>>, vector<2x128xf32>
    tpu.vector_store %arg15[%c10, %c0_115], %484 {strides = array<i32>} : memref<16x128xf32, #tpu.memory_space<vmem>>, vector<2x128xf32>,
    %cst_116 = arith.constant dense<0.000000e+00> : vector<2x96xf32>
    %486 = tpu.matmul %443, %15, %cst_116 {dimension_numbers = #tpu.dot_dimension_numbers<[1], [0], [0], [1], [0, 0, 1, 1], [], []>} : vector<2x32xf32>, vector<32x96xf32>, vector<2x96xf32> -> vector<2x96xf32>
    %487 = vector.broadcast %17 : vector<1x96xf32> to vector<2x96xf32>
    %488 = arith.addf %486, %487 : vector<2x96xf32>
    %cst_117 = arith.constant dense<0.000000e+00> : vector<2x96xf32>
    %489 = tpu.matmul %474, %16, %cst_117 {dimension_numbers = #tpu.dot_dimension_numbers<[1], [0], [0], [1], [0, 0, 1, 1], [], []>} : vector<2x32xf32>, vector<32x96xf32>, vector<2x96xf32> -> vector<2x96xf32>
    %490 = vector.extract_strided_slice %488 {offsets = [0, 0], sizes = [2, 32], strides = [1, 1]} : vector<2x96xf32> to vector<2x32xf32>
    %491 = vector.extract_strided_slice %489 {offsets = [0, 0], sizes = [2, 32], strides = [1, 1]} : vector<2x96xf32> to vector<2x32xf32>
    %492 = arith.addf %490, %491 : vector<2x32xf32>
    %493 = arith.negf %492 : vector<2x32xf32>
    %494 = math.exp %493 : vector<2x32xf32>
    %cst_118 = arith.constant 1.000000e+00 : f32
    %495 = vector.broadcast %cst_118 : f32 to vector<2x32xf32>
    %496 = arith.addf %495, %494 : vector<2x32xf32>
    %497 = arith.divf %495, %496 : vector<2x32xf32>
    %498 = vector.extract_strided_slice %488 {offsets = [0, 32], sizes = [2, 32], strides = [1, 1]} : vector<2x96xf32> to vector<2x32xf32>
    %499 = vector.extract_strided_slice %489 {offsets = [0, 32], sizes = [2, 32], strides = [1, 1]} : vector<2x96xf32> to vector<2x32xf32>
    %500 = arith.addf %498, %499 : vector<2x32xf32>
    %501 = arith.negf %500 : vector<2x32xf32>
    %502 = math.exp %501 : vector<2x32xf32>
    %cst_119 = arith.constant 1.000000e+00 : f32
    %503 = vector.broadcast %cst_119 : f32 to vector<2x32xf32>
    %504 = arith.addf %503, %502 : vector<2x32xf32>
    %505 = arith.divf %503, %504 : vector<2x32xf32>
    %506 = vector.extract_strided_slice %488 {offsets = [0, 64], sizes = [2, 32], strides = [1, 1]} : vector<2x96xf32> to vector<2x32xf32>
    %507 = vector.extract_strided_slice %489 {offsets = [0, 64], sizes = [2, 32], strides = [1, 1]} : vector<2x96xf32> to vector<2x32xf32>
    %508 = arith.addf %507, %20 : vector<2x32xf32>
    %509 = arith.mulf %497, %508 : vector<2x32xf32>
    %510 = arith.addf %506, %509 : vector<2x32xf32>
    %511 = math.tanh %510 : vector<2x32xf32>
    %cst_120 = arith.constant 1.000000e+00 : f32
    %512 = vector.broadcast %cst_120 : f32 to vector<2x32xf32>
    %513 = arith.subf %512, %505 : vector<2x32xf32>
    %514 = arith.subf %511, %474 : vector<2x32xf32>
    %515 = arith.mulf %513, %514 : vector<2x32xf32>
    %516 = arith.addf %474, %515 : vector<2x32xf32>
    %cst_121 = arith.constant dense<0.000000e+00> : vector<2x128xf32>
    %517 = tpu.matmul %516, %24, %cst_121 {dimension_numbers = #tpu.dot_dimension_numbers<[1], [0], [0], [1], [0, 0, 1, 1], [], []>} : vector<2x32xf32>, vector<32x128xf32>, vector<2x128xf32> -> vector<2x128xf32>
    %518 = vector.broadcast %25 : vector<1x128xf32> to vector<2x128xf32>
    %519 = arith.addf %517, %518 : vector<2x128xf32>
    %c6_i32 = arith.constant 6 : i32
    %520 = vector.broadcast %c6_i32 : i32 to vector<2x1xi32>
    %521 = arith.cmpi sgt, %26, %520 : vector<2x1xi32>
    %cst_122 = arith.constant 1.000000e+00 : f32
    %cst_123 = arith.constant 0.000000e+00 : f32
    %522 = vector.broadcast %cst_122 : f32 to vector<2x1xf32>
    %523 = vector.broadcast %cst_123 : f32 to vector<2x1xf32>
    %524 = arith.select %521, %522, %523 : vector<2x1xi1>, vector<2x1xf32>
    %525 = vector.broadcast %524 : vector<2x1xf32> to vector<2x128xf32>
    %526 = arith.mulf %519, %525 : vector<2x128xf32>
    %c12 = arith.constant 12 : index
    %c0_124 = arith.constant 0 : index
    %527 = vector.load %arg15[%c12, %c0_124] : memref<16x128xf32, #tpu.memory_space<vmem>>, vector<2x128xf32>
    tpu.vector_store %arg15[%c12, %c0_124], %526 {strides = array<i32>} : memref<16x128xf32, #tpu.memory_space<vmem>>, vector<2x128xf32>,
    %cst_125 = arith.constant 0.000000e+00 : f32
    %528 = vector.broadcast %cst_125 : f32 to vector<2x128xf32>
    %c14 = arith.constant 14 : index
    %c0_126 = arith.constant 0 : index
    %529 = vector.load %arg15[%c14, %c0_126] : memref<16x128xf32, #tpu.memory_space<vmem>>, vector<2x128xf32>
    tpu.vector_store %arg15[%c14, %c0_126], %528 {strides = array<i32>} : memref<16x128xf32, #tpu.memory_space<vmem>>, vector<2x128xf32>,
    return
  }
  func.func @transform_0(%arg0: i32) -> (i32, i32) {
    %c0_i32 = arith.constant 0 : i32
    %c0_i32_0 = arith.constant 0 : i32
    %c0_i32_1 = arith.constant 0 : i32
    return %c0_i32, %c0_i32_0 : i32, i32
  }
  func.func @transform_1(%arg0: i32) -> (i32, i32) {
    %c0_i32 = arith.constant 0 : i32
    %c0_i32_0 = arith.constant 0 : i32
    %c0_i32_1 = arith.constant 0 : i32
    return %c0_i32, %c0_i32_0 : i32, i32
  }
  func.func @transform_2(%arg0: i32) -> (i32, i32) {
    %c0_i32 = arith.constant 0 : i32
    %c0_i32_0 = arith.constant 0 : i32
    %c0_i32_1 = arith.constant 0 : i32
    return %c0_i32, %c0_i32_0 : i32, i32
  }
  func.func @transform_3(%arg0: i32) -> (i32, i32, i32) {
    %c0_i32 = arith.constant 0 : i32
    %c0_i32_0 = arith.constant 0 : i32
    %c0_i32_1 = arith.constant 0 : i32
    %c0_i32_2 = arith.constant 0 : i32
    return %c0_i32, %c0_i32_0, %c0_i32_1 : i32, i32, i32
  }
  func.func @transform_4(%arg0: i32) -> (i32, i32) {
    %c0_i32 = arith.constant 0 : i32
    %c0_i32_0 = arith.constant 0 : i32
    %c0_i32_1 = arith.constant 0 : i32
    return %c0_i32, %c0_i32_0 : i32, i32
  }
  func.func @transform_5(%arg0: i32) -> (i32, i32) {
    %c0_i32 = arith.constant 0 : i32
    %c0_i32_0 = arith.constant 0 : i32
    %c0_i32_1 = arith.constant 0 : i32
    return %c0_i32, %c0_i32_0 : i32, i32
  }
  func.func @transform_6(%arg0: i32) -> (i32, i32) {
    %c0_i32 = arith.constant 0 : i32
    %c0_i32_0 = arith.constant 0 : i32
    %c0_i32_1 = arith.constant 0 : i32
    return %c0_i32, %c0_i32_0 : i32, i32
  }
  func.func @transform_7(%arg0: i32) -> (i32, i32) {
    %c0_i32 = arith.constant 0 : i32
    %c0_i32_0 = arith.constant 0 : i32
    %c0_i32_1 = arith.constant 0 : i32
    return %c0_i32, %c0_i32_0 : i32, i32
  }
  func.func @transform_8(%arg0: i32) -> (i32, i32) {
    %c0_i32 = arith.constant 0 : i32
    %c0_i32_0 = arith.constant 0 : i32
    %c0_i32_1 = arith.constant 0 : i32
    return %c0_i32, %c0_i32_0 : i32, i32
  }
  func.func @transform_9(%arg0: i32) -> (i32, i32) {
    %c0_i32 = arith.constant 0 : i32
    %c0_i32_0 = arith.constant 0 : i32
    %c0_i32_1 = arith.constant 0 : i32
    return %c0_i32, %c0_i32_0 : i32, i32
  }
  func.func @transform_10(%arg0: i32) -> (i32, i32) {
    %c0_i32 = arith.constant 0 : i32
    %c0_i32_0 = arith.constant 0 : i32
    %c0_i32_1 = arith.constant 0 : i32
    return %c0_i32, %c0_i32_0 : i32, i32
  }
  func.func @transform_11(%arg0: i32) -> (i32, i32) {
    %c0_i32 = arith.constant 0 : i32
    %c0_i32_0 = arith.constant 0 : i32
    %c0_i32_1 = arith.constant 0 : i32
    return %c0_i32, %c0_i32_0 : i32, i32
  }
  func.func @transform_12(%arg0: i32) -> (i32, i32) {
    %c0_i32 = arith.constant 0 : i32
    %c0_i32_0 = arith.constant 0 : i32
    %c0_i32_1 = arith.constant 0 : i32
    return %c0_i32, %c0_i32_0 : i32, i32
  }
  func.func @transform_13(%arg0: i32) -> (i32, i32) {
    %c0_i32 = arith.constant 0 : i32
    %c0_i32_0 = arith.constant 0 : i32
    %c0_i32_1 = arith.constant 0 : i32
    return %c0_i32, %c0_i32_0 : i32, i32
  }
  func.func @transform_14(%arg0: i32) -> (i32, i32) {
    %c0_i32 = arith.constant 0 : i32
    %c0_i32_0 = arith.constant 0 : i32
    %c0_i32_1 = arith.constant 0 : i32
    return %c0_i32, %c0_i32_0 : i32, i32
  }
}

</mosaic_0001>

<llo_original>
// kernel: tpu_custom_call.1
$region0: #{tpu_custom_call.1}
  #allocation0 [shape = 'u32[]', space=smem, size = 0x4, offset = 0x4, fixed_abs, tag = 'smem constant byte address 0x4 - core index']
  #allocation1 [shape = 'u32[144,128]{1,0:T(1,128)}', space=vmem, size = 0x12000, scoped, tag = 'internal scratch']
  %s0 = inlined_call_operand.vmem [shape: s32[16,1], index: 0, kind: input, shape index: {}]
  %s1 = inlined_call_operand.vmem [shape: s32[2,1], index: 1, kind: input, shape index: {}]
  %s2 = inlined_call_operand.vmem [shape: f32[128,32], index: 2, kind: input, shape index: {}]
  %s3 = inlined_call_operand.vmem [shape: f32[2,2,32], index: 3, kind: input, shape index: {}]
  %s4 = inlined_call_operand.vmem [shape: f32[32,96], index: 4, kind: input, shape index: {}]
  %s5 = inlined_call_operand.vmem [shape: f32[32,96], index: 5, kind: input, shape index: {}]
  %s6 = inlined_call_operand.vmem [shape: f32[1,96], index: 6, kind: input, shape index: {}]
  %s7 = inlined_call_operand.vmem [shape: f32[1,32], index: 7, kind: input, shape index: {}]
  %s8 = inlined_call_operand.vmem [shape: f32[32,96], index: 8, kind: input, shape index: {}]
  %s9 = inlined_call_operand.vmem [shape: f32[32,96], index: 9, kind: input, shape index: {}]
  %s10 = inlined_call_operand.vmem [shape: f32[1,96], index: 10, kind: input, shape index: {}]
  %s11 = inlined_call_operand.vmem [shape: f32[1,32], index: 11, kind: input, shape index: {}]
  %s12 = inlined_call_operand.vmem [shape: f32[32,128], index: 12, kind: input, shape index: {}]
  %s13 = inlined_call_operand.vmem [shape: f32[1,128], index: 13, kind: input, shape index: {}]
  %s14 = inlined_call_operand.hbm [shape: f32[16,128], index: 14, kind: output, shape index: {}]
  %s15 = sld [smem:[#allocation0]]
  $region66: #{tpu_custom_call.1} parent=0
    _
  %s17 = ssub.s32 1, %s15
  %s18 = scalar_select 0, %s17, %s15
  $region1: #{tpu_custom_call.1} parent=0
    #allocation2 [shape = 'u8[8192]{0}', space=vmem, size = 0x2000, scoped, tag = 'output window, operand 0, single buffered']
    #allocation3 [shape = 's32[1]{0}', space=sflag, size = 0x4, scoped, tag = 'scoped memory for tpu_custom_call.1']
    %19 = vsyncpa [#allocation3], 0
    // Predicated region
    $region2: #{tpu_custom_call.1} parent=1 // pred_check
      _
    $region3: #{tpu_custom_call.1} parent=1 // pred_check_branch
      %21 = sbr.rel (0) target = $region5
    $region4: #{tpu_custom_call.1} parent=1 // pred_region
      _
    $region5: #{tpu_custom_call.1} parent=1 // pred_fallthru
      _
    // Predicated region
    $region6: #{tpu_custom_call.1} parent=1 // pred_check
      _
    $region7: #{tpu_custom_call.1} parent=1 // pred_check_branch
      %23 = sbr.rel (0) target = $region9
    $region8: #{tpu_custom_call.1} parent=1 // pred_region
      _
    $region9: #{tpu_custom_call.1} parent=1 // pred_fallthru
      _
    // Predicated region
    $region10: #{tpu_custom_call.1} parent=1 // pred_check
      _
    $region11: #{tpu_custom_call.1} parent=1 // pred_check_branch
      %25 = sbr.rel (0) target = $region13
    $region12: #{tpu_custom_call.1} parent=1 // pred_region
      _
    $region13: #{tpu_custom_call.1} parent=1 // pred_fallthru
      _
    // Predicated region
    $region14: #{tpu_custom_call.1} parent=1 // pred_check
      _
    $region15: #{tpu_custom_call.1} parent=1 // pred_check_branch
      %27 = sbr.rel (0) target = $region17
    $region16: #{tpu_custom_call.1} parent=1 // pred_region
      _
    $region17: #{tpu_custom_call.1} parent=1 // pred_fallthru
      _
    // Predicated region
    $region18: #{tpu_custom_call.1} parent=1 // pred_check
      _
    $region19: #{tpu_custom_call.1} parent=1 // pred_check_branch
      %29 = sbr.rel (0) target = $region21
    $region20: #{tpu_custom_call.1} parent=1 // pred_region
      _
    $region21: #{tpu_custom_call.1} parent=1 // pred_fallthru
      _
    // Predicated region
    $region22: #{tpu_custom_call.1} parent=1 // pred_check
      _
    $region23: #{tpu_custom_call.1} parent=1 // pred_check_branch
      %31 = sbr.rel (0) target = $region25
    $region24: #{tpu_custom_call.1} parent=1 // pred_region
      _
    $region25: #{tpu_custom_call.1} parent=1 // pred_fallthru
      _
    // Predicated region
    $region26: #{tpu_custom_call.1} parent=1 // pred_check
      _
    $region27: #{tpu_custom_call.1} parent=1 // pred_check_branch
      %33 = sbr.rel (0) target = $region29
    $region28: #{tpu_custom_call.1} parent=1 // pred_region
      _
    $region29: #{tpu_custom_call.1} parent=1 // pred_fallthru
      _
    // Predicated region
    $region30: #{tpu_custom_call.1} parent=1 // pred_check
      _
    $region31: #{tpu_custom_call.1} parent=1 // pred_check_branch
      %35 = sbr.rel (0) target = $region33
    $region32: #{tpu_custom_call.1} parent=1 // pred_region
      _
    $region33: #{tpu_custom_call.1} parent=1 // pred_fallthru
      _
    // Predicated region
    $region34: #{tpu_custom_call.1} parent=1 // pred_check
      _
    $region35: #{tpu_custom_call.1} parent=1 // pred_check_branch
      %37 = sbr.rel (0) target = $region37
    $region36: #{tpu_custom_call.1} parent=1 // pred_region
      _
    $region37: #{tpu_custom_call.1} parent=1 // pred_fallthru
      _
    // Predicated region
    $region38: #{tpu_custom_call.1} parent=1 // pred_check
      _
    $region39: #{tpu_custom_call.1} parent=1 // pred_check_branch
      %39 = sbr.rel (0) target = $region41
    $region40: #{tpu_custom_call.1} parent=1 // pred_region
      _
    $region41: #{tpu_custom_call.1} parent=1 // pred_fallthru
      _
    // Predicated region
    $region42: #{tpu_custom_call.1} parent=1 // pred_check
      _
    $region43: #{tpu_custom_call.1} parent=1 // pred_check_branch
      %41 = sbr.rel (0) target = $region45
    $region44: #{tpu_custom_call.1} parent=1 // pred_region
      _
    $region45: #{tpu_custom_call.1} parent=1 // pred_fallthru
      _
    // Predicated region
    $region46: #{tpu_custom_call.1} parent=1 // pred_check
      _
    $region47: #{tpu_custom_call.1} parent=1 // pred_check_branch
      %43 = sbr.rel (0) target = $region49
    $region48: #{tpu_custom_call.1} parent=1 // pred_region
      _
    $region49: #{tpu_custom_call.1} parent=1 // pred_fallthru
      _
    // Predicated region
    $region50: #{tpu_custom_call.1} parent=1 // pred_check
      _
    $region51: #{tpu_custom_call.1} parent=1 // pred_check_branch
      %45 = sbr.rel (0) target = $region53
    $region52: #{tpu_custom_call.1} parent=1 // pred_region
      _
    $region53: #{tpu_custom_call.1} parent=1 // pred_fallthru
      _
    // Predicated region
    $region54: #{tpu_custom_call.1} parent=1 // pred_check
      _
    $region55: #{tpu_custom_call.1} parent=1 // pred_check_branch
      %47 = sbr.rel (0) target = $region57
    $region56: #{tpu_custom_call.1} parent=1 // pred_region
      _
    $region57: #{tpu_custom_call.1} parent=1 // pred_fallthru
      _
    %v48 = vld [vmem:[%s0] sm:$0xff]
    %v49 = vld [vmem:[%s0 + $0x8] sm:$0xff]
    %v50 = vlaneseq
    %v51 = vand.u32 %v50, 127
    %52 = vset.pattern.permute.xlu0 0
    %53 = vperm.xlu0 %52, %v48
    %v54 = vpop.permute.xlu0 %53
    %55 = vset.pattern.permute.xlu0 0
    %56 = vperm.xlu0 %55, %v49
    %v57 = vpop.permute.xlu0 %56
    %vm58 = vcmp.eq.s32.totalorder %v51, %v54
    %vm59 = vcmp.eq.s32.totalorder %v51, %v57
    %v60 = vsel %vm58, 1.0, 0.0
    %v61 = vsel %vm59, 1.0, 0.0
    %v62 = vld [vmem:[%s2] sm:$0xff]
    %v63 = vld [vmem:[%s2 + $0x8] sm:$0xff]
    %v64 = vld [vmem:[%s2 + $0x10] sm:$0xff]
    %v65 = vld [vmem:[%s2 + $0x18] sm:$0xff]
    %v66 = vld [vmem:[%s2 + $0x20] sm:$0xff]
    %v67 = vld [vmem:[%s2 + $0x28] sm:$0xff]
    %v68 = vld [vmem:[%s2 + $0x30] sm:$0xff]
    %v69 = vld [vmem:[%s2 + $0x38] sm:$0xff]
    %v70 = vld [vmem:[%s2 + $0x40] sm:$0xff]
    %v71 = vld [vmem:[%s2 + $0x48] sm:$0xff]
    %v72 = vld [vmem:[%s2 + $0x50] sm:$0xff]
    %v73 = vld [vmem:[%s2 + $0x58] sm:$0xff]
    %v74 = vld [vmem:[%s2 + $0x60] sm:$0xff]
    %v75 = vld [vmem:[%s2 + $0x68] sm:$0xff]
    %v76 = vld [vmem:[%s2 + $0x70] sm:$0xff]
    %v77 = vld [vmem:[%s2 + $0x78] sm:$0xff]
    %78 = vmatprep.subr.mxu0 0.0
    %79 = vmatpush1.msra.mxu0 %v62
    %80 = vmatprep.subr.mxu0 0.0
    %81 = vmatpush1.msra.mxu0 %v63
    %82 = vmatprep.subr.mxu0 0.0
    %83 = vmatpush1.msra.mxu0 %v64
    %84 = vmatprep.subr.mxu0 0.0
    %85 = vmatpush1.msra.mxu0 %v65
    %86 = vmatprep.subr.mxu0 0.0
    %87 = vmatpush1.msra.mxu0 %v66
    %88 = vmatprep.subr.mxu0 0.0
    %89 = vmatpush1.msra.mxu0 %v67
    %90 = vmatprep.subr.mxu0 0.0
    %91 = vmatpush1.msra.mxu0 %v68
    %92 = vmatprep.subr.mxu0 0.0
    %93 = vmatpush1.msra.mxu0 %v69
    %94 = vmatprep.subr.mxu0 0.0
    %95 = vmatpush1.msra.mxu0 %v70
    %96 = vmatprep.subr.mxu0 0.0
    %97 = vmatpush1.msra.mxu0 %v71
    %98 = vmatprep.subr.mxu0 0.0
    %99 = vmatpush1.msra.mxu0 %v72
    %100 = vmatprep.subr.mxu0 0.0
    %101 = vmatpush1.msra.mxu0 %v73
    %102 = vmatprep.subr.mxu0 0.0
    %103 = vmatpush1.msra.mxu0 %v74
    %104 = vmatprep.subr.mxu0 0.0
    %105 = vmatpush1.msra.mxu0 %v75
    %106 = vmatprep.subr.mxu0 0.0
    %107 = vmatpush1.msra.mxu0 %v76
    %108 = vmatprep.subr.mxu0 0.0
    %109 = vmatpush1.msra.mxu0 %v77
    %110 = vmatprep.subr.mxu0 0.0
    %111 = vmatpush1.msra.mxu0 0.0
    %112 = vmatprep.subr.mxu0 0.0
    %113 = vmatpush1.msra.mxu0 0.0
    %114 = vmatprep.subr.mxu0 0.0
    %115 = vmatpush1.msra.mxu0 0.0
    %116 = vmatprep.subr.mxu0 0.0
    %117 = vmatpush1.msra.mxu0 0.0
    %118 = vmatprep.subr.mxu0 0.0
    %119 = vmatpush1.msra.mxu0 0.0
    %120 = vmatprep.subr.mxu0 0.0
    %121 = vmatpush1.msra.mxu0 0.0
    %122 = vmatprep.subr.mxu0 0.0
    %123 = vmatpush1.msra.mxu0 0.0
    %124 = vmatprep.subr.mxu0 0.0
    %125 = vmatpush1.msra.mxu0 0.0
    %126 = vmatprep.subr.mxu0 0.0
    %127 = vmatpush1.msra.mxu0 0.0
    %128 = vmatprep.subr.mxu0 0.0
    %129 = vmatpush1.msra.mxu0 0.0
    %130 = vmatprep.subr.mxu0 0.0
    %131 = vmatpush1.msra.mxu0 0.0
    %132 = vmatprep.subr.mxu0 0.0
    %133 = vmatpush1.msra.mxu0 0.0
    %134 = vmatprep.subr.mxu0 0.0
    %135 = vmatpush1.msra.mxu0 0.0
    %136 = vmatprep.subr.mxu0 0.0
    %137 = vmatpush1.msra.mxu0 0.0
    %138 = vmatprep.subr.mxu0 0.0
    %139 = vmatpush1.msra.mxu0 0.0
    %140 = vmatprep.subr.mxu0 0.0
    %141 = vmatpush1.msra.mxu0 0.0
    %142 = vmatprep.mubr.f32.mxu0 0.0
    %143 = vmatmul.mubr.f32.gmra.mrb[0].mxu0 %v60
    %v144 = vpop.f32.mrb[0].mxu0
    %v145 = vadd.f32 0.0, %v144
    %v146 = vpop.f32.mrb[0].mxu0
    %147 = vmatprep.mubr.f32.mxu0 0.0
    %148 = vmatmul.mubr.f32.gmra.mrb[0].mxu0 %v61
    %v149 = vpop.f32.mrb[0].mxu0
    %v150 = vadd.f32 0.0, %v149
    %v151 = vpop.f32.mrb[0].mxu0
    %152 = vdwg.mxu0
    %v153 = vld [vmem:[%s4] sm:$0xff]
    %v154 = vld [vmem:[%s4 + $0x8] sm:$0xff]
    %v155 = vld [vmem:[%s4 + $0x10] sm:$0xff]
    %v156 = vld [vmem:[%s4 + $0x18] sm:$0xff]
    %v157 = vld [vmem:[%s5] sm:$0xff]
    %v158 = vld [vmem:[%s5 + $0x8] sm:$0xff]
    %v159 = vld [vmem:[%s5 + $0x10] sm:$0xff]
    %v160 = vld [vmem:[%s5 + $0x18] sm:$0xff]
    %v161 = vld [vmem:[%s6] sm:$0x1]
    %v162 = vld [vmem:[%s7] sm:$0x1]
    %v164 = vlaneseq
    %v165 = vshrl.u32 %v164, 7
    %v166 = vsub.s32 0, %v165
    %v167 = vrot.slane %v162, %v166
    %v168 = vld [vmem:[%s8] sm:$0xff]
    %v169 = vld [vmem:[%s8 + $0x8] sm:$0xff]
    %v170 = vld [vmem:[%s8 + $0x10] sm:$0xff]
    %v171 = vld [vmem:[%s8 + $0x18] sm:$0xff]
    %v172 = vld [vmem:[%s9] sm:$0xff]
    %v173 = vld [vmem:[%s9 + $0x8] sm:$0xff]
    %v174 = vld [vmem:[%s9 + $0x10] sm:$0xff]
    %v175 = vld [vmem:[%s9 + $0x18] sm:$0xff]
    %v176 = vld [vmem:[%s10] sm:$0x1]
    %v177 = vld [vmem:[%s11] sm:$0x1]
    %v179 = vlaneseq
    %v180 = vshrl.u32 %v179, 7
    %v181 = vsub.s32 0, %v180
    %v182 = vrot.slane %v177, %v181
    %v184 = vlaneseq
    %v185 = vshrl.u32 %v184, 7
    %v186 = vsub.s32 0, %v185
    %v187 = vrot.slane %v161, %v186
    %vm189 = vcmask 261120
    %v191 = vsel %vm189, %v145, 0
    %v194 = vsel %vm189, %v150, 0
    %196 = vmatprep.subr.mxu0 0.0
    %197 = vmatpush1.msra.mxu0 %v153
    %198 = vmatprep.subr.mxu0 0.0
    %199 = vmatpush1.msra.mxu0 %v154
    %200 = vmatprep.subr.mxu0 0.0
    %201 = vmatpush1.msra.mxu0 %v155
    %202 = vmatprep.subr.mxu0 0.0
    %203 = vmatpush1.msra.mxu0 %v156
    %204 = vmatprep.subr.mxu0 0.0
    %205 = vmatpush1.msra.mxu0 0.0
    %206 = vmatprep.subr.mxu0 0.0
    %207 = vmatpush1.msra.mxu0 0.0
    %208 = vmatprep.subr.mxu0 0.0
    %209 = vmatpush1.msra.mxu0 0.0
    %210 = vmatprep.subr.mxu0 0.0
    %211 = vmatpush1.msra.mxu0 0.0
    %212 = vmatprep.subr.mxu0 0.0
    %213 = vmatpush1.msra.mxu0 0.0
    %214 = vmatprep.subr.mxu0 0.0
    %215 = vmatpush1.msra.mxu0 0.0
    %216 = vmatprep.subr.mxu0 0.0
    %217 = vmatpush1.msra.mxu0 0.0
    %218 = vmatprep.subr.mxu0 0.0
    %219 = vmatpush1.msra.mxu0 0.0
    %220 = vmatprep.subr.mxu0 0.0
    %221 = vmatpush1.msra.mxu0 0.0
    %222 = vmatprep.subr.mxu0 0.0
    %223 = vmatpush1.msra.mxu0 0.0
    %224 = vmatprep.subr.mxu0 0.0
    %225 = vmatpush1.msra.mxu0 0.0
    %226 = vmatprep.subr.mxu0 0.0
    %227 = vmatpush1.msra.mxu0 0.0
    %228 = vmatprep.subr.mxu0 0.0
    %229 = vmatpush1.msra.mxu0 0.0
    %230 = vmatprep.subr.mxu0 0.0
    %231 = vmatpush1.msra.mxu0 0.0
    %232 = vmatprep.subr.mxu0 0.0
    %233 = vmatpush1.msra.mxu0 0.0
    %234 = vmatprep.subr.mxu0 0.0
    %235 = vmatpush1.msra.mxu0 0.0
    %236 = vmatprep.subr.mxu0 0.0
    %237 = vmatpush1.msra.mxu0 0.0
    %238 = vmatprep.subr.mxu0 0.0
    %239 = vmatpush1.msra.mxu0 0.0
    %240 = vmatprep.subr.mxu0 0.0
    %241 = vmatpush1.msra.mxu0 0.0
    %242 = vmatprep.subr.mxu0 0.0
    %243 = vmatpush1.msra.mxu0 0.0
    %244 = vmatprep.subr.mxu0 0.0
    %245 = vmatpush1.msra.mxu0 0.0
    %246 = vmatprep.subr.mxu0 0.0
    %247 = vmatpush1.msra.mxu0 0.0
    %248 = vmatprep.subr.mxu0 0.0
    %249 = vmatpush1.msra.mxu0 0.0
    %250 = vmatprep.subr.mxu0 0.0
    %251 = vmatpush1.msra.mxu0 0.0
    %252 = vmatprep.subr.mxu0 0.0
    %253 = vmatpush1.msra.mxu0 0.0
    %254 = vmatprep.subr.mxu0 0.0
    %255 = vmatpush1.msra.mxu0 0.0
    %256 = vmatprep.subr.mxu0 0.0
    %257 = vmatpush1.msra.mxu0 0.0
    %258 = vmatprep.subr.mxu0 0.0
    %259 = vmatpush1.msra.mxu0 0.0
    %260 = vmatprep.mubr.f32.mxu0 0.0
    %261 = vmatmul.mubr.f32.gmra.mrb[0].mxu0 %v191
    %v262 = vpop.f32.mrb[0].mxu0
    %v263 = vadd.f32 %v187, %v262
    %v264 = vpop.f32.mrb[0].mxu0
    %265 = vmatprep.mubr.f32.mxu0 0.0
    %266 = vmatmul.mubr.f32.gmra.mrb[0].mxu0 %v194
    %v267 = vpop.f32.mrb[0].mxu0
    %v268 = vadd.f32 %v187, %v267
    %v269 = vpop.f32.mrb[0].mxu0
    %270 = vdwg.mxu0
    %v271 = vld [vmem:[%s12] sm:$0xff]
    %v272 = vld [vmem:[%s12 + $0x8] sm:$0xff]
    %v273 = vld [vmem:[%s12 + $0x10] sm:$0xff]
    %v274 = vld [vmem:[%s12 + $0x18] sm:$0xff]
    %v275 = vld [vmem:[%s13] sm:$0x1]
    %v276 = vld [vmem:[%s1] sm:$0x3]
    %v277 = vld [vmem:[%s3] sm:$0x3]
    %s278 = scalar_lea.vmem %s3, 2
    %v279 = vld [vmem:[%s278] sm:$0x3]
    %v281 = vsel %vm189, %v277, 0
    %283 = vmatprep.subr.mxu0 0.0
    %284 = vmatpush1.msra.mxu0 %v157
    %285 = vmatprep.subr.mxu0 0.0
    %286 = vmatpush1.msra.mxu0 %v158
    %287 = vmatprep.subr.mxu0 0.0
    %288 = vmatpush1.msra.mxu0 %v159
    %289 = vmatprep.subr.mxu0 0.0
    %290 = vmatpush1.msra.mxu0 %v160
    %291 = vmatprep.subr.mxu0 0.0
    %292 = vmatpush1.msra.mxu0 0.0
    %293 = vmatprep.subr.mxu0 0.0
    %294 = vmatpush1.msra.mxu0 0.0
    %295 = vmatprep.subr.mxu0 0.0
    %296 = vmatpush1.msra.mxu0 0.0
    %297 = vmatprep.subr.mxu0 0.0
    %298 = vmatpush1.msra.mxu0 0.0
    %299 = vmatprep.subr.mxu0 0.0
    %300 = vmatpush1.msra.mxu0 0.0
    %301 = vmatprep.subr.mxu0 0.0
    %302 = vmatpush1.msra.mxu0 0.0
    %303 = vmatprep.subr.mxu0 0.0
    %304 = vmatpush1.msra.mxu0 0.0
    %305 = vmatprep.subr.mxu0 0.0
    %306 = vmatpush1.msra.mxu0 0.0
    %307 = vmatprep.subr.mxu0 0.0
    %308 = vmatpush1.msra.mxu0 0.0
    %309 = vmatprep.subr.mxu0 0.0
    %310 = vmatpush1.msra.mxu0 0.0
    %311 = vmatprep.subr.mxu0 0.0
    %312 = vmatpush1.msra.mxu0 0.0
    %313 = vmatprep.subr.mxu0 0.0
    %314 = vmatpush1.msra.mxu0 0.0
    %315 = vmatprep.subr.mxu0 0.0
    %316 = vmatpush1.msra.mxu0 0.0
    %317 = vmatprep.subr.mxu0 0.0
    %318 = vmatpush1.msra.mxu0 0.0
    %319 = vmatprep.subr.mxu0 0.0
    %320 = vmatpush1.msra.mxu0 0.0
    %321 = vmatprep.subr.mxu0 0.0
    %322 = vmatpush1.msra.mxu0 0.0
    %323 = vmatprep.subr.mxu0 0.0
    %324 = vmatpush1.msra.mxu0 0.0
    %325 = vmatprep.subr.mxu0 0.0
    %326 = vmatpush1.msra.mxu0 0.0
    %327 = vmatprep.subr.mxu0 0.0
    %328 = vmatpush1.msra.mxu0 0.0
    %329 = vmatprep.subr.mxu0 0.0
    %330 = vmatpush1.msra.mxu0 0.0
    %331 = vmatprep.subr.mxu0 0.0
    %332 = vmatpush1.msra.mxu0 0.0
    %333 = vmatprep.subr.mxu0 0.0
    %334 = vmatpush1.msra.mxu0 0.0
    %335 = vmatprep.subr.mxu0 0.0
    %336 = vmatpush1.msra.mxu0 0.0
    %337 = vmatprep.subr.mxu0 0.0
    %338 = vmatpush1.msra.mxu0 0.0
    %339 = vmatprep.subr.mxu0 0.0
    %340 = vmatpush1.msra.mxu0 0.0
    %341 = vmatprep.subr.mxu0 0.0
    %342 = vmatpush1.msra.mxu0 0.0
    %343 = vmatprep.subr.mxu0 0.0
    %344 = vmatpush1.msra.mxu0 0.0
    %345 = vmatprep.subr.mxu0 0.0
    %346 = vmatpush1.msra.mxu0 0.0
    %347 = vmatprep.mubr.f32.mxu0 0.0
    %348 = vmatmul.mubr.f32.gmra.mrb[0].mxu0 %v281
    %v349 = vpop.f32.mrb[0].mxu0
    %v350 = vadd.f32 0.0, %v349
    %v351 = vpop.f32.mrb[0].mxu0
    %352 = vdwg.mxu0
    %v353 = vadd.f32 %v263, %v350
    %v354 = vxor.u32 %v353, 2147483648
    %v355 = vmul.f32 %v354, 1.442695
    %v356 = vpow.pop %v355
    %v357 = vadd.f32 %v356, 1.0
    %v358 = vrcp.pop %v357
    %v359 = vmul.f32 1.0, %v358
    %360 = vrot.lane.b32.xlu0 %v167, 64
    %v361 = vpop.permute.xlu0 %360
    %v363 = vadd.f32 %v350, %v361
    %365 = vrot.lane.b32.xlu0 %v363, 64
    %v366 = vpop.permute.xlu0 %365
    %v368 = vmul.f32 %v359, %v366
    %370 = vrot.lane.b32.xlu0 %v368, 64
    %v371 = vpop.permute.xlu0 %370
    %v373 = vadd.f32 %v263, %v371
    %v374 = vtanh.pop %v373
    %v375 = vsub.f32 1.0, %v359
    %376 = vrot.lane.b32.xlu0 %v277, 64
    %v377 = vpop.permute.xlu0 %376
    %v379 = vsub.f32 %v374, %v377
    %381 = vrot.lane.b32.xlu0 %v379, 96
    %v382 = vpop.permute.xlu0 %381
    %v384 = vmul.f32 %v375, %v382
    %386 = vrot.lane.b32.xlu0 %v384, 96
    %v387 = vpop.permute.xlu0 %386
    %v389 = vadd.f32 %v277, %v387
    %v391 = vsel %vm189, %v389, 0
    %393 = vmatprep.subr.mxu0 0.0
    %394 = vmatpush1.msra.mxu0 %v157
    %395 = vmatprep.subr.mxu0 0.0
    %396 = vmatpush1.msra.mxu0 %v158
    %397 = vmatprep.subr.mxu0 0.0
    %398 = vmatpush1.msra.mxu0 %v159
    %399 = vmatprep.subr.mxu0 0.0
    %400 = vmatpush1.msra.mxu0 %v160
    %401 = vmatprep.subr.mxu0 0.0
    %402 = vmatpush1.msra.mxu0 0.0
    %403 = vmatprep.subr.mxu0 0.0
    %404 = vmatpush1.msra.mxu0 0.0
    %405 = vmatprep.subr.mxu0 0.0
    %406 = vmatpush1.msra.mxu0 0.0
    %407 = vmatprep.subr.mxu0 0.0
    %408 = vmatpush1.msra.mxu0 0.0
    %409 = vmatprep.subr.mxu0 0.0
    %410 = vmatpush1.msra.mxu0 0.0
    %411 = vmatprep.subr.mxu0 0.0
    %412 = vmatpush1.msra.mxu0 0.0
    %413 = vmatprep.subr.mxu0 0.0
    %414 = vmatpush1.msra.mxu0 0.0
    %415 = vmatprep.subr.mxu0 0.0
    %416 = vmatpush1.msra.mxu0 0.0
    %417 = vmatprep.subr.mxu0 0.0
    %418 = vmatpush1.msra.mxu0 0.0
    %419 = vmatprep.subr.mxu0 0.0
    %420 = vmatpush1.msra.mxu0 0.0
    %421 = vmatprep.subr.mxu0 0.0
    %422 = vmatpush1.msra.mxu0 0.0
    %423 = vmatprep.subr.mxu0 0.0
    %424 = vmatpush1.msra.mxu0 0.0
    %425 = vmatprep.subr.mxu0 0.0
    %426 = vmatpush1.msra.mxu0 0.0
    %427 = vmatprep.subr.mxu0 0.0
    %428 = vmatpush1.msra.mxu0 0.0
    %429 = vmatprep.subr.mxu0 0.0
    %430 = vmatpush1.msra.mxu0 0.0
    %431 = vmatprep.subr.mxu0 0.0
    %432 = vmatpush1.msra.mxu0 0.0
    %433 = vmatprep.subr.mxu0 0.0
    %434 = vmatpush1.msra.mxu0 0.0
    %435 = vmatprep.subr.mxu0 0.0
    %436 = vmatpush1.msra.mxu0 0.0
    %437 = vmatprep.subr.mxu0 0.0
    %438 = vmatpush1.msra.mxu0 0.0
    %439 = vmatprep.subr.mxu0 0.0
    %440 = vmatpush1.msra.mxu0 0.0
    %441 = vmatprep.subr.mxu0 0.0
    %442 = vmatpush1.msra.mxu0 0.0
    %443 = vmatprep.subr.mxu0 0.0
    %444 = vmatpush1.msra.mxu0 0.0
    %445 = vmatprep.subr.mxu0 0.0
    %446 = vmatpush1.msra.mxu0 0.0
    %447 = vmatprep.subr.mxu0 0.0
    %448 = vmatpush1.msra.mxu0 0.0
    %449 = vmatprep.subr.mxu0 0.0
    %450 = vmatpush1.msra.mxu0 0.0
    %451 = vmatprep.subr.mxu0 0.0
    %452 = vmatpush1.msra.mxu0 0.0
    %453 = vmatprep.subr.mxu0 0.0
    %454 = vmatpush1.msra.mxu0 0.0
    %455 = vmatprep.subr.mxu0 0.0
    %456 = vmatpush1.msra.mxu0 0.0
    %457 = vmatprep.mubr.f32.mxu0 0.0
    %458 = vmatmul.mubr.f32.gmra.mrb[0].mxu0 %v391
    %v459 = vpop.f32.mrb[0].mxu0
    %v460 = vadd.f32 0.0, %v459
    %v461 = vpop.f32.mrb[0].mxu0
    %462 = vdwg.mxu0
    %v464 = vrot.slane %v460, 6
    %v466 = vadd.f32 %v263, %v464
    %v467 = vxor.u32 %v466, 2147483648
    %v468 = vmul.f32 %v467, 1.442695
    %v469 = vpow.pop %v468
    %v470 = vadd.f32 %v469, 1.0
    %v471 = vrcp.pop %v470
    %v472 = vmul.f32 1.0, %v471
    %v473 = vadd.f32 %v460, %v361
    %v475 = vrot.slane %v473, 6
    %476 = vrot.lane.b32.xlu0 %v475, 64
    %v477 = vpop.permute.xlu0 %476
    %v479 = vmul.f32 %v472, %v477
    %481 = vrot.lane.b32.xlu0 %v479, 64
    %v482 = vpop.permute.xlu0 %481
    %v484 = vadd.f32 %v263, %v482
    %v485 = vtanh.pop %v484
    %v486 = vsub.f32 1.0, %v472
    %v487 = vrot.slane %v389, 6
    %488 = vrot.lane.b32.xlu0 %v487, 64
    %v489 = vpop.permute.xlu0 %488
    %v491 = vsub.f32 %v485, %v489
    %493 = vrot.lane.b32.xlu0 %v491, 96
    %v494 = vpop.permute.xlu0 %493
    %v496 = vmul.f32 %v486, %v494
    %v498 = vrot.slane %v496, 2
    %499 = vrot.lane.b32.xlu0 %v498, 96
    %v500 = vpop.permute.xlu0 %499
    %v502 = vadd.f32 %v389, %v500
    %v504 = vlaneseq
    %v505 = vshrl.u32 %v504, 7
    %v506 = vsub.s32 0, %v505
    %v507 = vrot.slane %v176, %v506
    %509 = vmatprep.subr.mxu0 0.0
    %510 = vmatpush1.msra.mxu0 %v168
    %511 = vmatprep.subr.mxu0 0.0
    %512 = vmatpush1.msra.mxu0 %v169
    %513 = vmatprep.subr.mxu0 0.0
    %514 = vmatpush1.msra.mxu0 %v170
    %515 = vmatprep.subr.mxu0 0.0
    %516 = vmatpush1.msra.mxu0 %v171
    %517 = vmatprep.subr.mxu0 0.0
    %518 = vmatpush1.msra.mxu0 0.0
    %519 = vmatprep.subr.mxu0 0.0
    %520 = vmatpush1.msra.mxu0 0.0
    %521 = vmatprep.subr.mxu0 0.0
    %522 = vmatpush1.msra.mxu0 0.0
    %523 = vmatprep.subr.mxu0 0.0
    %524 = vmatpush1.msra.mxu0 0.0
    %525 = vmatprep.subr.mxu0 0.0
    %526 = vmatpush1.msra.mxu0 0.0
    %527 = vmatprep.subr.mxu0 0.0
    %528 = vmatpush1.msra.mxu0 0.0
    %529 = vmatprep.subr.mxu0 0.0
    %530 = vmatpush1.msra.mxu0 0.0
    %531 = vmatprep.subr.mxu0 0.0
    %532 = vmatpush1.msra.mxu0 0.0
    %533 = vmatprep.subr.mxu0 0.0
    %534 = vmatpush1.msra.mxu0 0.0
    %535 = vmatprep.subr.mxu0 0.0
    %536 = vmatpush1.msra.mxu0 0.0
    %537 = vmatprep.subr.mxu0 0.0
    %538 = vmatpush1.msra.mxu0 0.0
    %539 = vmatprep.subr.mxu0 0.0
    %540 = vmatpush1.msra.mxu0 0.0
    %541 = vmatprep.subr.mxu0 0.0
    %542 = vmatpush1.msra.mxu0 0.0
    %543 = vmatprep.subr.mxu0 0.0
    %544 = vmatpush1.msra.mxu0 0.0
    %545 = vmatprep.subr.mxu0 0.0
    %546 = vmatpush1.msra.mxu0 0.0
    %547 = vmatprep.subr.mxu0 0.0
    %548 = vmatpush1.msra.mxu0 0.0
    %549 = vmatprep.subr.mxu0 0.0
    %550 = vmatpush1.msra.mxu0 0.0
    %551 = vmatprep.subr.mxu0 0.0
    %552 = vmatpush1.msra.mxu0 0.0
    %553 = vmatprep.subr.mxu0 0.0
    %554 = vmatpush1.msra.mxu0 0.0
    %555 = vmatprep.subr.mxu0 0.0
    %556 = vmatpush1.msra.mxu0 0.0
    %557 = vmatprep.subr.mxu0 0.0
    %558 = vmatpush1.msra.mxu0 0.0
    %559 = vmatprep.subr.mxu0 0.0
    %560 = vmatpush1.msra.mxu0 0.0
    %561 = vmatprep.subr.mxu0 0.0
    %562 = vmatpush1.msra.mxu0 0.0
    %563 = vmatprep.subr.mxu0 0.0
    %564 = vmatpush1.msra.mxu0 0.0
    %565 = vmatprep.subr.mxu0 0.0
    %566 = vmatpush1.msra.mxu0 0.0
    %567 = vmatprep.subr.mxu0 0.0
    %568 = vmatpush1.msra.mxu0 0.0
    %569 = vmatprep.subr.mxu0 0.0
    %570 = vmatpush1.msra.mxu0 0.0
    %571 = vmatprep.subr.mxu0 0.0
    %572 = vmatpush1.msra.mxu0 0.0
    %573 = vmatprep.mubr.f32.mxu0 0.0
    %574 = vmatmul.mubr.f32.gmra.mrb[0].mxu0 %v391
    %v575 = vpop.f32.mrb[0].mxu0
    %v576 = vadd.f32 %v507, %v575
    %v577 = vpop.f32.mrb[0].mxu0
    %578 = vdwg.mxu0
    %v580 = vsel %vm189, %v279, 0
    %582 = vmatprep.subr.mxu0 0.0
    %583 = vmatpush1.msra.mxu0 %v172
    %584 = vmatprep.subr.mxu0 0.0
    %585 = vmatpush1.msra.mxu0 %v173
    %586 = vmatprep.subr.mxu0 0.0
    %587 = vmatpush1.msra.mxu0 %v174
    %588 = vmatprep.subr.mxu0 0.0
    %589 = vmatpush1.msra.mxu0 %v175
    %590 = vmatprep.subr.mxu0 0.0
    %591 = vmatpush1.msra.mxu0 0.0
    %592 = vmatprep.subr.mxu0 0.0
    %593 = vmatpush1.msra.mxu0 0.0
    %594 = vmatprep.subr.mxu0 0.0
    %595 = vmatpush1.msra.mxu0 0.0
    %596 = vmatprep.subr.mxu0 0.0
    %597 = vmatpush1.msra.mxu0 0.0
    %598 = vmatprep.subr.mxu0 0.0
    %599 = vmatpush1.msra.mxu0 0.0
    %600 = vmatprep.subr.mxu0 0.0
    %601 = vmatpush1.msra.mxu0 0.0
    %602 = vmatprep.subr.mxu0 0.0
    %603 = vmatpush1.msra.mxu0 0.0
    %604 = vmatprep.subr.mxu0 0.0
    %605 = vmatpush1.msra.mxu0 0.0
    %606 = vmatprep.subr.mxu0 0.0
    %607 = vmatpush1.msra.mxu0 0.0
    %608 = vmatprep.subr.mxu0 0.0
    %609 = vmatpush1.msra.mxu0 0.0
    %610 = vmatprep.subr.mxu0 0.0
    %611 = vmatpush1.msra.mxu0 0.0
    %612 = vmatprep.subr.mxu0 0.0
    %613 = vmatpush1.msra.mxu0 0.0
    %614 = vmatprep.subr.mxu0 0.0
    %615 = vmatpush1.msra.mxu0 0.0
    %616 = vmatprep.subr.mxu0 0.0
    %617 = vmatpush1.msra.mxu0 0.0
    %618 = vmatprep.subr.mxu0 0.0
    %619 = vmatpush1.msra.mxu0 0.0
    %620 = vmatprep.subr.mxu0 0.0
    %621 = vmatpush1.msra.mxu0 0.0
    %622 = vmatprep.subr.mxu0 0.0
    %623 = vmatpush1.msra.mxu0 0.0
    %624 = vmatprep.subr.mxu0 0.0
    %625 = vmatpush1.msra.mxu0 0.0
    %626 = vmatprep.subr.mxu0 0.0
    %627 = vmatpush1.msra.mxu0 0.0
    %628 = vmatprep.subr.mxu0 0.0
    %629 = vmatpush1.msra.mxu0 0.0
    %630 = vmatprep.subr.mxu0 0.0
    %631 = vmatpush1.msra.mxu0 0.0
    %632 = vmatprep.subr.mxu0 0.0
    %633 = vmatpush1.msra.mxu0 0.0
    %634 = vmatprep.subr.mxu0 0.0
    %635 = vmatpush1.msra.mxu0 0.0
    %636 = vmatprep.subr.mxu0 0.0
    %637 = vmatpush1.msra.mxu0 0.0
    %638 = vmatprep.subr.mxu0 0.0
    %639 = vmatpush1.msra.mxu0 0.0
    %640 = vmatprep.subr.mxu0 0.0
    %641 = vmatpush1.msra.mxu0 0.0
    %642 = vmatprep.subr.mxu0 0.0
    %643 = vmatpush1.msra.mxu0 0.0
    %644 = vmatprep.subr.mxu0 0.0
    %645 = vmatpush1.msra.mxu0 0.0
    %646 = vmatprep.mubr.f32.mxu0 0.0
    %647 = vmatmul.mubr.f32.gmra.mrb[0].mxu0 %v580
    %v648 = vpop.f32.mrb[0].mxu0
    %v649 = vadd.f32 0.0, %v648
    %v650 = vpop.f32.mrb[0].mxu0
    %651 = vdwg.mxu0
    %v652 = vadd.f32 %v576, %v649
    %v653 = vxor.u32 %v652, 2147483648
    %v654 = vmul.f32 %v653, 1.442695
    %v655 = vpow.pop %v654
    %v656 = vadd.f32 %v655, 1.0
    %v657 = vrcp.pop %v656
    %v658 = vmul.f32 1.0, %v657
    %659 = vrot.lane.b32.xlu0 %v182, 64
    %v660 = vpop.permute.xlu0 %659
    %v662 = vadd.f32 %v649, %v660
    %664 = vrot.lane.b32.xlu0 %v662, 64
    %v665 = vpop.permute.xlu0 %664
    %v667 = vmul.f32 %v658, %v665
    %669 = vrot.lane.b32.xlu0 %v667, 64
    %v670 = vpop.permute.xlu0 %669
    %v672 = vadd.f32 %v576, %v670
    %v673 = vtanh.pop %v672
    %v674 = vsub.f32 1.0, %v658
    %675 = vrot.lane.b32.xlu0 %v279, 64
    %v676 = vpop.permute.xlu0 %675
    %v678 = vsub.f32 %v673, %v676
    %680 = vrot.lane.b32.xlu0 %v678, 96
    %v681 = vpop.permute.xlu0 %680
    %v683 = vmul.f32 %v674, %v681
    %685 = vrot.lane.b32.xlu0 %v683, 96
    %v686 = vpop.permute.xlu0 %685
    %v688 = vadd.f32 %v279, %v686
    %v690 = vlaneseq
    %v691 = vshrl.u32 %v690, 7
    %v692 = vsub.s32 0, %v691
    %v693 = vrot.slane %v275, %v692
    %v696 = vsel %vm189, %v688, 0
    %698 = vmatprep.subr.mxu0 0.0
    %699 = vmatpush1.msra.mxu0 %v271
    %700 = vmatprep.subr.mxu0 0.0
    %701 = vmatpush1.msra.mxu0 %v272
    %702 = vmatprep.subr.mxu0 0.0
    %703 = vmatpush1.msra.mxu0 %v273
    %704 = vmatprep.subr.mxu0 0.0
    %705 = vmatpush1.msra.mxu0 %v274
    %706 = vmatprep.subr.mxu0 0.0
    %707 = vmatpush1.msra.mxu0 0.0
    %708 = vmatprep.subr.mxu0 0.0
    %709 = vmatpush1.msra.mxu0 0.0
    %710 = vmatprep.subr.mxu0 0.0
    %711 = vmatpush1.msra.mxu0 0.0
    %712 = vmatprep.subr.mxu0 0.0
    %713 = vmatpush1.msra.mxu0 0.0
    %714 = vmatprep.subr.mxu0 0.0
    %715 = vmatpush1.msra.mxu0 0.0
    %716 = vmatprep.subr.mxu0 0.0
    %717 = vmatpush1.msra.mxu0 0.0
    %718 = vmatprep.subr.mxu0 0.0
    %719 = vmatpush1.msra.mxu0 0.0
    %720 = vmatprep.subr.mxu0 0.0
    %721 = vmatpush1.msra.mxu0 0.0
    %722 = vmatprep.subr.mxu0 0.0
    %723 = vmatpush1.msra.mxu0 0.0
    %724 = vmatprep.subr.mxu0 0.0
    %725 = vmatpush1.msra.mxu0 0.0
    %726 = vmatprep.subr.mxu0 0.0
    %727 = vmatpush1.msra.mxu0 0.0
    %728 = vmatprep.subr.mxu0 0.0
    %729 = vmatpush1.msra.mxu0 0.0
    %730 = vmatprep.subr.mxu0 0.0
    %731 = vmatpush1.msra.mxu0 0.0
    %732 = vmatprep.subr.mxu0 0.0
    %733 = vmatpush1.msra.mxu0 0.0
    %734 = vmatprep.subr.mxu0 0.0
    %735 = vmatpush1.msra.mxu0 0.0
    %736 = vmatprep.subr.mxu0 0.0
    %737 = vmatpush1.msra.mxu0 0.0
    %738 = vmatprep.subr.mxu0 0.0
    %739 = vmatpush1.msra.mxu0 0.0
    %740 = vmatprep.subr.mxu0 0.0
    %741 = vmatpush1.msra.mxu0 0.0
    %742 = vmatprep.subr.mxu0 0.0
    %743 = vmatpush1.msra.mxu0 0.0
    %744 = vmatprep.subr.mxu0 0.0
    %745 = vmatpush1.msra.mxu0 0.0
    %746 = vmatprep.subr.mxu0 0.0
    %747 = vmatpush1.msra.mxu0 0.0
    %748 = vmatprep.subr.mxu0 0.0
    %749 = vmatpush1.msra.mxu0 0.0
    %750 = vmatprep.subr.mxu0 0.0
    %751 = vmatpush1.msra.mxu0 0.0
    %752 = vmatprep.subr.mxu0 0.0
    %753 = vmatpush1.msra.mxu0 0.0
    %754 = vmatprep.subr.mxu0 0.0
    %755 = vmatpush1.msra.mxu0 0.0
    %756 = vmatprep.subr.mxu0 0.0
    %757 = vmatpush1.msra.mxu0 0.0
    %758 = vmatprep.subr.mxu0 0.0
    %759 = vmatpush1.msra.mxu0 0.0
    %760 = vmatprep.subr.mxu0 0.0
    %761 = vmatpush1.msra.mxu0 0.0
    %762 = vmatprep.mubr.f32.mxu0 0.0
    %763 = vmatmul.mubr.f32.gmra.mrb[0].mxu0 %v696
    %v764 = vpop.f32.mrb[0].mxu0
    %v765 = vadd.f32 %v693, %v764
    %v766 = vpop.f32.mrb[0].mxu0
    %767 = vdwg.mxu0
    %vm768 = vcmp.gt.s32.totalorder %v276, 0
    %v769 = vsel %vm768, 1.0, 0.0
    %771 = vset.pattern.permute.xlu0 0
    %772 = vperm.xlu0 %771, %v769
    %v773 = vpop.permute.xlu0 %772
    %v775 = vmul.f32 %v765, %v773
    %776 = vst [vmem:[#allocation2] sm:$0x3] %v775
    %v778 = vsel %vm189, %v502, 0
    %780 = vmatprep.subr.mxu0 0.0
    %781 = vmatpush1.msra.mxu0 %v157
    %782 = vmatprep.subr.mxu0 0.0
    %783 = vmatpush1.msra.mxu0 %v158
    %784 = vmatprep.subr.mxu0 0.0
    %785 = vmatpush1.msra.mxu0 %v159
    %786 = vmatprep.subr.mxu0 0.0
    %787 = vmatpush1.msra.mxu0 %v160
    %788 = vmatprep.subr.mxu0 0.0
    %789 = vmatpush1.msra.mxu0 0.0
    %790 = vmatprep.subr.mxu0 0.0
    %791 = vmatpush1.msra.mxu0 0.0
    %792 = vmatprep.subr.mxu0 0.0
    %793 = vmatpush1.msra.mxu0 0.0
    %794 = vmatprep.subr.mxu0 0.0
    %795 = vmatpush1.msra.mxu0 0.0
    %796 = vmatprep.subr.mxu0 0.0
    %797 = vmatpush1.msra.mxu0 0.0
    %798 = vmatprep.subr.mxu0 0.0
    %799 = vmatpush1.msra.mxu0 0.0
    %800 = vmatprep.subr.mxu0 0.0
    %801 = vmatpush1.msra.mxu0 0.0
    %802 = vmatprep.subr.mxu0 0.0
    %803 = vmatpush1.msra.mxu0 0.0
    %804 = vmatprep.subr.mxu0 0.0
    %805 = vmatpush1.msra.mxu0 0.0
    %806 = vmatprep.subr.mxu0 0.0
    %807 = vmatpush1.msra.mxu0 0.0
    %808 = vmatprep.subr.mxu0 0.0
    %809 = vmatpush1.msra.mxu0 0.0
    %810 = vmatprep.subr.mxu0 0.0
    %811 = vmatpush1.msra.mxu0 0.0
    %812 = vmatprep.subr.mxu0 0.0
    %813 = vmatpush1.msra.mxu0 0.0
    %814 = vmatprep.subr.mxu0 0.0
    %815 = vmatpush1.msra.mxu0 0.0
    %816 = vmatprep.subr.mxu0 0.0
    %817 = vmatpush1.msra.mxu0 0.0
    %818 = vmatprep.subr.mxu0 0.0
    %819 = vmatpush1.msra.mxu0 0.0
    %820 = vmatprep.subr.mxu0 0.0
    %821 = vmatpush1.msra.mxu0 0.0
    %822 = vmatprep.subr.mxu0 0.0
    %823 = vmatpush1.msra.mxu0 0.0
    %824 = vmatprep.subr.mxu0 0.0
    %825 = vmatpush1.msra.mxu0 0.0
    %826 = vmatprep.subr.mxu0 0.0
    %827 = vmatpush1.msra.mxu0 0.0
    %828 = vmatprep.subr.mxu0 0.0
    %829 = vmatpush1.msra.mxu0 0.0
    %830 = vmatprep.subr.mxu0 0.0
    %831 = vmatpush1.msra.mxu0 0.0
    %832 = vmatprep.subr.mxu0 0.0
    %833 = vmatpush1.msra.mxu0 0.0
    %834 = vmatprep.subr.mxu0 0.0
    %835 = vmatpush1.msra.mxu0 0.0
    %836 = vmatprep.subr.mxu0 0.0
    %837 = vmatpush1.msra.mxu0 0.0
    %838 = vmatprep.subr.mxu0 0.0
    %839 = vmatpush1.msra.mxu0 0.0
    %840 = vmatprep.subr.mxu0 0.0
    %841 = vmatpush1.msra.mxu0 0.0
    %842 = vmatprep.subr.mxu0 0.0
    %843 = vmatpush1.msra.mxu0 0.0
    %844 = vmatprep.mubr.f32.mxu0 0.0
    %845 = vmatmul.mubr.f32.gmra.mrb[0].mxu0 %v778
    %v846 = vpop.f32.mrb[0].mxu0
    %v847 = vadd.f32 0.0, %v846
    %v848 = vpop.f32.mrb[0].mxu0
    %849 = vdwg.mxu0
    %v851 = vrot.slane %v847, 4
    %v853 = vadd.f32 %v263, %v851
    %v854 = vxor.u32 %v853, 2147483648
    %v855 = vmul.f32 %v854, 1.442695
    %v856 = vpow.pop %v855
    %v857 = vadd.f32 %v856, 1.0
    %v858 = vrcp.pop %v857
    %v859 = vmul.f32 1.0, %v858
    %v860 = vadd.f32 %v847, %v361
    %v862 = vrot.slane %v860, 4
    %863 = vrot.lane.b32.xlu0 %v862, 64
    %v864 = vpop.permute.xlu0 %863
    %v866 = vmul.f32 %v859, %v864
    %868 = vrot.lane.b32.xlu0 %v866, 64
    %v869 = vpop.permute.xlu0 %868
    %v871 = vadd.f32 %v263, %v869
    %v872 = vtanh.pop %v871
    %v873 = vsub.f32 1.0, %v859
    %v874 = vrot.slane %v502, 4
    %875 = vrot.lane.b32.xlu0 %v874, 64
    %v876 = vpop.permute.xlu0 %875
    %v878 = vsub.f32 %v872, %v876
    %880 = vrot.lane.b32.xlu0 %v878, 96
    %v881 = vpop.permute.xlu0 %880
    %v883 = vmul.f32 %v873, %v881
    %v885 = vrot.slane %v883, 4
    %886 = vrot.lane.b32.xlu0 %v885, 96
    %v887 = vpop.permute.xlu0 %886
    %v889 = vadd.f32 %v502, %v887
    %890 = vmatprep.subr.mxu0 0.0
    %891 = vmatpush1.msra.mxu0 %v168
    %892 = vmatprep.subr.mxu0 0.0
    %893 = vmatpush1.msra.mxu0 %v169
    %894 = vmatprep.subr.mxu0 0.0
    %895 = vmatpush1.msra.mxu0 %v170
    %896 = vmatprep.subr.mxu0 0.0
    %897 = vmatpush1.msra.mxu0 %v171
    %898 = vmatprep.subr.mxu0 0.0
    %899 = vmatpush1.msra.mxu0 0.0
    %900 = vmatprep.subr.mxu0 0.0
    %901 = vmatpush1.msra.mxu0 0.0
    %902 = vmatprep.subr.mxu0 0.0
    %903 = vmatpush1.msra.mxu0 0.0
    %904 = vmatprep.subr.mxu0 0.0
    %905 = vmatpush1.msra.mxu0 0.0
    %906 = vmatprep.subr.mxu0 0.0
    %907 = vmatpush1.msra.mxu0 0.0
    %908 = vmatprep.subr.mxu0 0.0
    %909 = vmatpush1.msra.mxu0 0.0
    %910 = vmatprep.subr.mxu0 0.0
    %911 = vmatpush1.msra.mxu0 0.0
    %912 = vmatprep.subr.mxu0 0.0
    %913 = vmatpush1.msra.mxu0 0.0
    %914 = vmatprep.subr.mxu0 0.0
    %915 = vmatpush1.msra.mxu0 0.0
    %916 = vmatprep.subr.mxu0 0.0
    %917 = vmatpush1.msra.mxu0 0.0
    %918 = vmatprep.subr.mxu0 0.0
    %919 = vmatpush1.msra.mxu0 0.0
    %920 = vmatprep.subr.mxu0 0.0
    %921 = vmatpush1.msra.mxu0 0.0
    %922 = vmatprep.subr.mxu0 0.0
    %923 = vmatpush1.msra.mxu0 0.0
    %924 = vmatprep.subr.mxu0 0.0
    %925 = vmatpush1.msra.mxu0 0.0
    %926 = vmatprep.subr.mxu0 0.0
    %927 = vmatpush1.msra.mxu0 0.0
    %928 = vmatprep.subr.mxu0 0.0
    %929 = vmatpush1.msra.mxu0 0.0
    %930 = vmatprep.subr.mxu0 0.0
    %931 = vmatpush1.msra.mxu0 0.0
    %932 = vmatprep.subr.mxu0 0.0
    %933 = vmatpush1.msra.mxu0 0.0
    %934 = vmatprep.subr.mxu0 0.0
    %935 = vmatpush1.msra.mxu0 0.0
    %936 = vmatprep.subr.mxu0 0.0
    %937 = vmatpush1.msra.mxu0 0.0
    %938 = vmatprep.subr.mxu0 0.0
    %939 = vmatpush1.msra.mxu0 0.0
    %940 = vmatprep.subr.mxu0 0.0
    %941 = vmatpush1.msra.mxu0 0.0
    %942 = vmatprep.subr.mxu0 0.0
    %943 = vmatpush1.msra.mxu0 0.0
    %944 = vmatprep.subr.mxu0 0.0
    %945 = vmatpush1.msra.mxu0 0.0
    %946 = vmatprep.subr.mxu0 0.0
    %947 = vmatpush1.msra.mxu0 0.0
    %948 = vmatprep.subr.mxu0 0.0
    %949 = vmatpush1.msra.mxu0 0.0
    %950 = vmatprep.subr.mxu0 0.0
    %951 = vmatpush1.msra.mxu0 0.0
    %952 = vmatprep.subr.mxu0 0.0
    %953 = vmatpush1.msra.mxu0 0.0
    %954 = vmatprep.mubr.f32.mxu0 0.0
    %955 = vmatmul.mubr.f32.gmra.mrb[0].mxu0 %v778
    %v956 = vpop.f32.mrb[0].mxu0
    %v957 = vadd.f32 %v507, %v956
    %v958 = vpop.f32.mrb[0].mxu0
    %959 = vdwg.mxu0
    %960 = vmatprep.subr.mxu0 0.0
    %961 = vmatpush1.msra.mxu0 %v172
    %962 = vmatprep.subr.mxu0 0.0
    %963 = vmatpush1.msra.mxu0 %v173
    %964 = vmatprep.subr.mxu0 0.0
    %965 = vmatpush1.msra.mxu0 %v174
    %966 = vmatprep.subr.mxu0 0.0
    %967 = vmatpush1.msra.mxu0 %v175
    %968 = vmatprep.subr.mxu0 0.0
    %969 = vmatpush1.msra.mxu0 0.0
    %970 = vmatprep.subr.mxu0 0.0
    %971 = vmatpush1.msra.mxu0 0.0
    %972 = vmatprep.subr.mxu0 0.0
    %973 = vmatpush1.msra.mxu0 0.0
    %974 = vmatprep.subr.mxu0 0.0
    %975 = vmatpush1.msra.mxu0 0.0
    %976 = vmatprep.subr.mxu0 0.0
    %977 = vmatpush1.msra.mxu0 0.0
    %978 = vmatprep.subr.mxu0 0.0
    %979 = vmatpush1.msra.mxu0 0.0
    %980 = vmatprep.subr.mxu0 0.0
    %981 = vmatpush1.msra.mxu0 0.0
    %982 = vmatprep.subr.mxu0 0.0
    %983 = vmatpush1.msra.mxu0 0.0
    %984 = vmatprep.subr.mxu0 0.0
    %985 = vmatpush1.msra.mxu0 0.0
    %986 = vmatprep.subr.mxu0 0.0
    %987 = vmatpush1.msra.mxu0 0.0
    %988 = vmatprep.subr.mxu0 0.0
    %989 = vmatpush1.msra.mxu0 0.0
    %990 = vmatprep.subr.mxu0 0.0
    %991 = vmatpush1.msra.mxu0 0.0
    %992 = vmatprep.subr.mxu0 0.0
    %993 = vmatpush1.msra.mxu0 0.0
    %994 = vmatprep.subr.mxu0 0.0
    %995 = vmatpush1.msra.mxu0 0.0
    %996 = vmatprep.subr.mxu0 0.0
    %997 = vmatpush1.msra.mxu0 0.0
    %998 = vmatprep.subr.mxu0 0.0
    %999 = vmatpush1.msra.mxu0 0.0
    %1000 = vmatprep.subr.mxu0 0.0
    %1001 = vmatpush1.msra.mxu0 0.0
    %1002 = vmatprep.subr.mxu0 0.0
    %1003 = vmatpush1.msra.mxu0 0.0
    %1004 = vmatprep.subr.mxu0 0.0
    %1005 = vmatpush1.msra.mxu0 0.0
    %1006 = vmatprep.subr.mxu0 0.0
    %1007 = vmatpush1.msra.mxu0 0.0
    %1008 = vmatprep.subr.mxu0 0.0
    %1009 = vmatpush1.msra.mxu0 0.0
    %1010 = vmatprep.subr.mxu0 0.0
    %1011 = vmatpush1.msra.mxu0 0.0
    %1012 = vmatprep.subr.mxu0 0.0
    %1013 = vmatpush1.msra.mxu0 0.0
    %1014 = vmatprep.subr.mxu0 0.0
    %1015 = vmatpush1.msra.mxu0 0.0
    %1016 = vmatprep.subr.mxu0 0.0
    %1017 = vmatpush1.msra.mxu0 0.0
    %1018 = vmatprep.subr.mxu0 0.0
    %1019 = vmatpush1.msra.mxu0 0.0
    %1020 = vmatprep.subr.mxu0 0.0
    %1021 = vmatpush1.msra.mxu0 0.0
    %1022 = vmatprep.subr.mxu0 0.0
    %1023 = vmatpush1.msra.mxu0 0.0
    %1024 = vmatprep.mubr.f32.mxu0 0.0
    %1025 = vmatmul.mubr.f32.gmra.mrb[0].mxu0 %v696
    %v1026 = vpop.f32.mrb[0].mxu0
    %v1027 = vadd.f32 0.0, %v1026
    %v1028 = vpop.f32.mrb[0].mxu0
    %1029 = vdwg.mxu0
    %v1030 = vadd.f32 %v957, %v1027
    %v1031 = vxor.u32 %v1030, 2147483648
    %v1032 = vmul.f32 %v1031, 1.442695
    %v1033 = vpow.pop %v1032
    %v1034 = vadd.f32 %v1033, 1.0
    %v1035 = vrcp.pop %v1034
    %v1036 = vmul.f32 1.0, %v1035
    %v1037 = vadd.f32 %v1027, %v660
    %1039 = vrot.lane.b32.xlu0 %v1037, 64
    %v1040 = vpop.permute.xlu0 %1039
    %v1042 = vmul.f32 %v1036, %v1040
    %1044 = vrot.lane.b32.xlu0 %v1042, 64
    %v1045 = vpop.permute.xlu0 %1044
    %v1047 = vadd.f32 %v957, %v1045
    %v1048 = vtanh.pop %v1047
    %v1049 = vsub.f32 1.0, %v1036
    %1050 = vrot.lane.b32.xlu0 %v688, 64
    %v1051 = vpop.permute.xlu0 %1050
    %v1053 = vsub.f32 %v1048, %v1051
    %1055 = vrot.lane.b32.xlu0 %v1053, 96
    %v1056 = vpop.permute.xlu0 %1055
    %v1058 = vmul.f32 %v1049, %v1056
    %1060 = vrot.lane.b32.xlu0 %v1058, 96
    %v1061 = vpop.permute.xlu0 %1060
    %v1063 = vadd.f32 %v688, %v1061
    %v1065 = vsel %vm189, %v1063, 0
    %1067 = vmatprep.subr.mxu0 0.0
    %1068 = vmatpush1.msra.mxu0 %v271
    %1069 = vmatprep.subr.mxu0 0.0
    %1070 = vmatpush1.msra.mxu0 %v272
    %1071 = vmatprep.subr.mxu0 0.0
    %1072 = vmatpush1.msra.mxu0 %v273
    %1073 = vmatprep.subr.mxu0 0.0
    %1074 = vmatpush1.msra.mxu0 %v274
    %1075 = vmatprep.subr.mxu0 0.0
    %1076 = vmatpush1.msra.mxu0 0.0
    %1077 = vmatprep.subr.mxu0 0.0
    %1078 = vmatpush1.msra.mxu0 0.0
    %1079 = vmatprep.subr.mxu0 0.0
    %1080 = vmatpush1.msra.mxu0 0.0
    %1081 = vmatprep.subr.mxu0 0.0
    %1082 = vmatpush1.msra.mxu0 0.0
    %1083 = vmatprep.subr.mxu0 0.0
    %1084 = vmatpush1.msra.mxu0 0.0
    %1085 = vmatprep.subr.mxu0 0.0
    %1086 = vmatpush1.msra.mxu0 0.0
    %1087 = vmatprep.subr.mxu0 0.0
    %1088 = vmatpush1.msra.mxu0 0.0
    %1089 = vmatprep.subr.mxu0 0.0
    %1090 = vmatpush1.msra.mxu0 0.0
    %1091 = vmatprep.subr.mxu0 0.0
    %1092 = vmatpush1.msra.mxu0 0.0
    %1093 = vmatprep.subr.mxu0 0.0
    %1094 = vmatpush1.msra.mxu0 0.0
    %1095 = vmatprep.subr.mxu0 0.0
    %1096 = vmatpush1.msra.mxu0 0.0
    %1097 = vmatprep.subr.mxu0 0.0
    %1098 = vmatpush1.msra.mxu0 0.0
    %1099 = vmatprep.subr.mxu0 0.0
    %1100 = vmatpush1.msra.mxu0 0.0
    %1101 = vmatprep.subr.mxu0 0.0
    %1102 = vmatpush1.msra.mxu0 0.0
    %1103 = vmatprep.subr.mxu0 0.0
    %1104 = vmatpush1.msra.mxu0 0.0
    %1105 = vmatprep.subr.mxu0 0.0
    %1106 = vmatpush1.msra.mxu0 0.0
    %1107 = vmatprep.subr.mxu0 0.0
    %1108 = vmatpush1.msra.mxu0 0.0
    %1109 = vmatprep.subr.mxu0 0.0
    %1110 = vmatpush1.msra.mxu0 0.0
    %1111 = vmatprep.subr.mxu0 0.0
    %1112 = vmatpush1.msra.mxu0 0.0
    %1113 = vmatprep.subr.mxu0 0.0
    %1114 = vmatpush1.msra.mxu0 0.0
    %1115 = vmatprep.subr.mxu0 0.0
    %1116 = vmatpush1.msra.mxu0 0.0
    %1117 = vmatprep.subr.mxu0 0.0
    %1118 = vmatpush1.msra.mxu0 0.0
    %1119 = vmatprep.subr.mxu0 0.0
    %1120 = vmatpush1.msra.mxu0 0.0
    %1121 = vmatprep.subr.mxu0 0.0
    %1122 = vmatpush1.msra.mxu0 0.0
    %1123 = vmatprep.subr.mxu0 0.0
    %1124 = vmatpush1.msra.mxu0 0.0
    %1125 = vmatprep.subr.mxu0 0.0
    %1126 = vmatpush1.msra.mxu0 0.0
    %1127 = vmatprep.subr.mxu0 0.0
    %1128 = vmatpush1.msra.mxu0 0.0
    %1129 = vmatprep.subr.mxu0 0.0
    %1130 = vmatpush1.msra.mxu0 0.0
    %1131 = vmatprep.mubr.f32.mxu0 0.0
    %1132 = vmatmul.mubr.f32.gmra.mrb[0].mxu0 %v1065
    %v1133 = vpop.f32.mrb[0].mxu0
    %v1134 = vadd.f32 %v693, %v1133
    %v1135 = vpop.f32.mrb[0].mxu0
    %1136 = vdwg.mxu0
    %vm1137 = vcmp.gt.s32.totalorder %v276, 1
    %v1138 = vsel %vm1137, 1.0, 0.0
    %1140 = vset.pattern.permute.xlu0 0
    %1141 = vperm.xlu0 %1140, %v1138
    %v1142 = vpop.permute.xlu0 %1141
    %v1144 = vmul.f32 %v1134, %v1142
    %1145 = vst [vmem:[#allocation2 + $0x2] sm:$0x3] %v1144
    %v1147 = vsel %vm189, %v889, 0
    %1149 = vmatprep.subr.mxu0 0.0
    %1150 = vmatpush1.msra.mxu0 %v157
    %1151 = vmatprep.subr.mxu0 0.0
    %1152 = vmatpush1.msra.mxu0 %v158
    %1153 = vmatprep.subr.mxu0 0.0
    %1154 = vmatpush1.msra.mxu0 %v159
    %1155 = vmatprep.subr.mxu0 0.0
    %1156 = vmatpush1.msra.mxu0 %v160
    %1157 = vmatprep.subr.mxu0 0.0
    %1158 = vmatpush1.msra.mxu0 0.0
    %1159 = vmatprep.subr.mxu0 0.0
    %1160 = vmatpush1.msra.mxu0 0.0
    %1161 = vmatprep.subr.mxu0 0.0
    %1162 = vmatpush1.msra.mxu0 0.0
    %1163 = vmatprep.subr.mxu0 0.0
    %1164 = vmatpush1.msra.mxu0 0.0
    %1165 = vmatprep.subr.mxu0 0.0
    %1166 = vmatpush1.msra.mxu0 0.0
    %1167 = vmatprep.subr.mxu0 0.0
    %1168 = vmatpush1.msra.mxu0 0.0
    %1169 = vmatprep.subr.mxu0 0.0
    %1170 = vmatpush1.msra.mxu0 0.0
    %1171 = vmatprep.subr.mxu0 0.0
    %1172 = vmatpush1.msra.mxu0 0.0
    %1173 = vmatprep.subr.mxu0 0.0
    %1174 = vmatpush1.msra.mxu0 0.0
    %1175 = vmatprep.subr.mxu0 0.0
    %1176 = vmatpush1.msra.mxu0 0.0
    %1177 = vmatprep.subr.mxu0 0.0
    %1178 = vmatpush1.msra.mxu0 0.0
    %1179 = vmatprep.subr.mxu0 0.0
    %1180 = vmatpush1.msra.mxu0 0.0
    %1181 = vmatprep.subr.mxu0 0.0
    %1182 = vmatpush1.msra.mxu0 0.0
    %1183 = vmatprep.subr.mxu0 0.0
    %1184 = vmatpush1.msra.mxu0 0.0
    %1185 = vmatprep.subr.mxu0 0.0
    %1186 = vmatpush1.msra.mxu0 0.0
    %1187 = vmatprep.subr.mxu0 0.0
    %1188 = vmatpush1.msra.mxu0 0.0
    %1189 = vmatprep.subr.mxu0 0.0
    %1190 = vmatpush1.msra.mxu0 0.0
    %1191 = vmatprep.subr.mxu0 0.0
    %1192 = vmatpush1.msra.mxu0 0.0
    %1193 = vmatprep.subr.mxu0 0.0
    %1194 = vmatpush1.msra.mxu0 0.0
    %1195 = vmatprep.subr.mxu0 0.0
    %1196 = vmatpush1.msra.mxu0 0.0
    %1197 = vmatprep.subr.mxu0 0.0
    %1198 = vmatpush1.msra.mxu0 0.0
    %1199 = vmatprep.subr.mxu0 0.0
    %1200 = vmatpush1.msra.mxu0 0.0
    %1201 = vmatprep.subr.mxu0 0.0
    %1202 = vmatpush1.msra.mxu0 0.0
    %1203 = vmatprep.subr.mxu0 0.0
    %1204 = vmatpush1.msra.mxu0 0.0
    %1205 = vmatprep.subr.mxu0 0.0
    %1206 = vmatpush1.msra.mxu0 0.0
    %1207 = vmatprep.subr.mxu0 0.0
    %1208 = vmatpush1.msra.mxu0 0.0
    %1209 = vmatprep.subr.mxu0 0.0
    %1210 = vmatpush1.msra.mxu0 0.0
    %1211 = vmatprep.subr.mxu0 0.0
    %1212 = vmatpush1.msra.mxu0 0.0
    %1213 = vmatprep.mubr.f32.mxu0 0.0
    %1214 = vmatmul.mubr.f32.gmra.mrb[0].mxu0 %v1147
    %v1215 = vpop.f32.mrb[0].mxu0
    %v1216 = vadd.f32 0.0, %v1215
    %v1217 = vpop.f32.mrb[0].mxu0
    %1218 = vdwg.mxu0
    %v1220 = vrot.slane %v1216, 2
    %v1222 = vadd.f32 %v263, %v1220
    %v1223 = vxor.u32 %v1222, 2147483648
    %v1224 = vmul.f32 %v1223, 1.442695
    %v1225 = vpow.pop %v1224
    %v1226 = vadd.f32 %v1225, 1.0
    %v1227 = vrcp.pop %v1226
    %v1228 = vmul.f32 1.0, %v1227
    %v1229 = vadd.f32 %v1216, %v361
    %v1231 = vrot.slane %v1229, 2
    %1232 = vrot.lane.b32.xlu0 %v1231, 64
    %v1233 = vpop.permute.xlu0 %1232
    %v1235 = vmul.f32 %v1228, %v1233
    %1237 = vrot.lane.b32.xlu0 %v1235, 64
    %v1238 = vpop.permute.xlu0 %1237
    %v1240 = vadd.f32 %v263, %v1238
    %v1241 = vtanh.pop %v1240
    %v1242 = vsub.f32 1.0, %v1228
    %v1243 = vrot.slane %v889, 2
    %1244 = vrot.lane.b32.xlu0 %v1243, 64
    %v1245 = vpop.permute.xlu0 %1244
    %v1247 = vsub.f32 %v1241, %v1245
    %1249 = vrot.lane.b32.xlu0 %v1247, 96
    %v1250 = vpop.permute.xlu0 %1249
    %v1252 = vmul.f32 %v1242, %v1250
    %v1254 = vrot.slane %v1252, 6
    %1255 = vrot.lane.b32.xlu0 %v1254, 96
    %v1256 = vpop.permute.xlu0 %1255
    %v1258 = vadd.f32 %v889, %v1256
    %1259 = vmatprep.subr.mxu0 0.0
    %1260 = vmatpush1.msra.mxu0 %v168
    %1261 = vmatprep.subr.mxu0 0.0
    %1262 = vmatpush1.msra.mxu0 %v169
    %1263 = vmatprep.subr.mxu0 0.0
    %1264 = vmatpush1.msra.mxu0 %v170
    %1265 = vmatprep.subr.mxu0 0.0
    %1266 = vmatpush1.msra.mxu0 %v171
    %1267 = vmatprep.subr.mxu0 0.0
    %1268 = vmatpush1.msra.mxu0 0.0
    %1269 = vmatprep.subr.mxu0 0.0
    %1270 = vmatpush1.msra.mxu0 0.0
    %1271 = vmatprep.subr.mxu0 0.0
    %1272 = vmatpush1.msra.mxu0 0.0
    %1273 = vmatprep.subr.mxu0 0.0
    %1274 = vmatpush1.msra.mxu0 0.0
    %1275 = vmatprep.subr.mxu0 0.0
    %1276 = vmatpush1.msra.mxu0 0.0
    %1277 = vmatprep.subr.mxu0 0.0
    %1278 = vmatpush1.msra.mxu0 0.0
    %1279 = vmatprep.subr.mxu0 0.0
    %1280 = vmatpush1.msra.mxu0 0.0
    %1281 = vmatprep.subr.mxu0 0.0
    %1282 = vmatpush1.msra.mxu0 0.0
    %1283 = vmatprep.subr.mxu0 0.0
    %1284 = vmatpush1.msra.mxu0 0.0
    %1285 = vmatprep.subr.mxu0 0.0
    %1286 = vmatpush1.msra.mxu0 0.0
    %1287 = vmatprep.subr.mxu0 0.0
    %1288 = vmatpush1.msra.mxu0 0.0
    %1289 = vmatprep.subr.mxu0 0.0
    %1290 = vmatpush1.msra.mxu0 0.0
    %1291 = vmatprep.subr.mxu0 0.0
    %1292 = vmatpush1.msra.mxu0 0.0
    %1293 = vmatprep.subr.mxu0 0.0
    %1294 = vmatpush1.msra.mxu0 0.0
    %1295 = vmatprep.subr.mxu0 0.0
    %1296 = vmatpush1.msra.mxu0 0.0
    %1297 = vmatprep.subr.mxu0 0.0
    %1298 = vmatpush1.msra.mxu0 0.0
    %1299 = vmatprep.subr.mxu0 0.0
    %1300 = vmatpush1.msra.mxu0 0.0
    %1301 = vmatprep.subr.mxu0 0.0
    %1302 = vmatpush1.msra.mxu0 0.0
    %1303 = vmatprep.subr.mxu0 0.0
    %1304 = vmatpush1.msra.mxu0 0.0
    %1305 = vmatprep.subr.mxu0 0.0
    %1306 = vmatpush1.msra.mxu0 0.0
    %1307 = vmatprep.subr.mxu0 0.0
    %1308 = vmatpush1.msra.mxu0 0.0
    %1309 = vmatprep.subr.mxu0 0.0
    %1310 = vmatpush1.msra.mxu0 0.0
    %1311 = vmatprep.subr.mxu0 0.0
    %1312 = vmatpush1.msra.mxu0 0.0
    %1313 = vmatprep.subr.mxu0 0.0
    %1314 = vmatpush1.msra.mxu0 0.0
    %1315 = vmatprep.subr.mxu0 0.0
    %1316 = vmatpush1.msra.mxu0 0.0
    %1317 = vmatprep.subr.mxu0 0.0
    %1318 = vmatpush1.msra.mxu0 0.0
    %1319 = vmatprep.subr.mxu0 0.0
    %1320 = vmatpush1.msra.mxu0 0.0
    %1321 = vmatprep.subr.mxu0 0.0
    %1322 = vmatpush1.msra.mxu0 0.0
    %1323 = vmatprep.mubr.f32.mxu0 0.0
    %1324 = vmatmul.mubr.f32.gmra.mrb[0].mxu0 %v1147
    %v1325 = vpop.f32.mrb[0].mxu0
    %v1326 = vadd.f32 %v507, %v1325
    %v1327 = vpop.f32.mrb[0].mxu0
    %1328 = vdwg.mxu0
    %1329 = vmatprep.subr.mxu0 0.0
    %1330 = vmatpush1.msra.mxu0 %v172
    %1331 = vmatprep.subr.mxu0 0.0
    %1332 = vmatpush1.msra.mxu0 %v173
    %1333 = vmatprep.subr.mxu0 0.0
    %1334 = vmatpush1.msra.mxu0 %v174
    %1335 = vmatprep.subr.mxu0 0.0
    %1336 = vmatpush1.msra.mxu0 %v175
    %1337 = vmatprep.subr.mxu0 0.0
    %1338 = vmatpush1.msra.mxu0 0.0
    %1339 = vmatprep.subr.mxu0 0.0
    %1340 = vmatpush1.msra.mxu0 0.0
    %1341 = vmatprep.subr.mxu0 0.0
    %1342 = vmatpush1.msra.mxu0 0.0
    %1343 = vmatprep.subr.mxu0 0.0
    %1344 = vmatpush1.msra.mxu0 0.0
    %1345 = vmatprep.subr.mxu0 0.0
    %1346 = vmatpush1.msra.mxu0 0.0
    %1347 = vmatprep.subr.mxu0 0.0
    %1348 = vmatpush1.msra.mxu0 0.0
    %1349 = vmatprep.subr.mxu0 0.0
    %1350 = vmatpush1.msra.mxu0 0.0
    %1351 = vmatprep.subr.mxu0 0.0
    %1352 = vmatpush1.msra.mxu0 0.0
    %1353 = vmatprep.subr.mxu0 0.0
    %1354 = vmatpush1.msra.mxu0 0.0
    %1355 = vmatprep.subr.mxu0 0.0
    %1356 = vmatpush1.msra.mxu0 0.0
    %1357 = vmatprep.subr.mxu0 0.0
    %1358 = vmatpush1.msra.mxu0 0.0
    %1359 = vmatprep.subr.mxu0 0.0
    %1360 = vmatpush1.msra.mxu0 0.0
    %1361 = vmatprep.subr.mxu0 0.0
    %1362 = vmatpush1.msra.mxu0 0.0
    %1363 = vmatprep.subr.mxu0 0.0
    %1364 = vmatpush1.msra.mxu0 0.0
    %1365 = vmatprep.subr.mxu0 0.0
    %1366 = vmatpush1.msra.mxu0 0.0
    %1367 = vmatprep.subr.mxu0 0.0
    %1368 = vmatpush1.msra.mxu0 0.0
    %1369 = vmatprep.subr.mxu0 0.0
    %1370 = vmatpush1.msra.mxu0 0.0
    %1371 = vmatprep.subr.mxu0 0.0
    %1372 = vmatpush1.msra.mxu0 0.0
    %1373 = vmatprep.subr.mxu0 0.0
    %1374 = vmatpush1.msra.mxu0 0.0
    %1375 = vmatprep.subr.mxu0 0.0
    %1376 = vmatpush1.msra.mxu0 0.0
    %1377 = vmatprep.subr.mxu0 0.0
    %1378 = vmatpush1.msra.mxu0 0.0
    %1379 = vmatprep.subr.mxu0 0.0
    %1380 = vmatpush1.msra.mxu0 0.0
    %1381 = vmatprep.subr.mxu0 0.0
    %1382 = vmatpush1.msra.mxu0 0.0
    %1383 = vmatprep.subr.mxu0 0.0
    %1384 = vmatpush1.msra.mxu0 0.0
    %1385 = vmatprep.subr.mxu0 0.0
    %1386 = vmatpush1.msra.mxu0 0.0
    %1387 = vmatprep.subr.mxu0 0.0
    %1388 = vmatpush1.msra.mxu0 0.0
    %1389 = vmatprep.subr.mxu0 0.0
    %1390 = vmatpush1.msra.mxu0 0.0
    %1391 = vmatprep.subr.mxu0 0.0
    %1392 = vmatpush1.msra.mxu0 0.0
    %1393 = vmatprep.mubr.f32.mxu0 0.0
    %1394 = vmatmul.mubr.f32.gmra.mrb[0].mxu0 %v1065
    %v1395 = vpop.f32.mrb[0].mxu0
    %v1396 = vadd.f32 0.0, %v1395
    %v1397 = vpop.f32.mrb[0].mxu0
    %1398 = vdwg.mxu0
    %v1399 = vadd.f32 %v1326, %v1396
    %v1400 = vxor.u32 %v1399, 2147483648
    %v1401 = vmul.f32 %v1400, 1.442695
    %v1402 = vpow.pop %v1401
    %v1403 = vadd.f32 %v1402, 1.0
    %v1404 = vrcp.pop %v1403
    %v1405 = vmul.f32 1.0, %v1404
    %v1406 = vadd.f32 %v1396, %v660
    %1408 = vrot.lane.b32.xlu0 %v1406, 64
    %v1409 = vpop.permute.xlu0 %1408
    %v1411 = vmul.f32 %v1405, %v1409
    %1413 = vrot.lane.b32.xlu0 %v1411, 64
    %v1414 = vpop.permute.xlu0 %1413
    %v1416 = vadd.f32 %v1326, %v1414
    %v1417 = vtanh.pop %v1416
    %v1418 = vsub.f32 1.0, %v1405
    %1419 = vrot.lane.b32.xlu0 %v1063, 64
    %v1420 = vpop.permute.xlu0 %1419
    %v1422 = vsub.f32 %v1417, %v1420
    %1424 = vrot.lane.b32.xlu0 %v1422, 96
    %v1425 = vpop.permute.xlu0 %1424
    %v1427 = vmul.f32 %v1418, %v1425
    %1429 = vrot.lane.b32.xlu0 %v1427, 96
    %v1430 = vpop.permute.xlu0 %1429
    %v1432 = vadd.f32 %v1063, %v1430
    %v1434 = vsel %vm189, %v1432, 0
    %1436 = vmatprep.subr.mxu0 0.0
    %1437 = vmatpush1.msra.mxu0 %v271
    %1438 = vmatprep.subr.mxu0 0.0
    %1439 = vmatpush1.msra.mxu0 %v272
    %1440 = vmatprep.subr.mxu0 0.0
    %1441 = vmatpush1.msra.mxu0 %v273
    %1442 = vmatprep.subr.mxu0 0.0
    %1443 = vmatpush1.msra.mxu0 %v274
    %1444 = vmatprep.subr.mxu0 0.0
    %1445 = vmatpush1.msra.mxu0 0.0
    %1446 = vmatprep.subr.mxu0 0.0
    %1447 = vmatpush1.msra.mxu0 0.0
    %1448 = vmatprep.subr.mxu0 0.0
    %1449 = vmatpush1.msra.mxu0 0.0
    %1450 = vmatprep.subr.mxu0 0.0
    %1451 = vmatpush1.msra.mxu0 0.0
    %1452 = vmatprep.subr.mxu0 0.0
    %1453 = vmatpush1.msra.mxu0 0.0
    %1454 = vmatprep.subr.mxu0 0.0
    %1455 = vmatpush1.msra.mxu0 0.0
    %1456 = vmatprep.subr.mxu0 0.0
    %1457 = vmatpush1.msra.mxu0 0.0
    %1458 = vmatprep.subr.mxu0 0.0
    %1459 = vmatpush1.msra.mxu0 0.0
    %1460 = vmatprep.subr.mxu0 0.0
    %1461 = vmatpush1.msra.mxu0 0.0
    %1462 = vmatprep.subr.mxu0 0.0
    %1463 = vmatpush1.msra.mxu0 0.0
    %1464 = vmatprep.subr.mxu0 0.0
    %1465 = vmatpush1.msra.mxu0 0.0
    %1466 = vmatprep.subr.mxu0 0.0
    %1467 = vmatpush1.msra.mxu0 0.0
    %1468 = vmatprep.subr.mxu0 0.0
    %1469 = vmatpush1.msra.mxu0 0.0
    %1470 = vmatprep.subr.mxu0 0.0
    %1471 = vmatpush1.msra.mxu0 0.0
    %1472 = vmatprep.subr.mxu0 0.0
    %1473 = vmatpush1.msra.mxu0 0.0
    %1474 = vmatprep.subr.mxu0 0.0
    %1475 = vmatpush1.msra.mxu0 0.0
    %1476 = vmatprep.subr.mxu0 0.0
    %1477 = vmatpush1.msra.mxu0 0.0
    %1478 = vmatprep.subr.mxu0 0.0
    %1479 = vmatpush1.msra.mxu0 0.0
    %1480 = vmatprep.subr.mxu0 0.0
    %1481 = vmatpush1.msra.mxu0 0.0
    %1482 = vmatprep.subr.mxu0 0.0
    %1483 = vmatpush1.msra.mxu0 0.0
    %1484 = vmatprep.subr.mxu0 0.0
    %1485 = vmatpush1.msra.mxu0 0.0
    %1486 = vmatprep.subr.mxu0 0.0
    %1487 = vmatpush1.msra.mxu0 0.0
    %1488 = vmatprep.subr.mxu0 0.0
    %1489 = vmatpush1.msra.mxu0 0.0
    %1490 = vmatprep.subr.mxu0 0.0
    %1491 = vmatpush1.msra.mxu0 0.0
    %1492 = vmatprep.subr.mxu0 0.0
    %1493 = vmatpush1.msra.mxu0 0.0
    %1494 = vmatprep.subr.mxu0 0.0
    %1495 = vmatpush1.msra.mxu0 0.0
    %1496 = vmatprep.subr.mxu0 0.0
    %1497 = vmatpush1.msra.mxu0 0.0
    %1498 = vmatprep.subr.mxu0 0.0
    %1499 = vmatpush1.msra.mxu0 0.0
    %1500 = vmatprep.mubr.f32.mxu0 0.0
    %1501 = vmatmul.mubr.f32.gmra.mrb[0].mxu0 %v1434
    %v1502 = vpop.f32.mrb[0].mxu0
    %v1503 = vadd.f32 %v693, %v1502
    %v1504 = vpop.f32.mrb[0].mxu0
    %1505 = vdwg.mxu0
    %vm1506 = vcmp.gt.s32.totalorder %v276, 2
    %v1507 = vsel %vm1506, 1.0, 0.0
    %1509 = vset.pattern.permute.xlu0 0
    %1510 = vperm.xlu0 %1509, %v1507
    %v1511 = vpop.permute.xlu0 %1510
    %v1513 = vmul.f32 %v1503, %v1511
    %1514 = vst [vmem:[#allocation2 + $0x4] sm:$0x3] %v1513
    %v1516 = vsel %vm189, %v1258, 0
    %1518 = vmatprep.subr.mxu0 0.0
    %1519 = vmatpush1.msra.mxu0 %v157
    %1520 = vmatprep.subr.mxu0 0.0
    %1521 = vmatpush1.msra.mxu0 %v158
    %1522 = vmatprep.subr.mxu0 0.0
    %1523 = vmatpush1.msra.mxu0 %v159
    %1524 = vmatprep.subr.mxu0 0.0
    %1525 = vmatpush1.msra.mxu0 %v160
    %1526 = vmatprep.subr.mxu0 0.0
    %1527 = vmatpush1.msra.mxu0 0.0
    %1528 = vmatprep.subr.mxu0 0.0
    %1529 = vmatpush1.msra.mxu0 0.0
    %1530 = vmatprep.subr.mxu0 0.0
    %1531 = vmatpush1.msra.mxu0 0.0
    %1532 = vmatprep.subr.mxu0 0.0
    %1533 = vmatpush1.msra.mxu0 0.0
    %1534 = vmatprep.subr.mxu0 0.0
    %1535 = vmatpush1.msra.mxu0 0.0
    %1536 = vmatprep.subr.mxu0 0.0
    %1537 = vmatpush1.msra.mxu0 0.0
    %1538 = vmatprep.subr.mxu0 0.0
    %1539 = vmatpush1.msra.mxu0 0.0
    %1540 = vmatprep.subr.mxu0 0.0
    %1541 = vmatpush1.msra.mxu0 0.0
    %1542 = vmatprep.subr.mxu0 0.0
    %1543 = vmatpush1.msra.mxu0 0.0
    %1544 = vmatprep.subr.mxu0 0.0
    %1545 = vmatpush1.msra.mxu0 0.0
    %1546 = vmatprep.subr.mxu0 0.0
    %1547 = vmatpush1.msra.mxu0 0.0
    %1548 = vmatprep.subr.mxu0 0.0
    %1549 = vmatpush1.msra.mxu0 0.0
    %1550 = vmatprep.subr.mxu0 0.0
    %1551 = vmatpush1.msra.mxu0 0.0
    %1552 = vmatprep.subr.mxu0 0.0
    %1553 = vmatpush1.msra.mxu0 0.0
    %1554 = vmatprep.subr.mxu0 0.0
    %1555 = vmatpush1.msra.mxu0 0.0
    %1556 = vmatprep.subr.mxu0 0.0
    %1557 = vmatpush1.msra.mxu0 0.0
    %1558 = vmatprep.subr.mxu0 0.0
    %1559 = vmatpush1.msra.mxu0 0.0
    %1560 = vmatprep.subr.mxu0 0.0
    %1561 = vmatpush1.msra.mxu0 0.0
    %1562 = vmatprep.subr.mxu0 0.0
    %1563 = vmatpush1.msra.mxu0 0.0
    %1564 = vmatprep.subr.mxu0 0.0
    %1565 = vmatpush1.msra.mxu0 0.0
    %1566 = vmatprep.subr.mxu0 0.0
    %1567 = vmatpush1.msra.mxu0 0.0
    %1568 = vmatprep.subr.mxu0 0.0
    %1569 = vmatpush1.msra.mxu0 0.0
    %1570 = vmatprep.subr.mxu0 0.0
    %1571 = vmatpush1.msra.mxu0 0.0
    %1572 = vmatprep.subr.mxu0 0.0
    %1573 = vmatpush1.msra.mxu0 0.0
    %1574 = vmatprep.subr.mxu0 0.0
    %1575 = vmatpush1.msra.mxu0 0.0
    %1576 = vmatprep.subr.mxu0 0.0
    %1577 = vmatpush1.msra.mxu0 0.0
    %1578 = vmatprep.subr.mxu0 0.0
    %1579 = vmatpush1.msra.mxu0 0.0
    %1580 = vmatprep.subr.mxu0 0.0
    %1581 = vmatpush1.msra.mxu0 0.0
    %1582 = vmatprep.mubr.f32.mxu0 0.0
    %1583 = vmatmul.mubr.f32.gmra.mrb[0].mxu0 %v1516
    %v1584 = vpop.f32.mrb[0].mxu0
    %v1585 = vadd.f32 0.0, %v1584
    %v1586 = vpop.f32.mrb[0].mxu0
    %1587 = vdwg.mxu0
    %v1588 = vadd.f32 %v268, %v1585
    %v1589 = vxor.u32 %v1588, 2147483648
    %v1590 = vmul.f32 %v1589, 1.442695
    %v1591 = vpow.pop %v1590
    %v1592 = vadd.f32 %v1591, 1.0
    %v1593 = vrcp.pop %v1592
    %v1594 = vmul.f32 1.0, %v1593
    %v1595 = vadd.f32 %v1585, %v361
    %1597 = vrot.lane.b32.xlu0 %v1595, 64
    %v1598 = vpop.permute.xlu0 %1597
    %v1600 = vmul.f32 %v1594, %v1598
    %1602 = vrot.lane.b32.xlu0 %v1600, 64
    %v1603 = vpop.permute.xlu0 %1602
    %v1605 = vadd.f32 %v268, %v1603
    %v1606 = vtanh.pop %v1605
    %v1607 = vsub.f32 1.0, %v1594
    %1608 = vrot.lane.b32.xlu0 %v1258, 64
    %v1609 = vpop.permute.xlu0 %1608
    %v1611 = vsub.f32 %v1606, %v1609
    %1613 = vrot.lane.b32.xlu0 %v1611, 96
    %v1614 = vpop.permute.xlu0 %1613
    %v1616 = vmul.f32 %v1607, %v1614
    %1618 = vrot.lane.b32.xlu0 %v1616, 96
    %v1619 = vpop.permute.xlu0 %1618
    %v1621 = vadd.f32 %v1258, %v1619
    %1622 = vmatprep.subr.mxu0 0.0
    %1623 = vmatpush1.msra.mxu0 %v168
    %1624 = vmatprep.subr.mxu0 0.0
    %1625 = vmatpush1.msra.mxu0 %v169
    %1626 = vmatprep.subr.mxu0 0.0
    %1627 = vmatpush1.msra.mxu0 %v170
    %1628 = vmatprep.subr.mxu0 0.0
    %1629 = vmatpush1.msra.mxu0 %v171
    %1630 = vmatprep.subr.mxu0 0.0
    %1631 = vmatpush1.msra.mxu0 0.0
    %1632 = vmatprep.subr.mxu0 0.0
    %1633 = vmatpush1.msra.mxu0 0.0
    %1634 = vmatprep.subr.mxu0 0.0
    %1635 = vmatpush1.msra.mxu0 0.0
    %1636 = vmatprep.subr.mxu0 0.0
    %1637 = vmatpush1.msra.mxu0 0.0
    %1638 = vmatprep.subr.mxu0 0.0
    %1639 = vmatpush1.msra.mxu0 0.0
    %1640 = vmatprep.subr.mxu0 0.0
    %1641 = vmatpush1.msra.mxu0 0.0
    %1642 = vmatprep.subr.mxu0 0.0
    %1643 = vmatpush1.msra.mxu0 0.0
    %1644 = vmatprep.subr.mxu0 0.0
    %1645 = vmatpush1.msra.mxu0 0.0
    %1646 = vmatprep.subr.mxu0 0.0
    %1647 = vmatpush1.msra.mxu0 0.0
    %1648 = vmatprep.subr.mxu0 0.0
    %1649 = vmatpush1.msra.mxu0 0.0
    %1650 = vmatprep.subr.mxu0 0.0
    %1651 = vmatpush1.msra.mxu0 0.0
    %1652 = vmatprep.subr.mxu0 0.0
    %1653 = vmatpush1.msra.mxu0 0.0
    %1654 = vmatprep.subr.mxu0 0.0
    %1655 = vmatpush1.msra.mxu0 0.0
    %1656 = vmatprep.subr.mxu0 0.0
    %1657 = vmatpush1.msra.mxu0 0.0
    %1658 = vmatprep.subr.mxu0 0.0
    %1659 = vmatpush1.msra.mxu0 0.0
    %1660 = vmatprep.subr.mxu0 0.0
    %1661 = vmatpush1.msra.mxu0 0.0
    %1662 = vmatprep.subr.mxu0 0.0
    %1663 = vmatpush1.msra.mxu0 0.0
    %1664 = vmatprep.subr.mxu0 0.0
    %1665 = vmatpush1.msra.mxu0 0.0
    %1666 = vmatprep.subr.mxu0 0.0
    %1667 = vmatpush1.msra.mxu0 0.0
    %1668 = vmatprep.subr.mxu0 0.0
    %1669 = vmatpush1.msra.mxu0 0.0
    %1670 = vmatprep.subr.mxu0 0.0
    %1671 = vmatpush1.msra.mxu0 0.0
    %1672 = vmatprep.subr.mxu0 0.0
    %1673 = vmatpush1.msra.mxu0 0.0
    %1674 = vmatprep.subr.mxu0 0.0
    %1675 = vmatpush1.msra.mxu0 0.0
    %1676 = vmatprep.subr.mxu0 0.0
    %1677 = vmatpush1.msra.mxu0 0.0
    %1678 = vmatprep.subr.mxu0 0.0
    %1679 = vmatpush1.msra.mxu0 0.0
    %1680 = vmatprep.subr.mxu0 0.0
    %1681 = vmatpush1.msra.mxu0 0.0
    %1682 = vmatprep.subr.mxu0 0.0
    %1683 = vmatpush1.msra.mxu0 0.0
    %1684 = vmatprep.subr.mxu0 0.0
    %1685 = vmatpush1.msra.mxu0 0.0
    %1686 = vmatprep.mubr.f32.mxu0 0.0
    %1687 = vmatmul.mubr.f32.gmra.mrb[0].mxu0 %v1516
    %v1688 = vpop.f32.mrb[0].mxu0
    %v1689 = vadd.f32 %v507, %v1688
    %v1690 = vpop.f32.mrb[0].mxu0
    %1691 = vdwg.mxu0
    %1692 = vmatprep.subr.mxu0 0.0
    %1693 = vmatpush1.msra.mxu0 %v172
    %1694 = vmatprep.subr.mxu0 0.0
    %1695 = vmatpush1.msra.mxu0 %v173
    %1696 = vmatprep.subr.mxu0 0.0
    %1697 = vmatpush1.msra.mxu0 %v174
    %1698 = vmatprep.subr.mxu0 0.0
    %1699 = vmatpush1.msra.mxu0 %v175
    %1700 = vmatprep.subr.mxu0 0.0
    %1701 = vmatpush1.msra.mxu0 0.0
    %1702 = vmatprep.subr.mxu0 0.0
    %1703 = vmatpush1.msra.mxu0 0.0
    %1704 = vmatprep.subr.mxu0 0.0
    %1705 = vmatpush1.msra.mxu0 0.0
    %1706 = vmatprep.subr.mxu0 0.0
    %1707 = vmatpush1.msra.mxu0 0.0
    %1708 = vmatprep.subr.mxu0 0.0
    %1709 = vmatpush1.msra.mxu0 0.0
    %1710 = vmatprep.subr.mxu0 0.0
    %1711 = vmatpush1.msra.mxu0 0.0
    %1712 = vmatprep.subr.mxu0 0.0
    %1713 = vmatpush1.msra.mxu0 0.0
    %1714 = vmatprep.subr.mxu0 0.0
    %1715 = vmatpush1.msra.mxu0 0.0
    %1716 = vmatprep.subr.mxu0 0.0
    %1717 = vmatpush1.msra.mxu0 0.0
    %1718 = vmatprep.subr.mxu0 0.0
    %1719 = vmatpush1.msra.mxu0 0.0
    %1720 = vmatprep.subr.mxu0 0.0
    %1721 = vmatpush1.msra.mxu0 0.0
    %1722 = vmatprep.subr.mxu0 0.0
    %1723 = vmatpush1.msra.mxu0 0.0
    %1724 = vmatprep.subr.mxu0 0.0
    %1725 = vmatpush1.msra.mxu0 0.0
    %1726 = vmatprep.subr.mxu0 0.0
    %1727 = vmatpush1.msra.mxu0 0.0
    %1728 = vmatprep.subr.mxu0 0.0
    %1729 = vmatpush1.msra.mxu0 0.0
    %1730 = vmatprep.subr.mxu0 0.0
    %1731 = vmatpush1.msra.mxu0 0.0
    %1732 = vmatprep.subr.mxu0 0.0
    %1733 = vmatpush1.msra.mxu0 0.0
    %1734 = vmatprep.subr.mxu0 0.0
    %1735 = vmatpush1.msra.mxu0 0.0
    %1736 = vmatprep.subr.mxu0 0.0
    %1737 = vmatpush1.msra.mxu0 0.0
    %1738 = vmatprep.subr.mxu0 0.0
    %1739 = vmatpush1.msra.mxu0 0.0
    %1740 = vmatprep.subr.mxu0 0.0
    %1741 = vmatpush1.msra.mxu0 0.0
    %1742 = vmatprep.subr.mxu0 0.0
    %1743 = vmatpush1.msra.mxu0 0.0
    %1744 = vmatprep.subr.mxu0 0.0
    %1745 = vmatpush1.msra.mxu0 0.0
    %1746 = vmatprep.subr.mxu0 0.0
    %1747 = vmatpush1.msra.mxu0 0.0
    %1748 = vmatprep.subr.mxu0 0.0
    %1749 = vmatpush1.msra.mxu0 0.0
    %1750 = vmatprep.subr.mxu0 0.0
    %1751 = vmatpush1.msra.mxu0 0.0
    %1752 = vmatprep.subr.mxu0 0.0
    %1753 = vmatpush1.msra.mxu0 0.0
    %1754 = vmatprep.subr.mxu0 0.0
    %1755 = vmatpush1.msra.mxu0 0.0
    %1756 = vmatprep.mubr.f32.mxu0 0.0
    %1757 = vmatmul.mubr.f32.gmra.mrb[0].mxu0 %v1434
    %v1758 = vpop.f32.mrb[0].mxu0
    %v1759 = vadd.f32 0.0, %v1758
    %v1760 = vpop.f32.mrb[0].mxu0
    %1761 = vdwg.mxu0
    %v1762 = vadd.f32 %v1689, %v1759
    %v1763 = vxor.u32 %v1762, 2147483648
    %v1764 = vmul.f32 %v1763, 1.442695
    %v1765 = vpow.pop %v1764
    %v1766 = vadd.f32 %v1765, 1.0
    %v1767 = vrcp.pop %v1766
    %v1768 = vmul.f32 1.0, %v1767
    %v1769 = vadd.f32 %v1759, %v660
    %1771 = vrot.lane.b32.xlu0 %v1769, 64
    %v1772 = vpop.permute.xlu0 %1771
    %v1774 = vmul.f32 %v1768, %v1772
    %1776 = vrot.lane.b32.xlu0 %v1774, 64
    %v1777 = vpop.permute.xlu0 %1776
    %v1779 = vadd.f32 %v1689, %v1777
    %v1780 = vtanh.pop %v1779
    %v1781 = vsub.f32 1.0, %v1768
    %1782 = vrot.lane.b32.xlu0 %v1432, 64
    %v1783 = vpop.permute.xlu0 %1782
    %v1785 = vsub.f32 %v1780, %v1783
    %1787 = vrot.lane.b32.xlu0 %v1785, 96
    %v1788 = vpop.permute.xlu0 %1787
    %v1790 = vmul.f32 %v1781, %v1788
    %1792 = vrot.lane.b32.xlu0 %v1790, 96
    %v1793 = vpop.permute.xlu0 %1792
    %v1795 = vadd.f32 %v1432, %v1793
    %v1797 = vsel %vm189, %v1795, 0
    %1799 = vmatprep.subr.mxu0 0.0
    %1800 = vmatpush1.msra.mxu0 %v271
    %1801 = vmatprep.subr.mxu0 0.0
    %1802 = vmatpush1.msra.mxu0 %v272
    %1803 = vmatprep.subr.mxu0 0.0
    %1804 = vmatpush1.msra.mxu0 %v273
    %1805 = vmatprep.subr.mxu0 0.0
    %1806 = vmatpush1.msra.mxu0 %v274
    %1807 = vmatprep.subr.mxu0 0.0
    %1808 = vmatpush1.msra.mxu0 0.0
    %1809 = vmatprep.subr.mxu0 0.0
    %1810 = vmatpush1.msra.mxu0 0.0
    %1811 = vmatprep.subr.mxu0 0.0
    %1812 = vmatpush1.msra.mxu0 0.0
    %1813 = vmatprep.subr.mxu0 0.0
    %1814 = vmatpush1.msra.mxu0 0.0
    %1815 = vmatprep.subr.mxu0 0.0
    %1816 = vmatpush1.msra.mxu0 0.0
    %1817 = vmatprep.subr.mxu0 0.0
    %1818 = vmatpush1.msra.mxu0 0.0
    %1819 = vmatprep.subr.mxu0 0.0
    %1820 = vmatpush1.msra.mxu0 0.0
    %1821 = vmatprep.subr.mxu0 0.0
    %1822 = vmatpush1.msra.mxu0 0.0
    %1823 = vmatprep.subr.mxu0 0.0
    %1824 = vmatpush1.msra.mxu0 0.0
    %1825 = vmatprep.subr.mxu0 0.0
    %1826 = vmatpush1.msra.mxu0 0.0
    %1827 = vmatprep.subr.mxu0 0.0
    %1828 = vmatpush1.msra.mxu0 0.0
    %1829 = vmatprep.subr.mxu0 0.0
    %1830 = vmatpush1.msra.mxu0 0.0
    %1831 = vmatprep.subr.mxu0 0.0
    %1832 = vmatpush1.msra.mxu0 0.0
    %1833 = vmatprep.subr.mxu0 0.0
    %1834 = vmatpush1.msra.mxu0 0.0
    %1835 = vmatprep.subr.mxu0 0.0
    %1836 = vmatpush1.msra.mxu0 0.0
    %1837 = vmatprep.subr.mxu0 0.0
    %1838 = vmatpush1.msra.mxu0 0.0
    %1839 = vmatprep.subr.mxu0 0.0
    %1840 = vmatpush1.msra.mxu0 0.0
    %1841 = vmatprep.subr.mxu0 0.0
    %1842 = vmatpush1.msra.mxu0 0.0
    %1843 = vmatprep.subr.mxu0 0.0
    %1844 = vmatpush1.msra.mxu0 0.0
    %1845 = vmatprep.subr.mxu0 0.0
    %1846 = vmatpush1.msra.mxu0 0.0
    %1847 = vmatprep.subr.mxu0 0.0
    %1848 = vmatpush1.msra.mxu0 0.0
    %1849 = vmatprep.subr.mxu0 0.0
    %1850 = vmatpush1.msra.mxu0 0.0
    %1851 = vmatprep.subr.mxu0 0.0
    %1852 = vmatpush1.msra.mxu0 0.0
    %1853 = vmatprep.subr.mxu0 0.0
    %1854 = vmatpush1.msra.mxu0 0.0
    %1855 = vmatprep.subr.mxu0 0.0
    %1856 = vmatpush1.msra.mxu0 0.0
    %1857 = vmatprep.subr.mxu0 0.0
    %1858 = vmatpush1.msra.mxu0 0.0
    %1859 = vmatprep.subr.mxu0 0.0
    %1860 = vmatpush1.msra.mxu0 0.0
    %1861 = vmatprep.subr.mxu0 0.0
    %1862 = vmatpush1.msra.mxu0 0.0
    %1863 = vmatprep.mubr.f32.mxu0 0.0
    %1864 = vmatmul.mubr.f32.gmra.mrb[0].mxu0 %v1797
    %v1865 = vpop.f32.mrb[0].mxu0
    %v1866 = vadd.f32 %v693, %v1865
    %v1867 = vpop.f32.mrb[0].mxu0
    %1868 = vdwg.mxu0
    %vm1869 = vcmp.gt.s32.totalorder %v276, 3
    %v1870 = vsel %vm1869, 1.0, 0.0
    %1872 = vset.pattern.permute.xlu0 0
    %1873 = vperm.xlu0 %1872, %v1870
    %v1874 = vpop.permute.xlu0 %1873
    %v1876 = vmul.f32 %v1866, %v1874
    %1877 = vst [vmem:[#allocation2 + $0x6] sm:$0x3] %v1876
    %v1879 = vsel %vm189, %v1621, 0
    %1881 = vmatprep.subr.mxu0 0.0
    %1882 = vmatpush1.msra.mxu0 %v157
    %1883 = vmatprep.subr.mxu0 0.0
    %1884 = vmatpush1.msra.mxu0 %v158
    %1885 = vmatprep.subr.mxu0 0.0
    %1886 = vmatpush1.msra.mxu0 %v159
    %1887 = vmatprep.subr.mxu0 0.0
    %1888 = vmatpush1.msra.mxu0 %v160
    %1889 = vmatprep.subr.mxu0 0.0
    %1890 = vmatpush1.msra.mxu0 0.0
    %1891 = vmatprep.subr.mxu0 0.0
    %1892 = vmatpush1.msra.mxu0 0.0
    %1893 = vmatprep.subr.mxu0 0.0
    %1894 = vmatpush1.msra.mxu0 0.0
    %1895 = vmatprep.subr.mxu0 0.0
    %1896 = vmatpush1.msra.mxu0 0.0
    %1897 = vmatprep.subr.mxu0 0.0
    %1898 = vmatpush1.msra.mxu0 0.0
    %1899 = vmatprep.subr.mxu0 0.0
    %1900 = vmatpush1.msra.mxu0 0.0
    %1901 = vmatprep.subr.mxu0 0.0
    %1902 = vmatpush1.msra.mxu0 0.0
    %1903 = vmatprep.subr.mxu0 0.0
    %1904 = vmatpush1.msra.mxu0 0.0
    %1905 = vmatprep.subr.mxu0 0.0
    %1906 = vmatpush1.msra.mxu0 0.0
    %1907 = vmatprep.subr.mxu0 0.0
    %1908 = vmatpush1.msra.mxu0 0.0
    %1909 = vmatprep.subr.mxu0 0.0
    %1910 = vmatpush1.msra.mxu0 0.0
    %1911 = vmatprep.subr.mxu0 0.0
    %1912 = vmatpush1.msra.mxu0 0.0
    %1913 = vmatprep.subr.mxu0 0.0
    %1914 = vmatpush1.msra.mxu0 0.0
    %1915 = vmatprep.subr.mxu0 0.0
    %1916 = vmatpush1.msra.mxu0 0.0
    %1917 = vmatprep.subr.mxu0 0.0
    %1918 = vmatpush1.msra.mxu0 0.0
    %1919 = vmatprep.subr.mxu0 0.0
    %1920 = vmatpush1.msra.mxu0 0.0
    %1921 = vmatprep.subr.mxu0 0.0
    %1922 = vmatpush1.msra.mxu0 0.0
    %1923 = vmatprep.subr.mxu0 0.0
    %1924 = vmatpush1.msra.mxu0 0.0
    %1925 = vmatprep.subr.mxu0 0.0
    %1926 = vmatpush1.msra.mxu0 0.0
    %1927 = vmatprep.subr.mxu0 0.0
    %1928 = vmatpush1.msra.mxu0 0.0
    %1929 = vmatprep.subr.mxu0 0.0
    %1930 = vmatpush1.msra.mxu0 0.0
    %1931 = vmatprep.subr.mxu0 0.0
    %1932 = vmatpush1.msra.mxu0 0.0
    %1933 = vmatprep.subr.mxu0 0.0
    %1934 = vmatpush1.msra.mxu0 0.0
    %1935 = vmatprep.subr.mxu0 0.0
    %1936 = vmatpush1.msra.mxu0 0.0
    %1937 = vmatprep.subr.mxu0 0.0
    %1938 = vmatpush1.msra.mxu0 0.0
    %1939 = vmatprep.subr.mxu0 0.0
    %1940 = vmatpush1.msra.mxu0 0.0
    %1941 = vmatprep.subr.mxu0 0.0
    %1942 = vmatpush1.msra.mxu0 0.0
    %1943 = vmatprep.subr.mxu0 0.0
    %1944 = vmatpush1.msra.mxu0 0.0
    %1945 = vmatprep.mubr.f32.mxu0 0.0
    %1946 = vmatmul.mubr.f32.gmra.mrb[0].mxu0 %v1879
    %v1947 = vpop.f32.mrb[0].mxu0
    %v1948 = vadd.f32 0.0, %v1947
    %v1949 = vpop.f32.mrb[0].mxu0
    %1950 = vdwg.mxu0
    %v1952 = vrot.slane %v1948, 6
    %v1954 = vadd.f32 %v268, %v1952
    %v1955 = vxor.u32 %v1954, 2147483648
    %v1956 = vmul.f32 %v1955, 1.442695
    %v1957 = vpow.pop %v1956
    %v1958 = vadd.f32 %v1957, 1.0
    %v1959 = vrcp.pop %v1958
    %v1960 = vmul.f32 1.0, %v1959
    %v1961 = vadd.f32 %v1948, %v361
    %v1963 = vrot.slane %v1961, 6
    %1964 = vrot.lane.b32.xlu0 %v1963, 64
    %v1965 = vpop.permute.xlu0 %1964
    %v1967 = vmul.f32 %v1960, %v1965
    %1969 = vrot.lane.b32.xlu0 %v1967, 64
    %v1970 = vpop.permute.xlu0 %1969
    %v1972 = vadd.f32 %v268, %v1970
    %v1973 = vtanh.pop %v1972
    %v1974 = vsub.f32 1.0, %v1960
    %v1975 = vrot.slane %v1621, 6
    %1976 = vrot.lane.b32.xlu0 %v1975, 64
    %v1977 = vpop.permute.xlu0 %1976
    %v1979 = vsub.f32 %v1973, %v1977
    %1981 = vrot.lane.b32.xlu0 %v1979, 96
    %v1982 = vpop.permute.xlu0 %1981
    %v1984 = vmul.f32 %v1974, %v1982
    %v1986 = vrot.slane %v1984, 2
    %1987 = vrot.lane.b32.xlu0 %v1986, 96
    %v1988 = vpop.permute.xlu0 %1987
    %v1990 = vadd.f32 %v1621, %v1988
    %1991 = vmatprep.subr.mxu0 0.0
    %1992 = vmatpush1.msra.mxu0 %v168
    %1993 = vmatprep.subr.mxu0 0.0
    %1994 = vmatpush1.msra.mxu0 %v169
    %1995 = vmatprep.subr.mxu0 0.0
    %1996 = vmatpush1.msra.mxu0 %v170
    %1997 = vmatprep.subr.mxu0 0.0
    %1998 = vmatpush1.msra.mxu0 %v171
    %1999 = vmatprep.subr.mxu0 0.0
    %2000 = vmatpush1.msra.mxu0 0.0
    %2001 = vmatprep.subr.mxu0 0.0
    %2002 = vmatpush1.msra.mxu0 0.0
    %2003 = vmatprep.subr.mxu0 0.0
    %2004 = vmatpush1.msra.mxu0 0.0
    %2005 = vmatprep.subr.mxu0 0.0
    %2006 = vmatpush1.msra.mxu0 0.0
    %2007 = vmatprep.subr.mxu0 0.0
    %2008 = vmatpush1.msra.mxu0 0.0
    %2009 = vmatprep.subr.mxu0 0.0
    %2010 = vmatpush1.msra.mxu0 0.0
    %2011 = vmatprep.subr.mxu0 0.0
    %2012 = vmatpush1.msra.mxu0 0.0
    %2013 = vmatprep.subr.mxu0 0.0
    %2014 = vmatpush1.msra.mxu0 0.0
    %2015 = vmatprep.subr.mxu0 0.0
    %2016 = vmatpush1.msra.mxu0 0.0
    %2017 = vmatprep.subr.mxu0 0.0
    %2018 = vmatpush1.msra.mxu0 0.0
    %2019 = vmatprep.subr.mxu0 0.0
    %2020 = vmatpush1.msra.mxu0 0.0
    %2021 = vmatprep.subr.mxu0 0.0
    %2022 = vmatpush1.msra.mxu0 0.0
    %2023 = vmatprep.subr.mxu0 0.0
    %2024 = vmatpush1.msra.mxu0 0.0
    %2025 = vmatprep.subr.mxu0 0.0
    %2026 = vmatpush1.msra.mxu0 0.0
    %2027 = vmatprep.subr.mxu0 0.0
    %2028 = vmatpush1.msra.mxu0 0.0
    %2029 = vmatprep.subr.mxu0 0.0
    %2030 = vmatpush1.msra.mxu0 0.0
    %2031 = vmatprep.subr.mxu0 0.0
    %2032 = vmatpush1.msra.mxu0 0.0
    %2033 = vmatprep.subr.mxu0 0.0
    %2034 = vmatpush1.msra.mxu0 0.0
    %2035 = vmatprep.subr.mxu0 0.0
    %2036 = vmatpush1.msra.mxu0 0.0
    %2037 = vmatprep.subr.mxu0 0.0
    %2038 = vmatpush1.msra.mxu0 0.0
    %2039 = vmatprep.subr.mxu0 0.0
    %2040 = vmatpush1.msra.mxu0 0.0
    %2041 = vmatprep.subr.mxu0 0.0
    %2042 = vmatpush1.msra.mxu0 0.0
    %2043 = vmatprep.subr.mxu0 0.0
    %2044 = vmatpush1.msra.mxu0 0.0
    %2045 = vmatprep.subr.mxu0 0.0
    %2046 = vmatpush1.msra.mxu0 0.0
    %2047 = vmatprep.subr.mxu0 0.0
    %2048 = vmatpush1.msra.mxu0 0.0
    %2049 = vmatprep.subr.mxu0 0.0
    %2050 = vmatpush1.msra.mxu0 0.0
    %2051 = vmatprep.subr.mxu0 0.0
    %2052 = vmatpush1.msra.mxu0 0.0
    %2053 = vmatprep.subr.mxu0 0.0
    %2054 = vmatpush1.msra.mxu0 0.0
    %2055 = vmatprep.mubr.f32.mxu0 0.0
    %2056 = vmatmul.mubr.f32.gmra.mrb[0].mxu0 %v1879
    %v2057 = vpop.f32.mrb[0].mxu0
    %v2058 = vadd.f32 %v507, %v2057
    %v2059 = vpop.f32.mrb[0].mxu0
    %2060 = vdwg.mxu0
    %2061 = vmatprep.subr.mxu0 0.0
    %2062 = vmatpush1.msra.mxu0 %v172
    %2063 = vmatprep.subr.mxu0 0.0
    %2064 = vmatpush1.msra.mxu0 %v173
    %2065 = vmatprep.subr.mxu0 0.0
    %2066 = vmatpush1.msra.mxu0 %v174
    %2067 = vmatprep.subr.mxu0 0.0
    %2068 = vmatpush1.msra.mxu0 %v175
    %2069 = vmatprep.subr.mxu0 0.0
    %2070 = vmatpush1.msra.mxu0 0.0
    %2071 = vmatprep.subr.mxu0 0.0
    %2072 = vmatpush1.msra.mxu0 0.0
    %2073 = vmatprep.subr.mxu0 0.0
    %2074 = vmatpush1.msra.mxu0 0.0
    %2075 = vmatprep.subr.mxu0 0.0
    %2076 = vmatpush1.msra.mxu0 0.0
    %2077 = vmatprep.subr.mxu0 0.0
    %2078 = vmatpush1.msra.mxu0 0.0
    %2079 = vmatprep.subr.mxu0 0.0
    %2080 = vmatpush1.msra.mxu0 0.0
    %2081 = vmatprep.subr.mxu0 0.0
    %2082 = vmatpush1.msra.mxu0 0.0
    %2083 = vmatprep.subr.mxu0 0.0
    %2084 = vmatpush1.msra.mxu0 0.0
    %2085 = vmatprep.subr.mxu0 0.0
    %2086 = vmatpush1.msra.mxu0 0.0
    %2087 = vmatprep.subr.mxu0 0.0
    %2088 = vmatpush1.msra.mxu0 0.0
    %2089 = vmatprep.subr.mxu0 0.0
    %2090 = vmatpush1.msra.mxu0 0.0
    %2091 = vmatprep.subr.mxu0 0.0
    %2092 = vmatpush1.msra.mxu0 0.0
    %2093 = vmatprep.subr.mxu0 0.0
    %2094 = vmatpush1.msra.mxu0 0.0
    %2095 = vmatprep.subr.mxu0 0.0
    %2096 = vmatpush1.msra.mxu0 0.0
    %2097 = vmatprep.subr.mxu0 0.0
    %2098 = vmatpush1.msra.mxu0 0.0
    %2099 = vmatprep.subr.mxu0 0.0
    %2100 = vmatpush1.msra.mxu0 0.0
    %2101 = vmatprep.subr.mxu0 0.0
    %2102 = vmatpush1.msra.mxu0 0.0
    %2103 = vmatprep.subr.mxu0 0.0
    %2104 = vmatpush1.msra.mxu0 0.0
    %2105 = vmatprep.subr.mxu0 0.0
    %2106 = vmatpush1.msra.mxu0 0.0
    %2107 = vmatprep.subr.mxu0 0.0
    %2108 = vmatpush1.msra.mxu0 0.0
    %2109 = vmatprep.subr.mxu0 0.0
    %2110 = vmatpush1.msra.mxu0 0.0
    %2111 = vmatprep.subr.mxu0 0.0
    %2112 = vmatpush1.msra.mxu0 0.0
    %2113 = vmatprep.subr.mxu0 0.0
    %2114 = vmatpush1.msra.mxu0 0.0
    %2115 = vmatprep.subr.mxu0 0.0
    %2116 = vmatpush1.msra.mxu0 0.0
    %2117 = vmatprep.subr.mxu0 0.0
    %2118 = vmatpush1.msra.mxu0 0.0
    %2119 = vmatprep.subr.mxu0 0.0
    %2120 = vmatpush1.msra.mxu0 0.0
    %2121 = vmatprep.subr.mxu0 0.0
    %2122 = vmatpush1.msra.mxu0 0.0
    %2123 = vmatprep.subr.mxu0 0.0
    %2124 = vmatpush1.msra.mxu0 0.0
    %2125 = vmatprep.mubr.f32.mxu0 0.0
    %2126 = vmatmul.mubr.f32.gmra.mrb[0].mxu0 %v1797
    %v2127 = vpop.f32.mrb[0].mxu0
    %v2128 = vadd.f32 0.0, %v2127
    %v2129 = vpop.f32.mrb[0].mxu0
    %2130 = vdwg.mxu0
    %v2131 = vadd.f32 %v2058, %v2128
    %v2132 = vxor.u32 %v2131, 2147483648
    %v2133 = vmul.f32 %v2132, 1.442695
    %v2134 = vpow.pop %v2133
    %v2135 = vadd.f32 %v2134, 1.0
    %v2136 = vrcp.pop %v2135
    %v2137 = vmul.f32 1.0, %v2136
    %v2138 = vadd.f32 %v2128, %v660
    %2140 = vrot.lane.b32.xlu0 %v2138, 64
    %v2141 = vpop.permute.xlu0 %2140
    %v2143 = vmul.f32 %v2137, %v2141
    %2145 = vrot.lane.b32.xlu0 %v2143, 64
    %v2146 = vpop.permute.xlu0 %2145
    %v2148 = vadd.f32 %v2058, %v2146
    %v2149 = vtanh.pop %v2148
    %v2150 = vsub.f32 1.0, %v2137
    %2151 = vrot.lane.b32.xlu0 %v1795, 64
    %v2152 = vpop.permute.xlu0 %2151
    %v2154 = vsub.f32 %v2149, %v2152
    %2156 = vrot.lane.b32.xlu0 %v2154, 96
    %v2157 = vpop.permute.xlu0 %2156
    %v2159 = vmul.f32 %v2150, %v2157
    %2161 = vrot.lane.b32.xlu0 %v2159, 96
    %v2162 = vpop.permute.xlu0 %2161
    %v2164 = vadd.f32 %v1795, %v2162
    %v2166 = vsel %vm189, %v2164, 0
    %2168 = vmatprep.subr.mxu0 0.0
    %2169 = vmatpush1.msra.mxu0 %v271
    %2170 = vmatprep.subr.mxu0 0.0
    %2171 = vmatpush1.msra.mxu0 %v272
    %2172 = vmatprep.subr.mxu0 0.0
    %2173 = vmatpush1.msra.mxu0 %v273
    %2174 = vmatprep.subr.mxu0 0.0
    %2175 = vmatpush1.msra.mxu0 %v274
    %2176 = vmatprep.subr.mxu0 0.0
    %2177 = vmatpush1.msra.mxu0 0.0
    %2178 = vmatprep.subr.mxu0 0.0
    %2179 = vmatpush1.msra.mxu0 0.0
    %2180 = vmatprep.subr.mxu0 0.0
    %2181 = vmatpush1.msra.mxu0 0.0
    %2182 = vmatprep.subr.mxu0 0.0
    %2183 = vmatpush1.msra.mxu0 0.0
    %2184 = vmatprep.subr.mxu0 0.0
    %2185 = vmatpush1.msra.mxu0 0.0
    %2186 = vmatprep.subr.mxu0 0.0
    %2187 = vmatpush1.msra.mxu0 0.0
    %2188 = vmatprep.subr.mxu0 0.0
    %2189 = vmatpush1.msra.mxu0 0.0
    %2190 = vmatprep.subr.mxu0 0.0
    %2191 = vmatpush1.msra.mxu0 0.0
    %2192 = vmatprep.subr.mxu0 0.0
    %2193 = vmatpush1.msra.mxu0 0.0
    %2194 = vmatprep.subr.mxu0 0.0
    %2195 = vmatpush1.msra.mxu0 0.0
    %2196 = vmatprep.subr.mxu0 0.0
    %2197 = vmatpush1.msra.mxu0 0.0
    %2198 = vmatprep.subr.mxu0 0.0
    %2199 = vmatpush1.msra.mxu0 0.0
    %2200 = vmatprep.subr.mxu0 0.0
    %2201 = vmatpush1.msra.mxu0 0.0
    %2202 = vmatprep.subr.mxu0 0.0
    %2203 = vmatpush1.msra.mxu0 0.0
    %2204 = vmatprep.subr.mxu0 0.0
    %2205 = vmatpush1.msra.mxu0 0.0
    %2206 = vmatprep.subr.mxu0 0.0
    %2207 = vmatpush1.msra.mxu0 0.0
    %2208 = vmatprep.subr.mxu0 0.0
    %2209 = vmatpush1.msra.mxu0 0.0
    %2210 = vmatprep.subr.mxu0 0.0
    %2211 = vmatpush1.msra.mxu0 0.0
    %2212 = vmatprep.subr.mxu0 0.0
    %2213 = vmatpush1.msra.mxu0 0.0
    %2214 = vmatprep.subr.mxu0 0.0
    %2215 = vmatpush1.msra.mxu0 0.0
    %2216 = vmatprep.subr.mxu0 0.0
    %2217 = vmatpush1.msra.mxu0 0.0
    %2218 = vmatprep.subr.mxu0 0.0
    %2219 = vmatpush1.msra.mxu0 0.0
    %2220 = vmatprep.subr.mxu0 0.0
    %2221 = vmatpush1.msra.mxu0 0.0
    %2222 = vmatprep.subr.mxu0 0.0
    %2223 = vmatpush1.msra.mxu0 0.0
    %2224 = vmatprep.subr.mxu0 0.0
    %2225 = vmatpush1.msra.mxu0 0.0
    %2226 = vmatprep.subr.mxu0 0.0
    %2227 = vmatpush1.msra.mxu0 0.0
    %2228 = vmatprep.subr.mxu0 0.0
    %2229 = vmatpush1.msra.mxu0 0.0
    %2230 = vmatprep.subr.mxu0 0.0
    %2231 = vmatpush1.msra.mxu0 0.0
    %2232 = vmatprep.mubr.f32.mxu0 0.0
    %2233 = vmatmul.mubr.f32.gmra.mrb[0].mxu0 %v2166
    %v2234 = vpop.f32.mrb[0].mxu0
    %v2235 = vadd.f32 %v693, %v2234
    %v2236 = vpop.f32.mrb[0].mxu0
    %2237 = vdwg.mxu0
    %vm2238 = vcmp.gt.s32.totalorder %v276, 4
    %v2239 = vsel %vm2238, 1.0, 0.0
    %2241 = vset.pattern.permute.xlu0 0
    %2242 = vperm.xlu0 %2241, %v2239
    %v2243 = vpop.permute.xlu0 %2242
    %v2245 = vmul.f32 %v2235, %v2243
    %2246 = vst [vmem:[#allocation2 + $0x8] sm:$0x3] %v2245
    %v2248 = vsel %vm189, %v1990, 0
    %2250 = vmatprep.subr.mxu0 0.0
    %2251 = vmatpush1.msra.mxu0 %v157
    %2252 = vmatprep.subr.mxu0 0.0
    %2253 = vmatpush1.msra.mxu0 %v158
    %2254 = vmatprep.subr.mxu0 0.0
    %2255 = vmatpush1.msra.mxu0 %v159
    %2256 = vmatprep.subr.mxu0 0.0
    %2257 = vmatpush1.msra.mxu0 %v160
    %2258 = vmatprep.subr.mxu0 0.0
    %2259 = vmatpush1.msra.mxu0 0.0
    %2260 = vmatprep.subr.mxu0 0.0
    %2261 = vmatpush1.msra.mxu0 0.0
    %2262 = vmatprep.subr.mxu0 0.0
    %2263 = vmatpush1.msra.mxu0 0.0
    %2264 = vmatprep.subr.mxu0 0.0
    %2265 = vmatpush1.msra.mxu0 0.0
    %2266 = vmatprep.subr.mxu0 0.0
    %2267 = vmatpush1.msra.mxu0 0.0
    %2268 = vmatprep.subr.mxu0 0.0
    %2269 = vmatpush1.msra.mxu0 0.0
    %2270 = vmatprep.subr.mxu0 0.0
    %2271 = vmatpush1.msra.mxu0 0.0
    %2272 = vmatprep.subr.mxu0 0.0
    %2273 = vmatpush1.msra.mxu0 0.0
    %2274 = vmatprep.subr.mxu0 0.0
    %2275 = vmatpush1.msra.mxu0 0.0
    %2276 = vmatprep.subr.mxu0 0.0
    %2277 = vmatpush1.msra.mxu0 0.0
    %2278 = vmatprep.subr.mxu0 0.0
    %2279 = vmatpush1.msra.mxu0 0.0
    %2280 = vmatprep.subr.mxu0 0.0
    %2281 = vmatpush1.msra.mxu0 0.0
    %2282 = vmatprep.subr.mxu0 0.0
    %2283 = vmatpush1.msra.mxu0 0.0
    %2284 = vmatprep.subr.mxu0 0.0
    %2285 = vmatpush1.msra.mxu0 0.0
    %2286 = vmatprep.subr.mxu0 0.0
    %2287 = vmatpush1.msra.mxu0 0.0
    %2288 = vmatprep.subr.mxu0 0.0
    %2289 = vmatpush1.msra.mxu0 0.0
    %2290 = vmatprep.subr.mxu0 0.0
    %2291 = vmatpush1.msra.mxu0 0.0
    %2292 = vmatprep.subr.mxu0 0.0
    %2293 = vmatpush1.msra.mxu0 0.0
    %2294 = vmatprep.subr.mxu0 0.0
    %2295 = vmatpush1.msra.mxu0 0.0
    %2296 = vmatprep.subr.mxu0 0.0
    %2297 = vmatpush1.msra.mxu0 0.0
    %2298 = vmatprep.subr.mxu0 0.0
    %2299 = vmatpush1.msra.mxu0 0.0
    %2300 = vmatprep.subr.mxu0 0.0
    %2301 = vmatpush1.msra.mxu0 0.0
    %2302 = vmatprep.subr.mxu0 0.0
    %2303 = vmatpush1.msra.mxu0 0.0
    %2304 = vmatprep.subr.mxu0 0.0
    %2305 = vmatpush1.msra.mxu0 0.0
    %2306 = vmatprep.subr.mxu0 0.0
    %2307 = vmatpush1.msra.mxu0 0.0
    %2308 = vmatprep.subr.mxu0 0.0
    %2309 = vmatpush1.msra.mxu0 0.0
    %2310 = vmatprep.subr.mxu0 0.0
    %2311 = vmatpush1.msra.mxu0 0.0
    %2312 = vmatprep.subr.mxu0 0.0
    %2313 = vmatpush1.msra.mxu0 0.0
    %2314 = vmatprep.mubr.f32.mxu0 0.0
    %2315 = vmatmul.mubr.f32.gmra.mrb[0].mxu0 %v2248
    %v2316 = vpop.f32.mrb[0].mxu0
    %v2317 = vadd.f32 0.0, %v2316
    %v2318 = vpop.f32.mrb[0].mxu0
    %2319 = vdwg.mxu0
    %v2321 = vrot.slane %v2317, 4
    %v2323 = vadd.f32 %v268, %v2321
    %v2324 = vxor.u32 %v2323, 2147483648
    %v2325 = vmul.f32 %v2324, 1.442695
    %v2326 = vpow.pop %v2325
    %v2327 = vadd.f32 %v2326, 1.0
    %v2328 = vrcp.pop %v2327
    %v2329 = vmul.f32 1.0, %v2328
    %v2330 = vadd.f32 %v2317, %v361
    %v2332 = vrot.slane %v2330, 4
    %2333 = vrot.lane.b32.xlu0 %v2332, 64
    %v2334 = vpop.permute.xlu0 %2333
    %v2336 = vmul.f32 %v2329, %v2334
    %2338 = vrot.lane.b32.xlu0 %v2336, 64
    %v2339 = vpop.permute.xlu0 %2338
    %v2341 = vadd.f32 %v268, %v2339
    %v2342 = vtanh.pop %v2341
    %v2343 = vsub.f32 1.0, %v2329
    %v2344 = vrot.slane %v1990, 4
    %2345 = vrot.lane.b32.xlu0 %v2344, 64
    %v2346 = vpop.permute.xlu0 %2345
    %v2348 = vsub.f32 %v2342, %v2346
    %2350 = vrot.lane.b32.xlu0 %v2348, 96
    %v2351 = vpop.permute.xlu0 %2350
    %v2353 = vmul.f32 %v2343, %v2351
    %v2355 = vrot.slane %v2353, 4
    %2356 = vrot.lane.b32.xlu0 %v2355, 96
    %v2357 = vpop.permute.xlu0 %2356
    %v2359 = vadd.f32 %v1990, %v2357
    %2360 = vmatprep.subr.mxu0 0.0
    %2361 = vmatpush1.msra.mxu0 %v168
    %2362 = vmatprep.subr.mxu0 0.0
    %2363 = vmatpush1.msra.mxu0 %v169
    %2364 = vmatprep.subr.mxu0 0.0
    %2365 = vmatpush1.msra.mxu0 %v170
    %2366 = vmatprep.subr.mxu0 0.0
    %2367 = vmatpush1.msra.mxu0 %v171
    %2368 = vmatprep.subr.mxu0 0.0
    %2369 = vmatpush1.msra.mxu0 0.0
    %2370 = vmatprep.subr.mxu0 0.0
    %2371 = vmatpush1.msra.mxu0 0.0
    %2372 = vmatprep.subr.mxu0 0.0
    %2373 = vmatpush1.msra.mxu0 0.0
    %2374 = vmatprep.subr.mxu0 0.0
    %2375 = vmatpush1.msra.mxu0 0.0
    %2376 = vmatprep.subr.mxu0 0.0
    %2377 = vmatpush1.msra.mxu0 0.0
    %2378 = vmatprep.subr.mxu0 0.0
    %2379 = vmatpush1.msra.mxu0 0.0
    %2380 = vmatprep.subr.mxu0 0.0
    %2381 = vmatpush1.msra.mxu0 0.0
    %2382 = vmatprep.subr.mxu0 0.0
    %2383 = vmatpush1.msra.mxu0 0.0
    %2384 = vmatprep.subr.mxu0 0.0
    %2385 = vmatpush1.msra.mxu0 0.0
    %2386 = vmatprep.subr.mxu0 0.0
    %2387 = vmatpush1.msra.mxu0 0.0
    %2388 = vmatprep.subr.mxu0 0.0
    %2389 = vmatpush1.msra.mxu0 0.0
    %2390 = vmatprep.subr.mxu0 0.0
    %2391 = vmatpush1.msra.mxu0 0.0
    %2392 = vmatprep.subr.mxu0 0.0
    %2393 = vmatpush1.msra.mxu0 0.0
    %2394 = vmatprep.subr.mxu0 0.0
    %2395 = vmatpush1.msra.mxu0 0.0
    %2396 = vmatprep.subr.mxu0 0.0
    %2397 = vmatpush1.msra.mxu0 0.0
    %2398 = vmatprep.subr.mxu0 0.0
    %2399 = vmatpush1.msra.mxu0 0.0
    %2400 = vmatprep.subr.mxu0 0.0
    %2401 = vmatpush1.msra.mxu0 0.0
    %2402 = vmatprep.subr.mxu0 0.0
    %2403 = vmatpush1.msra.mxu0 0.0
    %2404 = vmatprep.subr.mxu0 0.0
    %2405 = vmatpush1.msra.mxu0 0.0
    %2406 = vmatprep.subr.mxu0 0.0
    %2407 = vmatpush1.msra.mxu0 0.0
    %2408 = vmatprep.subr.mxu0 0.0
    %2409 = vmatpush1.msra.mxu0 0.0
    %2410 = vmatprep.subr.mxu0 0.0
    %2411 = vmatpush1.msra.mxu0 0.0
    %2412 = vmatprep.subr.mxu0 0.0
    %2413 = vmatpush1.msra.mxu0 0.0
    %2414 = vmatprep.subr.mxu0 0.0
    %2415 = vmatpush1.msra.mxu0 0.0
    %2416 = vmatprep.subr.mxu0 0.0
    %2417 = vmatpush1.msra.mxu0 0.0
    %2418 = vmatprep.subr.mxu0 0.0
    %2419 = vmatpush1.msra.mxu0 0.0
    %2420 = vmatprep.subr.mxu0 0.0
    %2421 = vmatpush1.msra.mxu0 0.0
    %2422 = vmatprep.subr.mxu0 0.0
    %2423 = vmatpush1.msra.mxu0 0.0
    %2424 = vmatprep.mubr.f32.mxu0 0.0
    %2425 = vmatmul.mubr.f32.gmra.mrb[0].mxu0 %v2248
    %v2426 = vpop.f32.mrb[0].mxu0
    %v2427 = vadd.f32 %v507, %v2426
    %v2428 = vpop.f32.mrb[0].mxu0
    %2429 = vdwg.mxu0
    %2430 = vmatprep.subr.mxu0 0.0
    %2431 = vmatpush1.msra.mxu0 %v172
    %2432 = vmatprep.subr.mxu0 0.0
    %2433 = vmatpush1.msra.mxu0 %v173
    %2434 = vmatprep.subr.mxu0 0.0
    %2435 = vmatpush1.msra.mxu0 %v174
    %2436 = vmatprep.subr.mxu0 0.0
    %2437 = vmatpush1.msra.mxu0 %v175
    %2438 = vmatprep.subr.mxu0 0.0
    %2439 = vmatpush1.msra.mxu0 0.0
    %2440 = vmatprep.subr.mxu0 0.0
    %2441 = vmatpush1.msra.mxu0 0.0
    %2442 = vmatprep.subr.mxu0 0.0
    %2443 = vmatpush1.msra.mxu0 0.0
    %2444 = vmatprep.subr.mxu0 0.0
    %2445 = vmatpush1.msra.mxu0 0.0
    %2446 = vmatprep.subr.mxu0 0.0
    %2447 = vmatpush1.msra.mxu0 0.0
    %2448 = vmatprep.subr.mxu0 0.0
    %2449 = vmatpush1.msra.mxu0 0.0
    %2450 = vmatprep.subr.mxu0 0.0
    %2451 = vmatpush1.msra.mxu0 0.0
    %2452 = vmatprep.subr.mxu0 0.0
    %2453 = vmatpush1.msra.mxu0 0.0
    %2454 = vmatprep.subr.mxu0 0.0
    %2455 = vmatpush1.msra.mxu0 0.0
    %2456 = vmatprep.subr.mxu0 0.0
    %2457 = vmatpush1.msra.mxu0 0.0
    %2458 = vmatprep.subr.mxu0 0.0
    %2459 = vmatpush1.msra.mxu0 0.0
    %2460 = vmatprep.subr.mxu0 0.0
    %2461 = vmatpush1.msra.mxu0 0.0
    %2462 = vmatprep.subr.mxu0 0.0
    %2463 = vmatpush1.msra.mxu0 0.0
    %2464 = vmatprep.subr.mxu0 0.0
    %2465 = vmatpush1.msra.mxu0 0.0
    %2466 = vmatprep.subr.mxu0 0.0
    %2467 = vmatpush1.msra.mxu0 0.0
    %2468 = vmatprep.subr.mxu0 0.0
    %2469 = vmatpush1.msra.mxu0 0.0
    %2470 = vmatprep.subr.mxu0 0.0
    %2471 = vmatpush1.msra.mxu0 0.0
    %2472 = vmatprep.subr.mxu0 0.0
    %2473 = vmatpush1.msra.mxu0 0.0
    %2474 = vmatprep.subr.mxu0 0.0
    %2475 = vmatpush1.msra.mxu0 0.0
    %2476 = vmatprep.subr.mxu0 0.0
    %2477 = vmatpush1.msra.mxu0 0.0
    %2478 = vmatprep.subr.mxu0 0.0
    %2479 = vmatpush1.msra.mxu0 0.0
    %2480 = vmatprep.subr.mxu0 0.0
    %2481 = vmatpush1.msra.mxu0 0.0
    %2482 = vmatprep.subr.mxu0 0.0
    %2483 = vmatpush1.msra.mxu0 0.0
    %2484 = vmatprep.subr.mxu0 0.0
    %2485 = vmatpush1.msra.mxu0 0.0
    %2486 = vmatprep.subr.mxu0 0.0
    %2487 = vmatpush1.msra.mxu0 0.0
    %2488 = vmatprep.subr.mxu0 0.0
    %2489 = vmatpush1.msra.mxu0 0.0
    %2490 = vmatprep.subr.mxu0 0.0
    %2491 = vmatpush1.msra.mxu0 0.0
    %2492 = vmatprep.subr.mxu0 0.0
    %2493 = vmatpush1.msra.mxu0 0.0
    %2494 = vmatprep.mubr.f32.mxu0 0.0
    %2495 = vmatmul.mubr.f32.gmra.mrb[0].mxu0 %v2166
    %v2496 = vpop.f32.mrb[0].mxu0
    %v2497 = vadd.f32 0.0, %v2496
    %v2498 = vpop.f32.mrb[0].mxu0
    %2499 = vdwg.mxu0
    %v2500 = vadd.f32 %v2427, %v2497
    %v2501 = vxor.u32 %v2500, 2147483648
    %v2502 = vmul.f32 %v2501, 1.442695
    %v2503 = vpow.pop %v2502
    %v2504 = vadd.f32 %v2503, 1.0
    %v2505 = vrcp.pop %v2504
    %v2506 = vmul.f32 1.0, %v2505
    %v2507 = vadd.f32 %v2497, %v660
    %2509 = vrot.lane.b32.xlu0 %v2507, 64
    %v2510 = vpop.permute.xlu0 %2509
    %v2512 = vmul.f32 %v2506, %v2510
    %2514 = vrot.lane.b32.xlu0 %v2512, 64
    %v2515 = vpop.permute.xlu0 %2514
    %v2517 = vadd.f32 %v2427, %v2515
    %v2518 = vtanh.pop %v2517
    %v2519 = vsub.f32 1.0, %v2506
    %2520 = vrot.lane.b32.xlu0 %v2164, 64
    %v2521 = vpop.permute.xlu0 %2520
    %v2523 = vsub.f32 %v2518, %v2521
    %2525 = vrot.lane.b32.xlu0 %v2523, 96
    %v2526 = vpop.permute.xlu0 %2525
    %v2528 = vmul.f32 %v2519, %v2526
    %2530 = vrot.lane.b32.xlu0 %v2528, 96
    %v2531 = vpop.permute.xlu0 %2530
    %v2533 = vadd.f32 %v2164, %v2531
    %v2535 = vsel %vm189, %v2533, 0
    %2537 = vmatprep.subr.mxu0 0.0
    %2538 = vmatpush1.msra.mxu0 %v271
    %2539 = vmatprep.subr.mxu0 0.0
    %2540 = vmatpush1.msra.mxu0 %v272
    %2541 = vmatprep.subr.mxu0 0.0
    %2542 = vmatpush1.msra.mxu0 %v273
    %2543 = vmatprep.subr.mxu0 0.0
    %2544 = vmatpush1.msra.mxu0 %v274
    %2545 = vmatprep.subr.mxu0 0.0
    %2546 = vmatpush1.msra.mxu0 0.0
    %2547 = vmatprep.subr.mxu0 0.0
    %2548 = vmatpush1.msra.mxu0 0.0
    %2549 = vmatprep.subr.mxu0 0.0
    %2550 = vmatpush1.msra.mxu0 0.0
    %2551 = vmatprep.subr.mxu0 0.0
    %2552 = vmatpush1.msra.mxu0 0.0
    %2553 = vmatprep.subr.mxu0 0.0
    %2554 = vmatpush1.msra.mxu0 0.0
    %2555 = vmatprep.subr.mxu0 0.0
    %2556 = vmatpush1.msra.mxu0 0.0
    %2557 = vmatprep.subr.mxu0 0.0
    %2558 = vmatpush1.msra.mxu0 0.0
    %2559 = vmatprep.subr.mxu0 0.0
    %2560 = vmatpush1.msra.mxu0 0.0
    %2561 = vmatprep.subr.mxu0 0.0
    %2562 = vmatpush1.msra.mxu0 0.0
    %2563 = vmatprep.subr.mxu0 0.0
    %2564 = vmatpush1.msra.mxu0 0.0
    %2565 = vmatprep.subr.mxu0 0.0
    %2566 = vmatpush1.msra.mxu0 0.0
    %2567 = vmatprep.subr.mxu0 0.0
    %2568 = vmatpush1.msra.mxu0 0.0
    %2569 = vmatprep.subr.mxu0 0.0
    %2570 = vmatpush1.msra.mxu0 0.0
    %2571 = vmatprep.subr.mxu0 0.0
    %2572 = vmatpush1.msra.mxu0 0.0
    %2573 = vmatprep.subr.mxu0 0.0
    %2574 = vmatpush1.msra.mxu0 0.0
    %2575 = vmatprep.subr.mxu0 0.0
    %2576 = vmatpush1.msra.mxu0 0.0
    %2577 = vmatprep.subr.mxu0 0.0
    %2578 = vmatpush1.msra.mxu0 0.0
    %2579 = vmatprep.subr.mxu0 0.0
    %2580 = vmatpush1.msra.mxu0 0.0
    %2581 = vmatprep.subr.mxu0 0.0
    %2582 = vmatpush1.msra.mxu0 0.0
    %2583 = vmatprep.subr.mxu0 0.0
    %2584 = vmatpush1.msra.mxu0 0.0
    %2585 = vmatprep.subr.mxu0 0.0
    %2586 = vmatpush1.msra.mxu0 0.0
    %2587 = vmatprep.subr.mxu0 0.0
    %2588 = vmatpush1.msra.mxu0 0.0
    %2589 = vmatprep.subr.mxu0 0.0
    %2590 = vmatpush1.msra.mxu0 0.0
    %2591 = vmatprep.subr.mxu0 0.0
    %2592 = vmatpush1.msra.mxu0 0.0
    %2593 = vmatprep.subr.mxu0 0.0
    %2594 = vmatpush1.msra.mxu0 0.0
    %2595 = vmatprep.subr.mxu0 0.0
    %2596 = vmatpush1.msra.mxu0 0.0
    %2597 = vmatprep.subr.mxu0 0.0
    %2598 = vmatpush1.msra.mxu0 0.0
    %2599 = vmatprep.subr.mxu0 0.0
    %2600 = vmatpush1.msra.mxu0 0.0
    %2601 = vmatprep.mubr.f32.mxu0 0.0
    %2602 = vmatmul.mubr.f32.gmra.mrb[0].mxu0 %v2535
    %v2603 = vpop.f32.mrb[0].mxu0
    %v2604 = vadd.f32 %v693, %v2603
    %v2605 = vpop.f32.mrb[0].mxu0
    %2606 = vdwg.mxu0
    %vm2607 = vcmp.gt.s32.totalorder %v276, 5
    %v2608 = vsel %vm2607, 1.0, 0.0
    %2610 = vset.pattern.permute.xlu0 0
    %2611 = vperm.xlu0 %2610, %v2608
    %v2612 = vpop.permute.xlu0 %2611
    %v2614 = vmul.f32 %v2604, %v2612
    %2615 = vst [vmem:[#allocation2 + $0xa] sm:$0x3] %v2614
    %v2617 = vsel %vm189, %v2359, 0
    %2619 = vmatprep.subr.mxu0 0.0
    %2620 = vmatpush1.msra.mxu0 %v168
    %2621 = vmatprep.subr.mxu0 0.0
    %2622 = vmatpush1.msra.mxu0 %v169
    %2623 = vmatprep.subr.mxu0 0.0
    %2624 = vmatpush1.msra.mxu0 %v170
    %2625 = vmatprep.subr.mxu0 0.0
    %2626 = vmatpush1.msra.mxu0 %v171
    %2627 = vmatprep.subr.mxu0 0.0
    %2628 = vmatpush1.msra.mxu0 0.0
    %2629 = vmatprep.subr.mxu0 0.0
    %2630 = vmatpush1.msra.mxu0 0.0
    %2631 = vmatprep.subr.mxu0 0.0
    %2632 = vmatpush1.msra.mxu0 0.0
    %2633 = vmatprep.subr.mxu0 0.0
    %2634 = vmatpush1.msra.mxu0 0.0
    %2635 = vmatprep.subr.mxu0 0.0
    %2636 = vmatpush1.msra.mxu0 0.0
    %2637 = vmatprep.subr.mxu0 0.0
    %2638 = vmatpush1.msra.mxu0 0.0
    %2639 = vmatprep.subr.mxu0 0.0
    %2640 = vmatpush1.msra.mxu0 0.0
    %2641 = vmatprep.subr.mxu0 0.0
    %2642 = vmatpush1.msra.mxu0 0.0
    %2643 = vmatprep.subr.mxu0 0.0
    %2644 = vmatpush1.msra.mxu0 0.0
    %2645 = vmatprep.subr.mxu0 0.0
    %2646 = vmatpush1.msra.mxu0 0.0
    %2647 = vmatprep.subr.mxu0 0.0
    %2648 = vmatpush1.msra.mxu0 0.0
    %2649 = vmatprep.subr.mxu0 0.0
    %2650 = vmatpush1.msra.mxu0 0.0
    %2651 = vmatprep.subr.mxu0 0.0
    %2652 = vmatpush1.msra.mxu0 0.0
    %2653 = vmatprep.subr.mxu0 0.0
    %2654 = vmatpush1.msra.mxu0 0.0
    %2655 = vmatprep.subr.mxu0 0.0
    %2656 = vmatpush1.msra.mxu0 0.0
    %2657 = vmatprep.subr.mxu0 0.0
    %2658 = vmatpush1.msra.mxu0 0.0
    %2659 = vmatprep.subr.mxu0 0.0
    %2660 = vmatpush1.msra.mxu0 0.0
    %2661 = vmatprep.subr.mxu0 0.0
    %2662 = vmatpush1.msra.mxu0 0.0
    %2663 = vmatprep.subr.mxu0 0.0
    %2664 = vmatpush1.msra.mxu0 0.0
    %2665 = vmatprep.subr.mxu0 0.0
    %2666 = vmatpush1.msra.mxu0 0.0
    %2667 = vmatprep.subr.mxu0 0.0
    %2668 = vmatpush1.msra.mxu0 0.0
    %2669 = vmatprep.subr.mxu0 0.0
    %2670 = vmatpush1.msra.mxu0 0.0
    %2671 = vmatprep.subr.mxu0 0.0
    %2672 = vmatpush1.msra.mxu0 0.0
    %2673 = vmatprep.subr.mxu0 0.0
    %2674 = vmatpush1.msra.mxu0 0.0
    %2675 = vmatprep.subr.mxu0 0.0
    %2676 = vmatpush1.msra.mxu0 0.0
    %2677 = vmatprep.subr.mxu0 0.0
    %2678 = vmatpush1.msra.mxu0 0.0
    %2679 = vmatprep.subr.mxu0 0.0
    %2680 = vmatpush1.msra.mxu0 0.0
    %2681 = vmatprep.subr.mxu0 0.0
    %2682 = vmatpush1.msra.mxu0 0.0
    %2683 = vmatprep.mubr.f32.mxu0 0.0
    %2684 = vmatmul.mubr.f32.gmra.mrb[0].mxu0 %v2617
    %v2685 = vpop.f32.mrb[0].mxu0
    %v2686 = vadd.f32 %v507, %v2685
    %v2687 = vpop.f32.mrb[0].mxu0
    %2688 = vdwg.mxu0
    %2689 = vmatprep.subr.mxu0 0.0
    %2690 = vmatpush1.msra.mxu0 %v172
    %2691 = vmatprep.subr.mxu0 0.0
    %2692 = vmatpush1.msra.mxu0 %v173
    %2693 = vmatprep.subr.mxu0 0.0
    %2694 = vmatpush1.msra.mxu0 %v174
    %2695 = vmatprep.subr.mxu0 0.0
    %2696 = vmatpush1.msra.mxu0 %v175
    %2697 = vmatprep.subr.mxu0 0.0
    %2698 = vmatpush1.msra.mxu0 0.0
    %2699 = vmatprep.subr.mxu0 0.0
    %2700 = vmatpush1.msra.mxu0 0.0
    %2701 = vmatprep.subr.mxu0 0.0
    %2702 = vmatpush1.msra.mxu0 0.0
    %2703 = vmatprep.subr.mxu0 0.0
    %2704 = vmatpush1.msra.mxu0 0.0
    %2705 = vmatprep.subr.mxu0 0.0
    %2706 = vmatpush1.msra.mxu0 0.0
    %2707 = vmatprep.subr.mxu0 0.0
    %2708 = vmatpush1.msra.mxu0 0.0
    %2709 = vmatprep.subr.mxu0 0.0
    %2710 = vmatpush1.msra.mxu0 0.0
    %2711 = vmatprep.subr.mxu0 0.0
    %2712 = vmatpush1.msra.mxu0 0.0
    %2713 = vmatprep.subr.mxu0 0.0
    %2714 = vmatpush1.msra.mxu0 0.0
    %2715 = vmatprep.subr.mxu0 0.0
    %2716 = vmatpush1.msra.mxu0 0.0
    %2717 = vmatprep.subr.mxu0 0.0
    %2718 = vmatpush1.msra.mxu0 0.0
    %2719 = vmatprep.subr.mxu0 0.0
    %2720 = vmatpush1.msra.mxu0 0.0
    %2721 = vmatprep.subr.mxu0 0.0
    %2722 = vmatpush1.msra.mxu0 0.0
    %2723 = vmatprep.subr.mxu0 0.0
    %2724 = vmatpush1.msra.mxu0 0.0
    %2725 = vmatprep.subr.mxu0 0.0
    %2726 = vmatpush1.msra.mxu0 0.0
    %2727 = vmatprep.subr.mxu0 0.0
    %2728 = vmatpush1.msra.mxu0 0.0
    %2729 = vmatprep.subr.mxu0 0.0
    %2730 = vmatpush1.msra.mxu0 0.0
    %2731 = vmatprep.subr.mxu0 0.0
    %2732 = vmatpush1.msra.mxu0 0.0
    %2733 = vmatprep.subr.mxu0 0.0
    %2734 = vmatpush1.msra.mxu0 0.0
    %2735 = vmatprep.subr.mxu0 0.0
    %2736 = vmatpush1.msra.mxu0 0.0
    %2737 = vmatprep.subr.mxu0 0.0
    %2738 = vmatpush1.msra.mxu0 0.0
    %2739 = vmatprep.subr.mxu0 0.0
    %2740 = vmatpush1.msra.mxu0 0.0
    %2741 = vmatprep.subr.mxu0 0.0
    %2742 = vmatpush1.msra.mxu0 0.0
    %2743 = vmatprep.subr.mxu0 0.0
    %2744 = vmatpush1.msra.mxu0 0.0
    %2745 = vmatprep.subr.mxu0 0.0
    %2746 = vmatpush1.msra.mxu0 0.0
    %2747 = vmatprep.subr.mxu0 0.0
    %2748 = vmatpush1.msra.mxu0 0.0
    %2749 = vmatprep.subr.mxu0 0.0
    %2750 = vmatpush1.msra.mxu0 0.0
    %2751 = vmatprep.subr.mxu0 0.0
    %2752 = vmatpush1.msra.mxu0 0.0
    %2753 = vmatprep.mubr.f32.mxu0 0.0
    %2754 = vmatmul.mubr.f32.gmra.mrb[0].mxu0 %v2535
    %v2755 = vpop.f32.mrb[0].mxu0
    %v2756 = vadd.f32 0.0, %v2755
    %v2757 = vpop.f32.mrb[0].mxu0
    %2758 = vdwg.mxu0
    %v2759 = vadd.f32 %v2686, %v2756
    %v2760 = vxor.u32 %v2759, 2147483648
    %v2761 = vmul.f32 %v2760, 1.442695
    %v2762 = vpow.pop %v2761
    %v2763 = vadd.f32 %v2762, 1.0
    %v2764 = vrcp.pop %v2763
    %v2765 = vmul.f32 1.0, %v2764
    %v2766 = vadd.f32 %v2756, %v660
    %2768 = vrot.lane.b32.xlu0 %v2766, 64
    %v2769 = vpop.permute.xlu0 %2768
    %v2771 = vmul.f32 %v2765, %v2769
    %2773 = vrot.lane.b32.xlu0 %v2771, 64
    %v2774 = vpop.permute.xlu0 %2773
    %v2776 = vadd.f32 %v2686, %v2774
    %v2777 = vtanh.pop %v2776
    %v2778 = vsub.f32 1.0, %v2765
    %2779 = vrot.lane.b32.xlu0 %v2533, 64
    %v2780 = vpop.permute.xlu0 %2779
    %v2782 = vsub.f32 %v2777, %v2780
    %2784 = vrot.lane.b32.xlu0 %v2782, 96
    %v2785 = vpop.permute.xlu0 %2784
    %v2787 = vmul.f32 %v2778, %v2785
    %2789 = vrot.lane.b32.xlu0 %v2787, 96
    %v2790 = vpop.permute.xlu0 %2789
    %v2792 = vadd.f32 %v2533, %v2790
    %v2794 = vsel %vm189, %v2792, 0
    %2796 = vmatprep.subr.mxu0 0.0
    %2797 = vmatpush1.msra.mxu0 %v271
    %2798 = vmatprep.subr.mxu0 0.0
    %2799 = vmatpush1.msra.mxu0 %v272
    %2800 = vmatprep.subr.mxu0 0.0
    %2801 = vmatpush1.msra.mxu0 %v273
    %2802 = vmatprep.subr.mxu0 0.0
    %2803 = vmatpush1.msra.mxu0 %v274
    %2804 = vmatprep.subr.mxu0 0.0
    %2805 = vmatpush1.msra.mxu0 0.0
    %2806 = vmatprep.subr.mxu0 0.0
    %2807 = vmatpush1.msra.mxu0 0.0
    %2808 = vmatprep.subr.mxu0 0.0
    %2809 = vmatpush1.msra.mxu0 0.0
    %2810 = vmatprep.subr.mxu0 0.0
    %2811 = vmatpush1.msra.mxu0 0.0
    %2812 = vmatprep.subr.mxu0 0.0
    %2813 = vmatpush1.msra.mxu0 0.0
    %2814 = vmatprep.subr.mxu0 0.0
    %2815 = vmatpush1.msra.mxu0 0.0
    %2816 = vmatprep.subr.mxu0 0.0
    %2817 = vmatpush1.msra.mxu0 0.0
    %2818 = vmatprep.subr.mxu0 0.0
    %2819 = vmatpush1.msra.mxu0 0.0
    %2820 = vmatprep.subr.mxu0 0.0
    %2821 = vmatpush1.msra.mxu0 0.0
    %2822 = vmatprep.subr.mxu0 0.0
    %2823 = vmatpush1.msra.mxu0 0.0
    %2824 = vmatprep.subr.mxu0 0.0
    %2825 = vmatpush1.msra.mxu0 0.0
    %2826 = vmatprep.subr.mxu0 0.0
    %2827 = vmatpush1.msra.mxu0 0.0
    %2828 = vmatprep.subr.mxu0 0.0
    %2829 = vmatpush1.msra.mxu0 0.0
    %2830 = vmatprep.subr.mxu0 0.0
    %2831 = vmatpush1.msra.mxu0 0.0
    %2832 = vmatprep.subr.mxu0 0.0
    %2833 = vmatpush1.msra.mxu0 0.0
    %2834 = vmatprep.subr.mxu0 0.0
    %2835 = vmatpush1.msra.mxu0 0.0
    %2836 = vmatprep.subr.mxu0 0.0
    %2837 = vmatpush1.msra.mxu0 0.0
    %2838 = vmatprep.subr.mxu0 0.0
    %2839 = vmatpush1.msra.mxu0 0.0
    %2840 = vmatprep.subr.mxu0 0.0
    %2841 = vmatpush1.msra.mxu0 0.0
    %2842 = vmatprep.subr.mxu0 0.0
    %2843 = vmatpush1.msra.mxu0 0.0
    %2844 = vmatprep.subr.mxu0 0.0
    %2845 = vmatpush1.msra.mxu0 0.0
    %2846 = vmatprep.subr.mxu0 0.0
    %2847 = vmatpush1.msra.mxu0 0.0
    %2848 = vmatprep.subr.mxu0 0.0
    %2849 = vmatpush1.msra.mxu0 0.0
    %2850 = vmatprep.subr.mxu0 0.0
    %2851 = vmatpush1.msra.mxu0 0.0
    %2852 = vmatprep.subr.mxu0 0.0
    %2853 = vmatpush1.msra.mxu0 0.0
    %2854 = vmatprep.subr.mxu0 0.0
    %2855 = vmatpush1.msra.mxu0 0.0
    %2856 = vmatprep.subr.mxu0 0.0
    %2857 = vmatpush1.msra.mxu0 0.0
    %2858 = vmatprep.subr.mxu0 0.0
    %2859 = vmatpush1.msra.mxu0 0.0
    %2860 = vmatprep.mubr.f32.mxu0 0.0
    %2861 = vmatmul.mubr.f32.gmra.mrb[0].mxu0 %v2794
    %v2862 = vpop.f32.mrb[0].mxu0
    %v2863 = vadd.f32 %v693, %v2862
    %v2864 = vpop.f32.mrb[0].mxu0
    %2865 = vdwg.mxu0
    %vm2866 = vcmp.gt.s32.totalorder %v276, 6
    %v2867 = vsel %vm2866, 1.0, 0.0
    %2869 = vset.pattern.permute.xlu0 0
    %2870 = vperm.xlu0 %2869, %v2867
    %v2871 = vpop.permute.xlu0 %2870
    %v2873 = vmul.f32 %v2863, %v2871
    %2874 = vst [vmem:[#allocation2 + $0xc] sm:$0x3] %v2873
    %2875 = vst [vmem:[#allocation2 + $0xe] sm:$0x3] 0.0
    // Predicated region
    $region58: #{tpu_custom_call.1} parent=1 // pred_check
      _
    $region59: #{tpu_custom_call.1} parent=1 // pred_check_branch
      %2877 = sbr.rel (0) target = $region61
    $region60: #{tpu_custom_call.1} parent=1 // pred_region
      %s2879 = ssub.s32 256, 256
      %2880 = vsyncadd [#allocation3], %s2879
      %s2881 = sshll.u32 [#allocation2], 4
      %s2882 = int_to_ptr.vmem [resolvable:$true] %s2881
      %2887 = dma.vmem_to_hbm [thread:$0]  %s2882, 256, %s14, [#allocation3], 128, 128, 8
    $region61: #{tpu_custom_call.1} parent=1 // pred_fallthru
      _
    // Predicated region
    $region62: #{tpu_custom_call.1} parent=1 // pred_check
      _
    $region63: #{tpu_custom_call.1} parent=1 // pred_check_branch
      %2889 = sbr.rel (0) target = $region65
    $region64: #{tpu_custom_call.1} parent=1 // pred_region
      %2890 = dma.done [#allocation3], 256
    $region65: #{tpu_custom_call.1} parent=1 // pred_fallthru
      _
    %2891 = vsyncpa [#allocation3], 1

</llo_original>
